<compile_context>
chip_gen: v6e
topology: v6e:2x2x1
jax: 0.10.0
libtpu: 0.0.40
codegen_flags: <defaults>
</compile_context>

<pallas_src>
import functools
import math

import jax
import jax.numpy as jnp
from jax.experimental import pallas as pl
from jax.experimental.pallas import tpu as pltpu


def _layernorm(y, gamma, beta, eps=1e-5):
    mu = jnp.mean(y, axis=-1, keepdims=True)
    var = jnp.mean((y - mu) ** 2, axis=-1, keepdims=True)
    return (y - mu) * jax.lax.rsqrt(var + eps) * gamma + beta


def temma_kernel(x_ref, w_qkv_ref, b_qkv_ref, w_o_ref, b_o_ref,
                 ln1_g_ref, ln1_b_ref, w1_ref, b1_ref, w2_ref, b2_ref,
                 ln2_g_ref, ln2_b_ref, w_fc_ref, b_fc_ref, out_ref, *, nhead):
    bt, seq, dm = x_ref.shape
    dh = dm // nhead
    n = bt * seq
    dff = w1_ref.shape[1]

    # (Bt, S, D) -> (Bt*S, D): leading-dim merge (sublane-tile aligned for S=8).
    x = x_ref[...].reshape(n, dm)

    # ---- Fused QKV projection: single (N, D) @ (D, 3D) MXU pass --------------
    # 1/sqrt(Dh) is already folded into the q columns / bias in the wrapper.
    qkv = (jnp.dot(x, w_qkv_ref[...], preferred_element_type=jnp.float32)
           + b_qkv_ref[...])

    # ---- Per-head attention (static unroll; per-head data = lane slices) -----
    head_outs = []
    for h in range(nhead):
        qh = qkv[:, h * dh:(h + 1) * dh].reshape(bt, seq, dh)
        kh = qkv[:, dm + h * dh: dm + (h + 1) * dh].reshape(bt, seq, dh)
        vh = qkv[:, 2 * dm + h * dh: 2 * dm + (h + 1) * dh].reshape(bt, seq, dh)
        s = jnp.einsum("bqd,bkd->bqk", qh, kh, preferred_element_type=jnp.float32)
        s = s - jnp.max(s, axis=-1, keepdims=True)
        p = jnp.exp(s)
        denom = jnp.sum(p, axis=-1, keepdims=True)
        r = pl.reciprocal(denom, approx=True)   # EUP slot (idle otherwise)
        r = r * (2.0 - denom * r)               # one Newton step -> f32 parity
        p = p * r
        oh = jnp.einsum("bqk,bkd->bqd", p, vh, preferred_element_type=jnp.float32)
        head_outs.append(oh.reshape(n, dh))

    # ---- Output projection: lane-concat heads, one (N, D) @ (D, D) pass ------
    attn = (jnp.dot(jnp.concatenate(head_outs, axis=-1), w_o_ref[...],
                    preferred_element_type=jnp.float32) + b_o_ref[...])

    # ---- Residual + LayerNorm 1 (post-norm) ----------------------------------
    x1 = _layernorm(x + attn, ln1_g_ref[...], ln1_b_ref[...])

    # ---- Feed-forward, chunked over dff so no (N, 2048) intermediate lives ----
    fcn = 512 if (dff > 512 and dff % 512 == 0) else dff
    ff = jnp.zeros((n, dm), jnp.float32)
    for c in range(dff // fcn):
        c0, c1 = c * fcn, (c + 1) * fcn
        hh = (jnp.dot(x1, w1_ref[:, c0:c1], preferred_element_type=jnp.float32)
              + b1_ref[:, c0:c1])
        hh = jnp.maximum(hh, 0.0)
        ff = ff + jnp.dot(hh, w2_ref[c0:c1, :], preferred_element_type=jnp.float32)
    ff = ff + b2_ref[...]

    # ---- Residual + LayerNorm 2 -----------------------------------------------
    x2 = _layernorm(x1 + ff, ln2_g_ref[...], ln2_b_ref[...])

    # ---- Flatten (Bt, S, D) -> (Bt, S*D) via lane concat, then one fc matmul --
    x2r = x2.reshape(bt, seq, dm)
    flat = jnp.concatenate([x2r[:, si, :] for si in range(seq)], axis=-1)
    out_ref[...] = (jnp.dot(flat, w_fc_ref[...],
                            preferred_element_type=jnp.float32) + b_fc_ref[...])


def _prepare_weights(params, nhead):
    """Fold the 1/sqrt(Dh) attention scale into the q columns of the fused
    in-projection so the kernel only does clean matmuls."""
    D = params["w_o"].shape[0]
    dh = D // nhead
    scale = 1.0 / math.sqrt(dh)
    col_scale = jnp.concatenate([jnp.full((D,), scale, jnp.float32),
                                 jnp.ones((2 * D,), jnp.float32)])
    w_qkv_f = params["w_qkv"] * col_scale[None, :]
    b_qkv_f = params["b_qkv"].reshape(1, 3 * D) * col_scale[None, :]
    return [w_qkv_f, b_qkv_f, params["w_o"], params["b_o"],
            params["ln1_g"], params["ln1_b"],
            params["w1"], params["b1"], params["w2"], params["b2"],
            params["ln2_g"], params["ln2_b"],
            params["w_fc"], params["b_fc"]]


def _pick_batch_tile(B, S, target_rows=512):
    """Pick Bt so Bt*S ~ target_rows MXU rows, keep the (Bt, G) output block
    legal (Bt % 8 == 0 or Bt == B), and prefer >= 2 grid steps for larger B so
    both v7x TensorCores get work under dimension_semantics=('parallel',)."""
    cap = max(1, target_rows // max(S, 1))
    if B >= 16:
        for bt in range(min(cap, B // 2), 7, -1):
            if B % bt == 0 and bt % 8 == 0:
                return bt
    if B <= cap:
        return B                                # single grid step, whole batch
    for bt in range(cap, 0, -1):
        if B % bt == 0 and (bt % 8 == 0 or bt == B):
            return bt
    return B


def temma_forward(skeleton, feats, params, nhead):
    # `skeleton` is unused by the reference forward pass (kept for signature parity).
    del skeleton
    B, S, D = feats.shape
    G = params["w_fc"].shape[1]
    F = params["w1"].shape[1]
    assert D % nhead == 0, "d_model must be divisible by nhead"
    assert params["w_fc"].shape[0] == S * D, \
        "feats sequence length must equal context_frames (fc1 sizing)"

    weights = _prepare_weights(params, nhead)
    bt = _pick_batch_tile(B, S)

    def full_spec(arr):
        nd = arr.ndim
        return pl.BlockSpec(arr.shape, lambda i, _nd=nd: (0,) * _nd)

    in_specs = [pl.BlockSpec((bt, S, D), lambda i: (i, 0, 0))]
    in_specs += [full_spec(w) for w in weights]
    out_spec = pl.BlockSpec((bt, G), lambda i: (i, 0))

    n_rows = B * S
    flops = int(2 * n_rows * D * (3 * D + D + 2 * F)     # qkv + out-proj + FFN
                + 4 * B * nhead * S * S * (D // nhead)   # attention einsums
                + 2 * B * S * D * G)                      # flatten fc
    transcendentals = int(B * nhead * S * S + 2 * n_rows)
    bytes_accessed = int(4 * (feats.size + sum(int(w.size) for w in weights) + B * G))

    kernel = functools.partial(temma_kernel, nhead=nhead)

    return pl.pallas_call(
        kernel,
        out_shape=jax.ShapeDtypeStruct((B, G), jnp.float32),
        grid_spec=pltpu.PrefetchScalarGridSpec(
            num_scalar_prefetch=0,
            grid=(B // bt,),
            in_specs=in_specs,
            out_specs=out_spec,
        ),
        compiler_params=pltpu.CompilerParams(
            dimension_semantics=("parallel",)),
        cost_estimate=pl.CostEstimate(
            flops=flops,
            transcendentals=transcendentals,
            bytes_accessed=bytes_accessed),
    )(feats, *weights)


def temma_reference(feats, params, nhead):
    """Pure-JAX reference of the same eval-mode forward pass (for verification)."""
    B, S, D = feats.shape
    Dh = D // nhead
    scale = 1.0 / math.sqrt(Dh)

    qkv = feats @ params["w_qkv"] + params["b_qkv"]          # (B,S,3D)
    q, k, v = jnp.split(qkv, 3, axis=-1)

    def split_heads(t):  # (B,S,D) -> (B,H,S,Dh)
        return t.reshape(B, S, nhead, Dh).transpose(0, 2, 1, 3)

    qh, kh, vh = split_heads(q) * scale, split_heads(k), split_heads(v)
    s = jnp.einsum("bhqd,bhkd->bhqk", qh, kh)
    p = jax.nn.softmax(s, axis=-1)
    attn = jnp.einsum("bhqk,bhkd->bhqd", p, vh).transpose(0, 2, 1, 3).reshape(B, S, D)
    attn = attn @ params["w_o"] + params["b_o"]

    def ln(y, g, b, eps=1e-5):
        mu = jnp.mean(y, axis=-1, keepdims=True)
        var = jnp.mean((y - mu) ** 2, axis=-1, keepdims=True)
        return (y - mu) * jax.lax.rsqrt(var + eps) * g + b

    x1 = ln(feats + attn, params["ln1_g"][0], params["ln1_b"][0])
    ff = jnp.maximum(x1 @ params["w1"] + params["b1"], 0.0) @ params["w2"] + params["b2"]
    x2 = ln(x1 + ff, params["ln2_g"][0], params["ln2_b"][0])
    flat = x2.reshape(B, S * D)
    return flat @ params["w_fc"] + params["b_fc"]


def init_params(key, input_feats, context_frames, label_levels, dim_feedforward=2048):
    D = input_feats
    F = dim_feedforward
    G = label_levels
    keys = jax.random.split(key, 8)
    sd = lambda fan_in: 1.0 / math.sqrt(fan_in)
    params = {
        "w_qkv": jax.random.normal(keys[0], (D, 3 * D), jnp.float32) * sd(D),
        "b_qkv": jnp.zeros((1, 3 * D), jnp.float32),
        "w_o":   jax.random.normal(keys[1], (D, D), jnp.float32) * sd(D),
        "b_o":   jnp.zeros((1, D), jnp.float32),
        "ln1_g": jnp.ones((1, D), jnp.float32),
        "ln1_b": jnp.zeros((1, D), jnp.float32),
        "w1":    jax.random.normal(keys[2], (D, F), jnp.float32) * sd(D),
        "b1":    jax.random.normal(keys[3], (1, F), jnp.float32) * 0.01,
        "w2":    jax.random.normal(keys[4], (F, D), jnp.float32) * sd(F),
        "b2":    jax.random.normal(keys[5], (1, D), jnp.float32) * 0.01,
        "ln2_g": jnp.ones((1, D), jnp.float32),
        "ln2_b": jnp.zeros((1, D), jnp.float32),
        "w_fc":  jax.random.normal(keys[6], (D * context_frames, G), jnp.float32)
                 * sd(D * context_frames),
        "b_fc":  jax.random.normal(keys[7], (1, G), jnp.float32) * 0.01,
    }
    return params


if __name__ == "__main__":
    # Small shapes consistent with the module:
    #   input_feats=32, label_levels=5, context_frames=8, nhead=4, batch=2.
    B, S, D = 2, 8, 32
    NHEAD = 4
    G = 5

    key = jax.random.PRNGKey(0)
    k_feat, k_skel, k_par = jax.random.split(key, 3)

    feats = jax.random.normal(k_feat, (B, S, D), jnp.float32)
    skeleton = jax.random.normal(k_skel, (B, S, D), jnp.float32)  # unused by forward
    params = init_params(k_par, input_feats=D, context_frames=S, label_levels=G)

    out = temma_forward(skeleton, feats, params, NHEAD)
    out = jax.block_until_ready(out)

    ref = temma_reference(feats, params, NHEAD)
    assert out.shape == (B, G), out.shape
    # Slightly relaxed vs strict 1e-4: the fused-QKV / chunked-FFN / lane-concat
    # decomposition reassociates f32 sums (observed error is ~1e-6 level).
    assert jnp.allclose(out, ref, atol=2e-4, rtol=2e-4), (
        f"mismatch: max abs err {jnp.max(jnp.abs(out - ref))}")

    print("KERNEL_OK")
</pallas_src>

<mosaic_0001>
module attributes {stable_mosaic.version = 11 : i64} {
  func.func @temma_kernel(%arg0: i32, %arg1: memref<2x8x32xf32, #tpu.memory_space<vmem>>, %arg2: memref<32x96xf32, #tpu.memory_space<vmem>>, %arg3: memref<1x96xf32, #tpu.memory_space<vmem>>, %arg4: memref<32x32xf32, #tpu.memory_space<vmem>>, %arg5: memref<1x32xf32, #tpu.memory_space<vmem>>, %arg6: memref<1x32xf32, #tpu.memory_space<vmem>>, %arg7: memref<1x32xf32, #tpu.memory_space<vmem>>, %arg8: memref<32x2048xf32, #tpu.memory_space<vmem>>, %arg9: memref<1x2048xf32, #tpu.memory_space<vmem>>, %arg10: memref<2048x32xf32, #tpu.memory_space<vmem>>, %arg11: memref<1x32xf32, #tpu.memory_space<vmem>>, %arg12: memref<1x32xf32, #tpu.memory_space<vmem>>, %arg13: memref<1x32xf32, #tpu.memory_space<vmem>>, %arg14: memref<256x5xf32, #tpu.memory_space<vmem>>, %arg15: memref<1x5xf32, #tpu.memory_space<vmem>>, %arg16: memref<2x5xf32, #tpu.memory_space<vmem>>) attributes {dimension_semantics = [#tpu.dimension_semantics<parallel>], iteration_bounds = array<i64: 1>, scalar_prefetch = 0 : i64, scratch_operands = 0 : i64, tpu.core_type = #tpu.core_type<tc>, window_params = [{transform_indices = @transform_0, window_bounds = array<i64: 2, 8, 32>}, {pipeline_mode = #tpu.pipeline_mode<synchronous>, transform_indices = @transform_1, window_bounds = array<i64: 32, 96>}, {pipeline_mode = #tpu.pipeline_mode<synchronous>, transform_indices = @transform_2, window_bounds = array<i64: 1, 96>}, {pipeline_mode = #tpu.pipeline_mode<synchronous>, transform_indices = @transform_3, window_bounds = array<i64: 32, 32>}, {pipeline_mode = #tpu.pipeline_mode<synchronous>, transform_indices = @transform_4, window_bounds = array<i64: 1, 32>}, {pipeline_mode = #tpu.pipeline_mode<synchronous>, transform_indices = @transform_5, window_bounds = array<i64: 1, 32>}, {pipeline_mode = #tpu.pipeline_mode<synchronous>, transform_indices = @transform_6, window_bounds = array<i64: 1, 32>}, {pipeline_mode = #tpu.pipeline_mode<synchronous>, transform_indices = @transform_7, window_bounds = array<i64: 32, 2048>}, {pipeline_mode = #tpu.pipeline_mode<synchronous>, transform_indices = @transform_8, window_bounds = array<i64: 1, 2048>}, {pipeline_mode = #tpu.pipeline_mode<synchronous>, transform_indices = @transform_9, window_bounds = array<i64: 2048, 32>}, {pipeline_mode = #tpu.pipeline_mode<synchronous>, transform_indices = @transform_10, window_bounds = array<i64: 1, 32>}, {pipeline_mode = #tpu.pipeline_mode<synchronous>, transform_indices = @transform_11, window_bounds = array<i64: 1, 32>}, {pipeline_mode = #tpu.pipeline_mode<synchronous>, transform_indices = @transform_12, window_bounds = array<i64: 1, 32>}, {pipeline_mode = #tpu.pipeline_mode<synchronous>, transform_indices = @transform_13, window_bounds = array<i64: 256, 5>}, {pipeline_mode = #tpu.pipeline_mode<synchronous>, transform_indices = @transform_14, window_bounds = array<i64: 1, 5>}, {transform_indices = @transform_15, window_bounds = array<i64: 2, 5>}]} {
    %c0 = arith.constant 0 : index
    %c0_0 = arith.constant 0 : index
    %c0_1 = arith.constant 0 : index
    %0 = vector.load %arg1[%c0, %c0_0, %c0_1] : memref<2x8x32xf32, #tpu.memory_space<vmem>>, vector<2x8x32xf32>
    %1 = vector.shape_cast %0 : vector<2x8x32xf32> to vector<16x32xf32>
    %c0_2 = arith.constant 0 : index
    %c0_3 = arith.constant 0 : index
    %2 = vector.load %arg2[%c0_2, %c0_3] : memref<32x96xf32, #tpu.memory_space<vmem>>, vector<32x96xf32>
    %cst = arith.constant dense<0.000000e+00> : vector<16x96xf32>
    %3 = tpu.matmul %1, %2, %cst {dimension_numbers = #tpu.dot_dimension_numbers<[1], [0], [0], [1], [0, 0, 1, 1], [], []>} : vector<16x32xf32>, vector<32x96xf32>, vector<16x96xf32> -> vector<16x96xf32>
    %c0_4 = arith.constant 0 : index
    %c0_5 = arith.constant 0 : index
    %4 = vector.load %arg3[%c0_4, %c0_5] : memref<1x96xf32, #tpu.memory_space<vmem>>, vector<1x96xf32>
    %5 = vector.broadcast %4 : vector<1x96xf32> to vector<16x96xf32>
    %6 = arith.addf %3, %5 : vector<16x96xf32>
    %7 = vector.extract_strided_slice %6 {offsets = [0, 0], sizes = [16, 8], strides = [1, 1]} : vector<16x96xf32> to vector<16x8xf32>
    %8 = vector.shape_cast %7 : vector<16x8xf32> to vector<2x8x8xf32>
    %9 = vector.extract_strided_slice %6 {offsets = [0, 32], sizes = [16, 8], strides = [1, 1]} : vector<16x96xf32> to vector<16x8xf32>
    %10 = vector.shape_cast %9 : vector<16x8xf32> to vector<2x8x8xf32>
    %11 = vector.extract_strided_slice %6 {offsets = [0, 64], sizes = [16, 8], strides = [1, 1]} : vector<16x96xf32> to vector<16x8xf32>
    %12 = vector.shape_cast %11 : vector<16x8xf32> to vector<2x8x8xf32>
    "tpu.trace_start"() <{level = 10 : i32, message = "bqd,bkd->bqk"}> : () -> ()
    %cst_6 = arith.constant dense<0.000000e+00> : vector<2x8x8xf32>
    %13 = tpu.matmul %8, %10, %cst_6 {dimension_numbers = #tpu.dot_dimension_numbers<[2], [2], [1], [1], [0, 0, 0, 1, 1, 1], [0], [0]>} : vector<2x8x8xf32>, vector<2x8x8xf32>, vector<2x8x8xf32> -> vector<2x8x8xf32>
    "tpu.trace_stop"() : () -> ()
    %cst_7 = arith.constant dense<0xFF800000> : vector<2x8xf32>
    %14 = vector.multi_reduction <maximumf>, %13, %cst_7 [2] : vector<2x8x8xf32> to vector<2x8xf32>
    %15 = vector.shape_cast %14 : vector<2x8xf32> to vector<2x8x1xf32>
    %16 = vector.broadcast %15 : vector<2x8x1xf32> to vector<2x8x8xf32>
    %17 = arith.subf %13, %16 : vector<2x8x8xf32>
    %18 = math.exp %17 : vector<2x8x8xf32>
    %cst_8 = arith.constant dense<0.000000e+00> : vector<2x8xf32>
    %19 = vector.multi_reduction <add>, %18, %cst_8 [2] : vector<2x8x8xf32> to vector<2x8xf32>
    %20 = vector.shape_cast %19 : vector<2x8xf32> to vector<2x8x1xf32>
    %21 = tpu.reciprocal %20 {approx = true} : vector<2x8x1xf32> -> vector<2x8x1xf32>
    %22 = arith.mulf %20, %21 : vector<2x8x1xf32>
    %cst_9 = arith.constant 2.000000e+00 : f32
    %23 = vector.broadcast %cst_9 : f32 to vector<2x8x1xf32>
    %24 = arith.subf %23, %22 : vector<2x8x1xf32>
    %25 = arith.mulf %21, %24 : vector<2x8x1xf32>
    %26 = vector.broadcast %25 : vector<2x8x1xf32> to vector<2x8x8xf32>
    %27 = arith.mulf %18, %26 : vector<2x8x8xf32>
    "tpu.trace_start"() <{level = 10 : i32, message = "bqk,bkd->bqd"}> : () -> ()
    %cst_10 = arith.constant dense<0.000000e+00> : vector<2x8x8xf32>
    %28 = tpu.matmul %27, %12, %cst_10 {dimension_numbers = #tpu.dot_dimension_numbers<[2], [1], [1], [2], [0, 0, 0, 1, 1, 2], [0], [0]>} : vector<2x8x8xf32>, vector<2x8x8xf32>, vector<2x8x8xf32> -> vector<2x8x8xf32>
    "tpu.trace_stop"() : () -> ()
    %29 = vector.shape_cast %28 : vector<2x8x8xf32> to vector<16x8xf32>
    %30 = vector.extract_strided_slice %6 {offsets = [0, 8], sizes = [16, 8], strides = [1, 1]} : vector<16x96xf32> to vector<16x8xf32>
    %31 = vector.shape_cast %30 : vector<16x8xf32> to vector<2x8x8xf32>
    %32 = vector.extract_strided_slice %6 {offsets = [0, 40], sizes = [16, 8], strides = [1, 1]} : vector<16x96xf32> to vector<16x8xf32>
    %33 = vector.shape_cast %32 : vector<16x8xf32> to vector<2x8x8xf32>
    %34 = vector.extract_strided_slice %6 {offsets = [0, 72], sizes = [16, 8], strides = [1, 1]} : vector<16x96xf32> to vector<16x8xf32>
    %35 = vector.shape_cast %34 : vector<16x8xf32> to vector<2x8x8xf32>
    "tpu.trace_start"() <{level = 10 : i32, message = "bqd,bkd->bqk"}> : () -> ()
    %cst_11 = arith.constant dense<0.000000e+00> : vector<2x8x8xf32>
    %36 = tpu.matmul %31, %33, %cst_11 {dimension_numbers = #tpu.dot_dimension_numbers<[2], [2], [1], [1], [0, 0, 0, 1, 1, 1], [0], [0]>} : vector<2x8x8xf32>, vector<2x8x8xf32>, vector<2x8x8xf32> -> vector<2x8x8xf32>
    "tpu.trace_stop"() : () -> ()
    %cst_12 = arith.constant dense<0xFF800000> : vector<2x8xf32>
    %37 = vector.multi_reduction <maximumf>, %36, %cst_12 [2] : vector<2x8x8xf32> to vector<2x8xf32>
    %38 = vector.shape_cast %37 : vector<2x8xf32> to vector<2x8x1xf32>
    %39 = vector.broadcast %38 : vector<2x8x1xf32> to vector<2x8x8xf32>
    %40 = arith.subf %36, %39 : vector<2x8x8xf32>
    %41 = math.exp %40 : vector<2x8x8xf32>
    %cst_13 = arith.constant dense<0.000000e+00> : vector<2x8xf32>
    %42 = vector.multi_reduction <add>, %41, %cst_13 [2] : vector<2x8x8xf32> to vector<2x8xf32>
    %43 = vector.shape_cast %42 : vector<2x8xf32> to vector<2x8x1xf32>
    %44 = tpu.reciprocal %43 {approx = true} : vector<2x8x1xf32> -> vector<2x8x1xf32>
    %45 = arith.mulf %43, %44 : vector<2x8x1xf32>
    %cst_14 = arith.constant 2.000000e+00 : f32
    %46 = vector.broadcast %cst_14 : f32 to vector<2x8x1xf32>
    %47 = arith.subf %46, %45 : vector<2x8x1xf32>
    %48 = arith.mulf %44, %47 : vector<2x8x1xf32>
    %49 = vector.broadcast %48 : vector<2x8x1xf32> to vector<2x8x8xf32>
    %50 = arith.mulf %41, %49 : vector<2x8x8xf32>
    "tpu.trace_start"() <{level = 10 : i32, message = "bqk,bkd->bqd"}> : () -> ()
    %cst_15 = arith.constant dense<0.000000e+00> : vector<2x8x8xf32>
    %51 = tpu.matmul %50, %35, %cst_15 {dimension_numbers = #tpu.dot_dimension_numbers<[2], [1], [1], [2], [0, 0, 0, 1, 1, 2], [0], [0]>} : vector<2x8x8xf32>, vector<2x8x8xf32>, vector<2x8x8xf32> -> vector<2x8x8xf32>
    "tpu.trace_stop"() : () -> ()
    %52 = vector.shape_cast %51 : vector<2x8x8xf32> to vector<16x8xf32>
    %53 = vector.extract_strided_slice %6 {offsets = [0, 16], sizes = [16, 8], strides = [1, 1]} : vector<16x96xf32> to vector<16x8xf32>
    %54 = vector.shape_cast %53 : vector<16x8xf32> to vector<2x8x8xf32>
    %55 = vector.extract_strided_slice %6 {offsets = [0, 48], sizes = [16, 8], strides = [1, 1]} : vector<16x96xf32> to vector<16x8xf32>
    %56 = vector.shape_cast %55 : vector<16x8xf32> to vector<2x8x8xf32>
    %57 = vector.extract_strided_slice %6 {offsets = [0, 80], sizes = [16, 8], strides = [1, 1]} : vector<16x96xf32> to vector<16x8xf32>
    %58 = vector.shape_cast %57 : vector<16x8xf32> to vector<2x8x8xf32>
    "tpu.trace_start"() <{level = 10 : i32, message = "bqd,bkd->bqk"}> : () -> ()
    %cst_16 = arith.constant dense<0.000000e+00> : vector<2x8x8xf32>
    %59 = tpu.matmul %54, %56, %cst_16 {dimension_numbers = #tpu.dot_dimension_numbers<[2], [2], [1], [1], [0, 0, 0, 1, 1, 1], [0], [0]>} : vector<2x8x8xf32>, vector<2x8x8xf32>, vector<2x8x8xf32> -> vector<2x8x8xf32>
    "tpu.trace_stop"() : () -> ()
    %cst_17 = arith.constant dense<0xFF800000> : vector<2x8xf32>
    %60 = vector.multi_reduction <maximumf>, %59, %cst_17 [2] : vector<2x8x8xf32> to vector<2x8xf32>
    %61 = vector.shape_cast %60 : vector<2x8xf32> to vector<2x8x1xf32>
    %62 = vector.broadcast %61 : vector<2x8x1xf32> to vector<2x8x8xf32>
    %63 = arith.subf %59, %62 : vector<2x8x8xf32>
    %64 = math.exp %63 : vector<2x8x8xf32>
    %cst_18 = arith.constant dense<0.000000e+00> : vector<2x8xf32>
    %65 = vector.multi_reduction <add>, %64, %cst_18 [2] : vector<2x8x8xf32> to vector<2x8xf32>
    %66 = vector.shape_cast %65 : vector<2x8xf32> to vector<2x8x1xf32>
    %67 = tpu.reciprocal %66 {approx = true} : vector<2x8x1xf32> -> vector<2x8x1xf32>
    %68 = arith.mulf %66, %67 : vector<2x8x1xf32>
    %cst_19 = arith.constant 2.000000e+00 : f32
    %69 = vector.broadcast %cst_19 : f32 to vector<2x8x1xf32>
    %70 = arith.subf %69, %68 : vector<2x8x1xf32>
    %71 = arith.mulf %67, %70 : vector<2x8x1xf32>
    %72 = vector.broadcast %71 : vector<2x8x1xf32> to vector<2x8x8xf32>
    %73 = arith.mulf %64, %72 : vector<2x8x8xf32>
    "tpu.trace_start"() <{level = 10 : i32, message = "bqk,bkd->bqd"}> : () -> ()
    %cst_20 = arith.constant dense<0.000000e+00> : vector<2x8x8xf32>
    %74 = tpu.matmul %73, %58, %cst_20 {dimension_numbers = #tpu.dot_dimension_numbers<[2], [1], [1], [2], [0, 0, 0, 1, 1, 2], [0], [0]>} : vector<2x8x8xf32>, vector<2x8x8xf32>, vector<2x8x8xf32> -> vector<2x8x8xf32>
    "tpu.trace_stop"() : () -> ()
    %75 = vector.shape_cast %74 : vector<2x8x8xf32> to vector<16x8xf32>
    %76 = vector.extract_strided_slice %6 {offsets = [0, 24], sizes = [16, 8], strides = [1, 1]} : vector<16x96xf32> to vector<16x8xf32>
    %77 = vector.shape_cast %76 : vector<16x8xf32> to vector<2x8x8xf32>
    %78 = vector.extract_strided_slice %6 {offsets = [0, 56], sizes = [16, 8], strides = [1, 1]} : vector<16x96xf32> to vector<16x8xf32>
    %79 = vector.shape_cast %78 : vector<16x8xf32> to vector<2x8x8xf32>
    %80 = vector.extract_strided_slice %6 {offsets = [0, 88], sizes = [16, 8], strides = [1, 1]} : vector<16x96xf32> to vector<16x8xf32>
    %81 = vector.shape_cast %80 : vector<16x8xf32> to vector<2x8x8xf32>
    "tpu.trace_start"() <{level = 10 : i32, message = "bqd,bkd->bqk"}> : () -> ()
    %cst_21 = arith.constant dense<0.000000e+00> : vector<2x8x8xf32>
    %82 = tpu.matmul %77, %79, %cst_21 {dimension_numbers = #tpu.dot_dimension_numbers<[2], [2], [1], [1], [0, 0, 0, 1, 1, 1], [0], [0]>} : vector<2x8x8xf32>, vector<2x8x8xf32>, vector<2x8x8xf32> -> vector<2x8x8xf32>
    "tpu.trace_stop"() : () -> ()
    %cst_22 = arith.constant dense<0xFF800000> : vector<2x8xf32>
    %83 = vector.multi_reduction <maximumf>, %82, %cst_22 [2] : vector<2x8x8xf32> to vector<2x8xf32>
    %84 = vector.shape_cast %83 : vector<2x8xf32> to vector<2x8x1xf32>
    %85 = vector.broadcast %84 : vector<2x8x1xf32> to vector<2x8x8xf32>
    %86 = arith.subf %82, %85 : vector<2x8x8xf32>
    %87 = math.exp %86 : vector<2x8x8xf32>
    %cst_23 = arith.constant dense<0.000000e+00> : vector<2x8xf32>
    %88 = vector.multi_reduction <add>, %87, %cst_23 [2] : vector<2x8x8xf32> to vector<2x8xf32>
    %89 = vector.shape_cast %88 : vector<2x8xf32> to vector<2x8x1xf32>
    %90 = tpu.reciprocal %89 {approx = true} : vector<2x8x1xf32> -> vector<2x8x1xf32>
    %91 = arith.mulf %89, %90 : vector<2x8x1xf32>
    %cst_24 = arith.constant 2.000000e+00 : f32
    %92 = vector.broadcast %cst_24 : f32 to vector<2x8x1xf32>
    %93 = arith.subf %92, %91 : vector<2x8x1xf32>
    %94 = arith.mulf %90, %93 : vector<2x8x1xf32>
    %95 = vector.broadcast %94 : vector<2x8x1xf32> to vector<2x8x8xf32>
    %96 = arith.mulf %87, %95 : vector<2x8x8xf32>
    "tpu.trace_start"() <{level = 10 : i32, message = "bqk,bkd->bqd"}> : () -> ()
    %cst_25 = arith.constant dense<0.000000e+00> : vector<2x8x8xf32>
    %97 = tpu.matmul %96, %81, %cst_25 {dimension_numbers = #tpu.dot_dimension_numbers<[2], [1], [1], [2], [0, 0, 0, 1, 1, 2], [0], [0]>} : vector<2x8x8xf32>, vector<2x8x8xf32>, vector<2x8x8xf32> -> vector<2x8x8xf32>
    "tpu.trace_stop"() : () -> ()
    %98 = vector.shape_cast %97 : vector<2x8x8xf32> to vector<16x8xf32>
    %99 = tpu.concatenate %29, %52, %75, %98 in 1 : vector<16x8xf32>, vector<16x8xf32>, vector<16x8xf32>, vector<16x8xf32> -> vector<16x32xf32>
    %c0_26 = arith.constant 0 : index
    %c0_27 = arith.constant 0 : index
    %100 = vector.load %arg4[%c0_26, %c0_27] : memref<32x32xf32, #tpu.memory_space<vmem>>, vector<32x32xf32>
    %cst_28 = arith.constant dense<0.000000e+00> : vector<16x32xf32>
    %101 = tpu.matmul %99, %100, %cst_28 {dimension_numbers = #tpu.dot_dimension_numbers<[1], [0], [0], [1], [0, 0, 1, 1], [], []>} : vector<16x32xf32>, vector<32x32xf32>, vector<16x32xf32> -> vector<16x32xf32>
    %c0_29 = arith.constant 0 : index
    %c0_30 = arith.constant 0 : index
    %102 = vector.load %arg5[%c0_29, %c0_30] : memref<1x32xf32, #tpu.memory_space<vmem>>, vector<1x32xf32>
    %103 = vector.broadcast %102 : vector<1x32xf32> to vector<16x32xf32>
    %104 = arith.addf %101, %103 : vector<16x32xf32>
    %105 = arith.addf %1, %104 : vector<16x32xf32>
    %c0_31 = arith.constant 0 : index
    %c0_32 = arith.constant 0 : index
    %106 = vector.load %arg6[%c0_31, %c0_32] : memref<1x32xf32, #tpu.memory_space<vmem>>, vector<1x32xf32>
    %c0_33 = arith.constant 0 : index
    %c0_34 = arith.constant 0 : index
    %107 = vector.load %arg7[%c0_33, %c0_34] : memref<1x32xf32, #tpu.memory_space<vmem>>, vector<1x32xf32>
    %cst_35 = arith.constant dense<0.000000e+00> : vector<16xf32>
    %108 = vector.multi_reduction <add>, %105, %cst_35 [1] : vector<16x32xf32> to vector<16xf32>
    %109 = vector.shape_cast %108 : vector<16xf32> to vector<16x1xf32>
    %cst_36 = arith.constant 3.200000e+01 : f32
    %110 = vector.broadcast %cst_36 : f32 to vector<16x1xf32>
    %111 = arith.divf %109, %110 : vector<16x1xf32>
    %112 = vector.broadcast %111 : vector<16x1xf32> to vector<16x32xf32>
    %113 = arith.subf %105, %112 : vector<16x32xf32>
    %114 = arith.mulf %113, %113 : vector<16x32xf32>
    %cst_37 = arith.constant dense<0.000000e+00> : vector<16xf32>
    %115 = vector.multi_reduction <add>, %114, %cst_37 [1] : vector<16x32xf32> to vector<16xf32>
    %116 = vector.shape_cast %115 : vector<16xf32> to vector<16x1xf32>
    %cst_38 = arith.constant 3.200000e+01 : f32
    %117 = vector.broadcast %cst_38 : f32 to vector<16x1xf32>
    %118 = arith.divf %116, %117 : vector<16x1xf32>
    %119 = vector.broadcast %111 : vector<16x1xf32> to vector<16x32xf32>
    %120 = arith.subf %105, %119 : vector<16x32xf32>
    %cst_39 = arith.constant 9.99999974E-6 : f32
    %121 = vector.broadcast %cst_39 : f32 to vector<16x1xf32>
    %122 = arith.addf %118, %121 : vector<16x1xf32>
    %123 = math.rsqrt %122 : vector<16x1xf32>
    %124 = vector.broadcast %123 : vector<16x1xf32> to vector<16x32xf32>
    %125 = arith.mulf %120, %124 : vector<16x32xf32>
    %126 = vector.broadcast %106 : vector<1x32xf32> to vector<16x32xf32>
    %127 = arith.mulf %125, %126 : vector<16x32xf32>
    %128 = vector.broadcast %107 : vector<1x32xf32> to vector<16x32xf32>
    %129 = arith.addf %127, %128 : vector<16x32xf32>
    %cst_40 = arith.constant 0.000000e+00 : f32
    %130 = vector.broadcast %cst_40 : f32 to vector<16x32xf32>
    %c0_41 = arith.constant 0 : index
    %c0_42 = arith.constant 0 : index
    %131 = vector.load %arg8[%c0_41, %c0_42] : memref<32x2048xf32, #tpu.memory_space<vmem>>, vector<32x512xf32>
    %cst_43 = arith.constant dense<0.000000e+00> : vector<16x512xf32>
    %132 = tpu.matmul %129, %131, %cst_43 {dimension_numbers = #tpu.dot_dimension_numbers<[1], [0], [0], [1], [0, 0, 1, 1], [], []>} : vector<16x32xf32>, vector<32x512xf32>, vector<16x512xf32> -> vector<16x512xf32>
    %c0_44 = arith.constant 0 : index
    %c0_45 = arith.constant 0 : index
    %133 = vector.load %arg9[%c0_44, %c0_45] : memref<1x2048xf32, #tpu.memory_space<vmem>>, vector<1x512xf32>
    %134 = vector.broadcast %133 : vector<1x512xf32> to vector<16x512xf32>
    %135 = arith.addf %132, %134 : vector<16x512xf32>
    %cst_46 = arith.constant 0.000000e+00 : f32
    %136 = vector.broadcast %cst_46 : f32 to vector<16x512xf32>
    %137 = arith.maximumf %135, %136 : vector<16x512xf32>
    %c0_47 = arith.constant 0 : index
    %c0_48 = arith.constant 0 : index
    %138 = vector.load %arg10[%c0_47, %c0_48] : memref<2048x32xf32, #tpu.memory_space<vmem>>, vector<512x32xf32>
    %cst_49 = arith.constant dense<0.000000e+00> : vector<16x32xf32>
    %139 = tpu.matmul %137, %138, %cst_49 {dimension_numbers = #tpu.dot_dimension_numbers<[1], [0], [0], [1], [0, 0, 1, 1], [], []>} : vector<16x512xf32>, vector<512x32xf32>, vector<16x32xf32> -> vector<16x32xf32>
    %140 = arith.addf %130, %139 : vector<16x32xf32>
    %c0_50 = arith.constant 0 : index
    %c512 = arith.constant 512 : index
    %141 = vector.load %arg8[%c0_50, %c512] : memref<32x2048xf32, #tpu.memory_space<vmem>>, vector<32x512xf32>
    %cst_51 = arith.constant dense<0.000000e+00> : vector<16x512xf32>
    %142 = tpu.matmul %129, %141, %cst_51 {dimension_numbers = #tpu.dot_dimension_numbers<[1], [0], [0], [1], [0, 0, 1, 1], [], []>} : vector<16x32xf32>, vector<32x512xf32>, vector<16x512xf32> -> vector<16x512xf32>
    %c0_52 = arith.constant 0 : index
    %c512_53 = arith.constant 512 : index
    %143 = vector.load %arg9[%c0_52, %c512_53] : memref<1x2048xf32, #tpu.memory_space<vmem>>, vector<1x512xf32>
    %144 = vector.broadcast %143 : vector<1x512xf32> to vector<16x512xf32>
    %145 = arith.addf %142, %144 : vector<16x512xf32>
    %cst_54 = arith.constant 0.000000e+00 : f32
    %146 = vector.broadcast %cst_54 : f32 to vector<16x512xf32>
    %147 = arith.maximumf %145, %146 : vector<16x512xf32>
    %c512_55 = arith.constant 512 : index
    %c0_56 = arith.constant 0 : index
    %148 = vector.load %arg10[%c512_55, %c0_56] : memref<2048x32xf32, #tpu.memory_space<vmem>>, vector<512x32xf32>
    %cst_57 = arith.constant dense<0.000000e+00> : vector<16x32xf32>
    %149 = tpu.matmul %147, %148, %cst_57 {dimension_numbers = #tpu.dot_dimension_numbers<[1], [0], [0], [1], [0, 0, 1, 1], [], []>} : vector<16x512xf32>, vector<512x32xf32>, vector<16x32xf32> -> vector<16x32xf32>
    %150 = arith.addf %140, %149 : vector<16x32xf32>
    %c0_58 = arith.constant 0 : index
    %c1024 = arith.constant 1024 : index
    %151 = vector.load %arg8[%c0_58, %c1024] : memref<32x2048xf32, #tpu.memory_space<vmem>>, vector<32x512xf32>
    %cst_59 = arith.constant dense<0.000000e+00> : vector<16x512xf32>
    %152 = tpu.matmul %129, %151, %cst_59 {dimension_numbers = #tpu.dot_dimension_numbers<[1], [0], [0], [1], [0, 0, 1, 1], [], []>} : vector<16x32xf32>, vector<32x512xf32>, vector<16x512xf32> -> vector<16x512xf32>
    %c0_60 = arith.constant 0 : index
    %c1024_61 = arith.constant 1024 : index
    %153 = vector.load %arg9[%c0_60, %c1024_61] : memref<1x2048xf32, #tpu.memory_space<vmem>>, vector<1x512xf32>
    %154 = vector.broadcast %153 : vector<1x512xf32> to vector<16x512xf32>
    %155 = arith.addf %152, %154 : vector<16x512xf32>
    %cst_62 = arith.constant 0.000000e+00 : f32
    %156 = vector.broadcast %cst_62 : f32 to vector<16x512xf32>
    %157 = arith.maximumf %155, %156 : vector<16x512xf32>
    %c1024_63 = arith.constant 1024 : index
    %c0_64 = arith.constant 0 : index
    %158 = vector.load %arg10[%c1024_63, %c0_64] : memref<2048x32xf32, #tpu.memory_space<vmem>>, vector<512x32xf32>
    %cst_65 = arith.constant dense<0.000000e+00> : vector<16x32xf32>
    %159 = tpu.matmul %157, %158, %cst_65 {dimension_numbers = #tpu.dot_dimension_numbers<[1], [0], [0], [1], [0, 0, 1, 1], [], []>} : vector<16x512xf32>, vector<512x32xf32>, vector<16x32xf32> -> vector<16x32xf32>
    %160 = arith.addf %150, %159 : vector<16x32xf32>
    %c0_66 = arith.constant 0 : index
    %c1536 = arith.constant 1536 : index
    %161 = vector.load %arg8[%c0_66, %c1536] : memref<32x2048xf32, #tpu.memory_space<vmem>>, vector<32x512xf32>
    %cst_67 = arith.constant dense<0.000000e+00> : vector<16x512xf32>
    %162 = tpu.matmul %129, %161, %cst_67 {dimension_numbers = #tpu.dot_dimension_numbers<[1], [0], [0], [1], [0, 0, 1, 1], [], []>} : vector<16x32xf32>, vector<32x512xf32>, vector<16x512xf32> -> vector<16x512xf32>
    %c0_68 = arith.constant 0 : index
    %c1536_69 = arith.constant 1536 : index
    %163 = vector.load %arg9[%c0_68, %c1536_69] : memref<1x2048xf32, #tpu.memory_space<vmem>>, vector<1x512xf32>
    %164 = vector.broadcast %163 : vector<1x512xf32> to vector<16x512xf32>
    %165 = arith.addf %162, %164 : vector<16x512xf32>
    %cst_70 = arith.constant 0.000000e+00 : f32
    %166 = vector.broadcast %cst_70 : f32 to vector<16x512xf32>
    %167 = arith.maximumf %165, %166 : vector<16x512xf32>
    %c1536_71 = arith.constant 1536 : index
    %c0_72 = arith.constant 0 : index
    %168 = vector.load %arg10[%c1536_71, %c0_72] : memref<2048x32xf32, #tpu.memory_space<vmem>>, vector<512x32xf32>
    %cst_73 = arith.constant dense<0.000000e+00> : vector<16x32xf32>
    %169 = tpu.matmul %167, %168, %cst_73 {dimension_numbers = #tpu.dot_dimension_numbers<[1], [0], [0], [1], [0, 0, 1, 1], [], []>} : vector<16x512xf32>, vector<512x32xf32>, vector<16x32xf32> -> vector<16x32xf32>
    %170 = arith.addf %160, %169 : vector<16x32xf32>
    %c0_74 = arith.constant 0 : index
    %c0_75 = arith.constant 0 : index
    %171 = vector.load %arg11[%c0_74, %c0_75] : memref<1x32xf32, #tpu.memory_space<vmem>>, vector<1x32xf32>
    %172 = vector.broadcast %171 : vector<1x32xf32> to vector<16x32xf32>
    %173 = arith.addf %170, %172 : vector<16x32xf32>
    %174 = arith.addf %129, %173 : vector<16x32xf32>
    %c0_76 = arith.constant 0 : index
    %c0_77 = arith.constant 0 : index
    %175 = vector.load %arg12[%c0_76, %c0_77] : memref<1x32xf32, #tpu.memory_space<vmem>>, vector<1x32xf32>
    %c0_78 = arith.constant 0 : index
    %c0_79 = arith.constant 0 : index
    %176 = vector.load %arg13[%c0_78, %c0_79] : memref<1x32xf32, #tpu.memory_space<vmem>>, vector<1x32xf32>
    %cst_80 = arith.constant dense<0.000000e+00> : vector<16xf32>
    %177 = vector.multi_reduction <add>, %174, %cst_80 [1] : vector<16x32xf32> to vector<16xf32>
    %178 = vector.shape_cast %177 : vector<16xf32> to vector<16x1xf32>
    %cst_81 = arith.constant 3.200000e+01 : f32
    %179 = vector.broadcast %cst_81 : f32 to vector<16x1xf32>
    %180 = arith.divf %178, %179 : vector<16x1xf32>
    %181 = vector.broadcast %180 : vector<16x1xf32> to vector<16x32xf32>
    %182 = arith.subf %174, %181 : vector<16x32xf32>
    %183 = arith.mulf %182, %182 : vector<16x32xf32>
    %cst_82 = arith.constant dense<0.000000e+00> : vector<16xf32>
    %184 = vector.multi_reduction <add>, %183, %cst_82 [1] : vector<16x32xf32> to vector<16xf32>
    %185 = vector.shape_cast %184 : vector<16xf32> to vector<16x1xf32>
    %cst_83 = arith.constant 3.200000e+01 : f32
    %186 = vector.broadcast %cst_83 : f32 to vector<16x1xf32>
    %187 = arith.divf %185, %186 : vector<16x1xf32>
    %188 = vector.broadcast %180 : vector<16x1xf32> to vector<16x32xf32>
    %189 = arith.subf %174, %188 : vector<16x32xf32>
    %cst_84 = arith.constant 9.99999974E-6 : f32
    %190 = vector.broadcast %cst_84 : f32 to vector<16x1xf32>
    %191 = arith.addf %187, %190 : vector<16x1xf32>
    %192 = math.rsqrt %191 : vector<16x1xf32>
    %193 = vector.broadcast %192 : vector<16x1xf32> to vector<16x32xf32>
    %194 = arith.mulf %189, %193 : vector<16x32xf32>
    %195 = vector.broadcast %175 : vector<1x32xf32> to vector<16x32xf32>
    %196 = arith.mulf %194, %195 : vector<16x32xf32>
    %197 = vector.broadcast %176 : vector<1x32xf32> to vector<16x32xf32>
    %198 = arith.addf %196, %197 : vector<16x32xf32>
    %199 = vector.shape_cast %198 : vector<16x32xf32> to vector<2x8x32xf32>
    %200 = vector.extract_strided_slice %199 {offsets = [0, 0, 0], sizes = [2, 1, 32], strides = [1, 1, 1]} : vector<2x8x32xf32> to vector<2x1x32xf32>
    %201 = vector.shape_cast %200 : vector<2x1x32xf32> to vector<2x32xf32>
    %202 = vector.extract_strided_slice %199 {offsets = [0, 1, 0], sizes = [2, 1, 32], strides = [1, 1, 1]} : vector<2x8x32xf32> to vector<2x1x32xf32>
    %203 = vector.shape_cast %202 : vector<2x1x32xf32> to vector<2x32xf32>
    %204 = vector.extract_strided_slice %199 {offsets = [0, 2, 0], sizes = [2, 1, 32], strides = [1, 1, 1]} : vector<2x8x32xf32> to vector<2x1x32xf32>
    %205 = vector.shape_cast %204 : vector<2x1x32xf32> to vector<2x32xf32>
    %206 = vector.extract_strided_slice %199 {offsets = [0, 3, 0], sizes = [2, 1, 32], strides = [1, 1, 1]} : vector<2x8x32xf32> to vector<2x1x32xf32>
    %207 = vector.shape_cast %206 : vector<2x1x32xf32> to vector<2x32xf32>
    %208 = vector.extract_strided_slice %199 {offsets = [0, 4, 0], sizes = [2, 1, 32], strides = [1, 1, 1]} : vector<2x8x32xf32> to vector<2x1x32xf32>
    %209 = vector.shape_cast %208 : vector<2x1x32xf32> to vector<2x32xf32>
    %210 = vector.extract_strided_slice %199 {offsets = [0, 5, 0], sizes = [2, 1, 32], strides = [1, 1, 1]} : vector<2x8x32xf32> to vector<2x1x32xf32>
    %211 = vector.shape_cast %210 : vector<2x1x32xf32> to vector<2x32xf32>
    %212 = vector.extract_strided_slice %199 {offsets = [0, 6, 0], sizes = [2, 1, 32], strides = [1, 1, 1]} : vector<2x8x32xf32> to vector<2x1x32xf32>
    %213 = vector.shape_cast %212 : vector<2x1x32xf32> to vector<2x32xf32>
    %214 = vector.extract_strided_slice %199 {offsets = [0, 7, 0], sizes = [2, 1, 32], strides = [1, 1, 1]} : vector<2x8x32xf32> to vector<2x1x32xf32>
    %215 = vector.shape_cast %214 : vector<2x1x32xf32> to vector<2x32xf32>
    %216 = tpu.concatenate %201, %203, %205, %207, %209, %211, %213, %215 in 1 : vector<2x32xf32>, vector<2x32xf32>, vector<2x32xf32>, vector<2x32xf32>, vector<2x32xf32>, vector<2x32xf32>, vector<2x32xf32>, vector<2x32xf32> -> vector<2x256xf32>
    %c0_85 = arith.constant 0 : index
    %c0_86 = arith.constant 0 : index
    %217 = vector.load %arg14[%c0_85, %c0_86] : memref<256x5xf32, #tpu.memory_space<vmem>>, vector<256x5xf32>
    %cst_87 = arith.constant dense<0.000000e+00> : vector<2x5xf32>
    %218 = tpu.matmul %216, %217, %cst_87 {dimension_numbers = #tpu.dot_dimension_numbers<[1], [0], [0], [1], [0, 0, 1, 1], [], []>} : vector<2x256xf32>, vector<256x5xf32>, vector<2x5xf32> -> vector<2x5xf32>
    %c0_88 = arith.constant 0 : index
    %c0_89 = arith.constant 0 : index
    %219 = vector.load %arg15[%c0_88, %c0_89] : memref<1x5xf32, #tpu.memory_space<vmem>>, vector<1x5xf32>
    %220 = vector.broadcast %219 : vector<1x5xf32> to vector<2x5xf32>
    %221 = arith.addf %218, %220 : vector<2x5xf32>
    %c0_90 = arith.constant 0 : index
    %c0_91 = arith.constant 0 : index
    %222 = vector.load %arg16[%c0_90, %c0_91] : memref<2x5xf32, #tpu.memory_space<vmem>>, vector<2x5xf32>
    tpu.vector_store %arg16[%c0_90, %c0_91], %221 {strides = array<i32>} : memref<2x5xf32, #tpu.memory_space<vmem>>, vector<2x5xf32>,
    return
  }
  func.func @transform_0(%arg0: i32) -> (i32, i32, i32) {
    %c0_i32 = arith.constant 0 : i32
    %c0_i32_0 = arith.constant 0 : i32
    %c0_i32_1 = arith.constant 0 : i32
    return %arg0, %c0_i32, %c0_i32_0 : i32, i32, i32
  }
  func.func @transform_1(%arg0: i32) -> (i32, i32) {
    %c0_i32 = arith.constant 0 : i32
    %c0_i32_0 = arith.constant 0 : i32
    %c0_i32_1 = arith.constant 0 : i32
    return %c0_i32, %c0_i32_0 : i32, i32
  }
  func.func @transform_2(%arg0: i32) -> (i32, i32) {
    %c0_i32 = arith.constant 0 : i32
    %c0_i32_0 = arith.constant 0 : i32
    %c0_i32_1 = arith.constant 0 : i32
    return %c0_i32, %c0_i32_0 : i32, i32
  }
  func.func @transform_3(%arg0: i32) -> (i32, i32) {
    %c0_i32 = arith.constant 0 : i32
    %c0_i32_0 = arith.constant 0 : i32
    %c0_i32_1 = arith.constant 0 : i32
    return %c0_i32, %c0_i32_0 : i32, i32
  }
  func.func @transform_4(%arg0: i32) -> (i32, i32) {
    %c0_i32 = arith.constant 0 : i32
    %c0_i32_0 = arith.constant 0 : i32
    %c0_i32_1 = arith.constant 0 : i32
    return %c0_i32, %c0_i32_0 : i32, i32
  }
  func.func @transform_5(%arg0: i32) -> (i32, i32) {
    %c0_i32 = arith.constant 0 : i32
    %c0_i32_0 = arith.constant 0 : i32
    %c0_i32_1 = arith.constant 0 : i32
    return %c0_i32, %c0_i32_0 : i32, i32
  }
  func.func @transform_6(%arg0: i32) -> (i32, i32) {
    %c0_i32 = arith.constant 0 : i32
    %c0_i32_0 = arith.constant 0 : i32
    %c0_i32_1 = arith.constant 0 : i32
    return %c0_i32, %c0_i32_0 : i32, i32
  }
  func.func @transform_7(%arg0: i32) -> (i32, i32) {
    %c0_i32 = arith.constant 0 : i32
    %c0_i32_0 = arith.constant 0 : i32
    %c0_i32_1 = arith.constant 0 : i32
    return %c0_i32, %c0_i32_0 : i32, i32
  }
  func.func @transform_8(%arg0: i32) -> (i32, i32) {
    %c0_i32 = arith.constant 0 : i32
    %c0_i32_0 = arith.constant 0 : i32
    %c0_i32_1 = arith.constant 0 : i32
    return %c0_i32, %c0_i32_0 : i32, i32
  }
  func.func @transform_9(%arg0: i32) -> (i32, i32) {
    %c0_i32 = arith.constant 0 : i32
    %c0_i32_0 = arith.constant 0 : i32
    %c0_i32_1 = arith.constant 0 : i32
    return %c0_i32, %c0_i32_0 : i32, i32
  }
  func.func @transform_10(%arg0: i32) -> (i32, i32) {
    %c0_i32 = arith.constant 0 : i32
    %c0_i32_0 = arith.constant 0 : i32
    %c0_i32_1 = arith.constant 0 : i32
    return %c0_i32, %c0_i32_0 : i32, i32
  }
  func.func @transform_11(%arg0: i32) -> (i32, i32) {
    %c0_i32 = arith.constant 0 : i32
    %c0_i32_0 = arith.constant 0 : i32
    %c0_i32_1 = arith.constant 0 : i32
    return %c0_i32, %c0_i32_0 : i32, i32
  }
  func.func @transform_12(%arg0: i32) -> (i32, i32) {
    %c0_i32 = arith.constant 0 : i32
    %c0_i32_0 = arith.constant 0 : i32
    %c0_i32_1 = arith.constant 0 : i32
    return %c0_i32, %c0_i32_0 : i32, i32
  }
  func.func @transform_13(%arg0: i32) -> (i32, i32) {
    %c0_i32 = arith.constant 0 : i32
    %c0_i32_0 = arith.constant 0 : i32
    %c0_i32_1 = arith.constant 0 : i32
    return %c0_i32, %c0_i32_0 : i32, i32
  }
  func.func @transform_14(%arg0: i32) -> (i32, i32) {
    %c0_i32 = arith.constant 0 : i32
    %c0_i32_0 = arith.constant 0 : i32
    %c0_i32_1 = arith.constant 0 : i32
    return %c0_i32, %c0_i32_0 : i32, i32
  }
  func.func @transform_15(%arg0: i32) -> (i32, i32) {
    %c0_i32 = arith.constant 0 : i32
    %c0_i32_0 = arith.constant 0 : i32
    return %arg0, %c0_i32 : i32, i32
  }
}

</mosaic_0001>

<llo_original>
// kernel: tpu_custom_call.1
$region0: #{tpu_custom_call.1}
  #allocation0 [shape = 'u32[]', space=smem, size = 0x4, offset = 0x4, fixed_abs, tag = 'smem constant byte address 0x4 - core index']
  #allocation1 [shape = 'u32[144,128]{1,0:T(1,128)}', space=vmem, size = 0x12000, scoped, tag = 'internal scratch']
  %s0 = inlined_call_operand.vmem [shape: f32[2,8,32], index: 0, kind: input, shape index: {}]
  %s1 = inlined_call_operand.vmem [shape: f32[32,96], index: 1, kind: input, shape index: {}]
  %s2 = inlined_call_operand.vmem [shape: f32[1,96], index: 2, kind: input, shape index: {}]
  %s3 = inlined_call_operand.vmem [shape: f32[32,32], index: 3, kind: input, shape index: {}]
  %s4 = inlined_call_operand.vmem [shape: f32[1,32], index: 4, kind: input, shape index: {}]
  %s5 = inlined_call_operand.vmem [shape: f32[1,32], index: 5, kind: input, shape index: {}]
  %s6 = inlined_call_operand.vmem [shape: f32[1,32], index: 6, kind: input, shape index: {}]
  %s7 = inlined_call_operand.vmem [shape: f32[32,2048], index: 7, kind: input, shape index: {}]
  %s8 = inlined_call_operand.vmem [shape: f32[1,2048], index: 8, kind: input, shape index: {}]
  %s9 = inlined_call_operand.vmem [shape: f32[2048,32], index: 9, kind: input, shape index: {}]
  %s10 = inlined_call_operand.vmem [shape: f32[1,32], index: 10, kind: input, shape index: {}]
  %s11 = inlined_call_operand.vmem [shape: f32[1,32], index: 11, kind: input, shape index: {}]
  %s12 = inlined_call_operand.vmem [shape: f32[1,32], index: 12, kind: input, shape index: {}]
  %s13 = inlined_call_operand.vmem [shape: f32[256,5], index: 13, kind: input, shape index: {}]
  %s14 = inlined_call_operand.vmem [shape: f32[1,5], index: 14, kind: input, shape index: {}]
  %s15 = inlined_call_operand.hbm [shape: f32[2,5], index: 15, kind: output, shape index: {}]
  %s16 = sld [smem:[#allocation0]]
  $region70: #{tpu_custom_call.1} parent=0
    _
  %s18 = ssub.s32 1, %s16
  %s19 = scalar_select 0, %s18, %s16
  $region1: #{tpu_custom_call.1} parent=0
    #allocation2 [shape = 'u8[1024]{0}', space=vmem, size = 0x400, scoped, tag = 'output window, operand 0, single buffered']
    #allocation3 [shape = 's32[1]{0}', space=sflag, size = 0x4, scoped, tag = 'scoped memory for tpu_custom_call.1']
    %20 = vsyncpa [#allocation3], 0
    // Predicated region
    $region2: #{tpu_custom_call.1} parent=1 // pred_check
      _
    $region3: #{tpu_custom_call.1} parent=1 // pred_check_branch
      %22 = sbr.rel (0) target = $region5
    $region4: #{tpu_custom_call.1} parent=1 // pred_region
      _
    $region5: #{tpu_custom_call.1} parent=1 // pred_fallthru
      _
    // Predicated region
    $region6: #{tpu_custom_call.1} parent=1 // pred_check
      _
    $region7: #{tpu_custom_call.1} parent=1 // pred_check_branch
      %24 = sbr.rel (0) target = $region9
    $region8: #{tpu_custom_call.1} parent=1 // pred_region
      _
    $region9: #{tpu_custom_call.1} parent=1 // pred_fallthru
      _
    // Predicated region
    $region10: #{tpu_custom_call.1} parent=1 // pred_check
      _
    $region11: #{tpu_custom_call.1} parent=1 // pred_check_branch
      %26 = sbr.rel (0) target = $region13
    $region12: #{tpu_custom_call.1} parent=1 // pred_region
      _
    $region13: #{tpu_custom_call.1} parent=1 // pred_fallthru
      _
    // Predicated region
    $region14: #{tpu_custom_call.1} parent=1 // pred_check
      _
    $region15: #{tpu_custom_call.1} parent=1 // pred_check_branch
      %28 = sbr.rel (0) target = $region17
    $region16: #{tpu_custom_call.1} parent=1 // pred_region
      _
    $region17: #{tpu_custom_call.1} parent=1 // pred_fallthru
      _
    // Predicated region
    $region18: #{tpu_custom_call.1} parent=1 // pred_check
      _
    $region19: #{tpu_custom_call.1} parent=1 // pred_check_branch
      %30 = sbr.rel (0) target = $region21
    $region20: #{tpu_custom_call.1} parent=1 // pred_region
      _
    $region21: #{tpu_custom_call.1} parent=1 // pred_fallthru
      _
    // Predicated region
    $region22: #{tpu_custom_call.1} parent=1 // pred_check
      _
    $region23: #{tpu_custom_call.1} parent=1 // pred_check_branch
      %32 = sbr.rel (0) target = $region25
    $region24: #{tpu_custom_call.1} parent=1 // pred_region
      _
    $region25: #{tpu_custom_call.1} parent=1 // pred_fallthru
      _
    // Predicated region
    $region26: #{tpu_custom_call.1} parent=1 // pred_check
      _
    $region27: #{tpu_custom_call.1} parent=1 // pred_check_branch
      %34 = sbr.rel (0) target = $region29
    $region28: #{tpu_custom_call.1} parent=1 // pred_region
      _
    $region29: #{tpu_custom_call.1} parent=1 // pred_fallthru
      _
    // Predicated region
    $region30: #{tpu_custom_call.1} parent=1 // pred_check
      _
    $region31: #{tpu_custom_call.1} parent=1 // pred_check_branch
      %36 = sbr.rel (0) target = $region33
    $region32: #{tpu_custom_call.1} parent=1 // pred_region
      _
    $region33: #{tpu_custom_call.1} parent=1 // pred_fallthru
      _
    // Predicated region
    $region34: #{tpu_custom_call.1} parent=1 // pred_check
      _
    $region35: #{tpu_custom_call.1} parent=1 // pred_check_branch
      %38 = sbr.rel (0) target = $region37
    $region36: #{tpu_custom_call.1} parent=1 // pred_region
      _
    $region37: #{tpu_custom_call.1} parent=1 // pred_fallthru
      _
    // Predicated region
    $region38: #{tpu_custom_call.1} parent=1 // pred_check
      _
    $region39: #{tpu_custom_call.1} parent=1 // pred_check_branch
      %40 = sbr.rel (0) target = $region41
    $region40: #{tpu_custom_call.1} parent=1 // pred_region
      _
    $region41: #{tpu_custom_call.1} parent=1 // pred_fallthru
      _
    // Predicated region
    $region42: #{tpu_custom_call.1} parent=1 // pred_check
      _
    $region43: #{tpu_custom_call.1} parent=1 // pred_check_branch
      %42 = sbr.rel (0) target = $region45
    $region44: #{tpu_custom_call.1} parent=1 // pred_region
      _
    $region45: #{tpu_custom_call.1} parent=1 // pred_fallthru
      _
    // Predicated region
    $region46: #{tpu_custom_call.1} parent=1 // pred_check
      _
    $region47: #{tpu_custom_call.1} parent=1 // pred_check_branch
      %44 = sbr.rel (0) target = $region49
    $region48: #{tpu_custom_call.1} parent=1 // pred_region
      _
    $region49: #{tpu_custom_call.1} parent=1 // pred_fallthru
      _
    // Predicated region
    $region50: #{tpu_custom_call.1} parent=1 // pred_check
      _
    $region51: #{tpu_custom_call.1} parent=1 // pred_check_branch
      %46 = sbr.rel (0) target = $region53
    $region52: #{tpu_custom_call.1} parent=1 // pred_region
      _
    $region53: #{tpu_custom_call.1} parent=1 // pred_fallthru
      _
    // Predicated region
    $region54: #{tpu_custom_call.1} parent=1 // pred_check
      _
    $region55: #{tpu_custom_call.1} parent=1 // pred_check_branch
      %48 = sbr.rel (0) target = $region57
    $region56: #{tpu_custom_call.1} parent=1 // pred_region
      _
    $region57: #{tpu_custom_call.1} parent=1 // pred_fallthru
      _
    // Predicated region
    $region58: #{tpu_custom_call.1} parent=1 // pred_check
      _
    $region59: #{tpu_custom_call.1} parent=1 // pred_check_branch
      %50 = sbr.rel (0) target = $region61
    $region60: #{tpu_custom_call.1} parent=1 // pred_region
      _
    $region61: #{tpu_custom_call.1} parent=1 // pred_fallthru
      _
    %v51 = vld [vmem:[%s0] sm:$0xff]
    %v52 = vld [vmem:[%s0 + $0x8] sm:$0xff]
    %v53 = vld [vmem:[%s1] sm:$0xff]
    %v54 = vld [vmem:[%s1 + $0x8] sm:$0xff]
    %v55 = vld [vmem:[%s1 + $0x10] sm:$0xff]
    %v56 = vld [vmem:[%s1 + $0x18] sm:$0xff]
    %v57 = vld [vmem:[%s2] sm:$0x1]
    %v59 = vlaneseq
    %v60 = vshrl.u32 %v59, 7
    %v61 = vsub.s32 0, %v60
    %v62 = vrot.slane %v57, %v61
    %vm64 = vcmask 261120
    %v66 = vsel %vm64, %v51, 0
    %v69 = vsel %vm64, %v52, 0
    %71 = vmatprep.subr.mxu0 0.0
    %72 = vmatpush1.msra.mxu0 0.0
    %73 = vmatprep.subr.mxu0 0.0
    %74 = vmatpush1.msra.mxu0 0.0
    %75 = vmatprep.subr.mxu0 0.0
    %76 = vmatpush1.msra.mxu0 0.0
    %77 = vmatprep.subr.mxu0 0.0
    %78 = vmatpush1.msra.mxu0 0.0
    %79 = vmatprep.subr.mxu0 0.0
    %80 = vmatpush1.msra.mxu0 0.0
    %81 = vmatprep.subr.mxu0 0.0
    %82 = vmatpush1.msra.mxu0 0.0
    %83 = vmatprep.subr.mxu0 0.0
    %84 = vmatpush1.msra.mxu0 0.0
    %85 = vmatprep.subr.mxu0 0.0
    %86 = vmatpush1.msra.mxu0 0.0
    %87 = vmatprep.subr.mxu0 0.0
    %88 = vmatpush1.msra.mxu0 0.0
    %89 = vmatprep.subr.mxu0 0.0
    %90 = vmatpush1.msra.mxu0 0.0
    %91 = vmatprep.subr.mxu0 0.0
    %92 = vmatpush1.msra.mxu0 0.0
    %93 = vmatprep.subr.mxu0 0.0
    %94 = vmatpush1.msra.mxu0 0.0
    %95 = vmatprep.subr.mxu0 0.0
    %96 = vmatpush1.msra.mxu0 %v56
    %97 = vmatprep.subr.mxu0 0.0
    %98 = vmatpush1.msra.mxu0 %v55
    %99 = vmatprep.subr.mxu0 0.0
    %100 = vmatpush1.msra.mxu0 %v54
    %101 = vmatprep.subr.mxu0 0.0
    %102 = vmatpush1.msra.mxu0 %v53
    %103 = vmatprep.subr.mxu0 0.0
    %104 = vmatpush2.msra.mxu0 0.0
    %105 = vmatprep.subr.mxu0 0.0
    %106 = vmatpush2.msra.mxu0 0.0
    %107 = vmatprep.subr.mxu0 0.0
    %108 = vmatpush2.msra.mxu0 0.0
    %109 = vmatprep.subr.mxu0 0.0
    %110 = vmatpush2.msra.mxu0 0.0
    %111 = vmatprep.subr.mxu0 0.0
    %112 = vmatpush2.msra.mxu0 0.0
    %113 = vmatprep.subr.mxu0 0.0
    %114 = vmatpush2.msra.mxu0 0.0
    %115 = vmatprep.subr.mxu0 0.0
    %116 = vmatpush2.msra.mxu0 0.0
    %117 = vmatprep.subr.mxu0 0.0
    %118 = vmatpush2.msra.mxu0 0.0
    %119 = vmatprep.subr.mxu0 0.0
    %120 = vmatpush2.msra.mxu0 0.0
    %121 = vmatprep.subr.mxu0 0.0
    %122 = vmatpush2.msra.mxu0 0.0
    %123 = vmatprep.subr.mxu0 0.0
    %124 = vmatpush2.msra.mxu0 0.0
    %125 = vmatprep.subr.mxu0 0.0
    %126 = vmatpush2.msra.mxu0 0.0
    %127 = vmatprep.subr.mxu0 0.0
    %128 = vmatpush2.msra.mxu0 0.0
    %129 = vmatprep.subr.mxu0 0.0
    %130 = vmatpush2.msra.mxu0 0.0
    %131 = vmatprep.subr.mxu0 0.0
    %132 = vmatpush2.msra.mxu0 0.0
    %133 = vmatprep.subr.mxu0 0.0
    %134 = vmatpush2.msra.mxu0 0.0
    %135 = vmatprep.mubr.f32.mxu0 0.0
    %136 = vmatmul.mubr.f32.gmra.mxu0 %v66
    %v137 = vpop.f32.mrf.mxu0
    %v138 = vadd.f32 %v62, %v137
    %v139 = vpop.f32.mrf.mxu0
    %140 = vmatprep.mubr.f32.mxu0 0.0
    %141 = vmatmul.mubr.f32.gmra.mxu0 %v69
    %v142 = vpop.f32.mrf.mxu0
    %v143 = vadd.f32 %v62, %v142
    %v144 = vpop.f32.mrf.mxu0
    %145 = vdwg.mxu0
    %147 = vrot.lane.b32.xlu0 %v138, 96
    %v148 = vpop.permute.xlu0 %147
    %vm149 = vcmask 64512
    %v150 = vsel %vm149, %v138, 0
    %v152 = vsel %vm149, %v148, 0
    %154 = vmatprep.subr.mxu0 0.0
    %155 = vmatpush1.xpose.msra.mxu0 0.0
    %156 = vmatprep.subr.mxu0 0.0
    %157 = vmatpush1.xpose.msra.mxu0 0.0
    %158 = vmatprep.subr.mxu0 0.0
    %159 = vmatpush1.xpose.msra.mxu0 0.0
    %160 = vmatprep.subr.mxu0 0.0
    %161 = vmatpush1.xpose.msra.mxu0 0.0
    %162 = vmatprep.subr.mxu0 0.0
    %163 = vmatpush1.xpose.msra.mxu0 0.0
    %164 = vmatprep.subr.mxu0 0.0
    %165 = vmatpush1.xpose.msra.mxu0 0.0
    %166 = vmatprep.subr.mxu0 0.0
    %167 = vmatpush1.xpose.msra.mxu0 0.0
    %168 = vmatprep.subr.mxu0 0.0
    %169 = vmatpush1.xpose.msra.mxu0 0.0
    %170 = vmatprep.subr.mxu0 0.0
    %171 = vmatpush1.xpose.msra.mxu0 0.0
    %172 = vmatprep.subr.mxu0 0.0
    %173 = vmatpush1.xpose.msra.mxu0 0.0
    %174 = vmatprep.subr.mxu0 0.0
    %175 = vmatpush1.xpose.msra.mxu0 0.0
    %176 = vmatprep.subr.mxu0 0.0
    %177 = vmatpush1.xpose.msra.mxu0 0.0
    %178 = vmatprep.subr.mxu0 0.0
    %179 = vmatpush1.xpose.msra.mxu0 0.0
    %180 = vmatprep.subr.mxu0 0.0
    %181 = vmatpush1.xpose.msra.mxu0 0.0
    %182 = vmatprep.subr.mxu0 0.0
    %183 = vmatpush1.xpose.msra.mxu0 0.0
    %184 = vmatprep.subr.mxu0 0.0
    %185 = vmatpush1.xpose.msra.mxu0 %v152
    %186 = vmatprep.subr.mxu0 0.0
    %187 = vmatpush2.xpose.msra.mxu0 0.0
    %188 = vmatprep.subr.mxu0 0.0
    %189 = vmatpush2.xpose.msra.mxu0 0.0
    %190 = vmatprep.subr.mxu0 0.0
    %191 = vmatpush2.xpose.msra.mxu0 0.0
    %192 = vmatprep.subr.mxu0 0.0
    %193 = vmatpush2.xpose.msra.mxu0 0.0
    %194 = vmatprep.subr.mxu0 0.0
    %195 = vmatpush2.xpose.msra.mxu0 0.0
    %196 = vmatprep.subr.mxu0 0.0
    %197 = vmatpush2.xpose.msra.mxu0 0.0
    %198 = vmatprep.subr.mxu0 0.0
    %199 = vmatpush2.xpose.msra.mxu0 0.0
    %200 = vmatprep.subr.mxu0 0.0
    %201 = vmatpush2.xpose.msra.mxu0 0.0
    %202 = vmatprep.subr.mxu0 0.0
    %203 = vmatpush2.xpose.msra.mxu0 0.0
    %204 = vmatprep.subr.mxu0 0.0
    %205 = vmatpush2.xpose.msra.mxu0 0.0
    %206 = vmatprep.subr.mxu0 0.0
    %207 = vmatpush2.xpose.msra.mxu0 0.0
    %208 = vmatprep.subr.mxu0 0.0
    %209 = vmatpush2.xpose.msra.mxu0 0.0
    %210 = vmatprep.subr.mxu0 0.0
    %211 = vmatpush2.xpose.msra.mxu0 0.0
    %212 = vmatprep.subr.mxu0 0.0
    %213 = vmatpush2.xpose.msra.mxu0 0.0
    %214 = vmatprep.subr.mxu0 0.0
    %215 = vmatpush2.xpose.msra.mxu0 0.0
    %216 = vmatprep.subr.mxu0 0.0
    %217 = vmatpush2.xpose.msra.mxu0 0.0
    %218 = vmatprep.mubr.f32.mxu0 0.0
    %219 = vmatmul.mubr.f32.gmra.mxu0 %v150
    %v220 = vpop.f32.mrf.mxu0
    %v221 = vadd.f32 0.0, %v220
    %v222 = vpop.f32.mrf.mxu0
    %223 = vdwg.mxu0
    %225 = vrot.lane.b32.xlu0 %v143, 96
    %v226 = vpop.permute.xlu0 %225
    %v227 = vsel %vm149, %v143, 0
    %v229 = vsel %vm149, %v226, 0
    %231 = vmatprep.subr.mxu0 0.0
    %232 = vmatpush1.xpose.msra.mxu0 0.0
    %233 = vmatprep.subr.mxu0 0.0
    %234 = vmatpush1.xpose.msra.mxu0 0.0
    %235 = vmatprep.subr.mxu0 0.0
    %236 = vmatpush1.xpose.msra.mxu0 0.0
    %237 = vmatprep.subr.mxu0 0.0
    %238 = vmatpush1.xpose.msra.mxu0 0.0
    %239 = vmatprep.subr.mxu0 0.0
    %240 = vmatpush1.xpose.msra.mxu0 0.0
    %241 = vmatprep.subr.mxu0 0.0
    %242 = vmatpush1.xpose.msra.mxu0 0.0
    %243 = vmatprep.subr.mxu0 0.0
    %244 = vmatpush1.xpose.msra.mxu0 0.0
    %245 = vmatprep.subr.mxu0 0.0
    %246 = vmatpush1.xpose.msra.mxu0 0.0
    %247 = vmatprep.subr.mxu0 0.0
    %248 = vmatpush1.xpose.msra.mxu0 0.0
    %249 = vmatprep.subr.mxu0 0.0
    %250 = vmatpush1.xpose.msra.mxu0 0.0
    %251 = vmatprep.subr.mxu0 0.0
    %252 = vmatpush1.xpose.msra.mxu0 0.0
    %253 = vmatprep.subr.mxu0 0.0
    %254 = vmatpush1.xpose.msra.mxu0 0.0
    %255 = vmatprep.subr.mxu0 0.0
    %256 = vmatpush1.xpose.msra.mxu0 0.0
    %257 = vmatprep.subr.mxu0 0.0
    %258 = vmatpush1.xpose.msra.mxu0 0.0
    %259 = vmatprep.subr.mxu0 0.0
    %260 = vmatpush1.xpose.msra.mxu0 0.0
    %261 = vmatprep.subr.mxu0 0.0
    %262 = vmatpush1.xpose.msra.mxu0 %v229
    %263 = vmatprep.subr.mxu0 0.0
    %264 = vmatpush2.xpose.msra.mxu0 0.0
    %265 = vmatprep.subr.mxu0 0.0
    %266 = vmatpush2.xpose.msra.mxu0 0.0
    %267 = vmatprep.subr.mxu0 0.0
    %268 = vmatpush2.xpose.msra.mxu0 0.0
    %269 = vmatprep.subr.mxu0 0.0
    %270 = vmatpush2.xpose.msra.mxu0 0.0
    %271 = vmatprep.subr.mxu0 0.0
    %272 = vmatpush2.xpose.msra.mxu0 0.0
    %273 = vmatprep.subr.mxu0 0.0
    %274 = vmatpush2.xpose.msra.mxu0 0.0
    %275 = vmatprep.subr.mxu0 0.0
    %276 = vmatpush2.xpose.msra.mxu0 0.0
    %277 = vmatprep.subr.mxu0 0.0
    %278 = vmatpush2.xpose.msra.mxu0 0.0
    %279 = vmatprep.subr.mxu0 0.0
    %280 = vmatpush2.xpose.msra.mxu0 0.0
    %281 = vmatprep.subr.mxu0 0.0
    %282 = vmatpush2.xpose.msra.mxu0 0.0
    %283 = vmatprep.subr.mxu0 0.0
    %284 = vmatpush2.xpose.msra.mxu0 0.0
    %285 = vmatprep.subr.mxu0 0.0
    %286 = vmatpush2.xpose.msra.mxu0 0.0
    %287 = vmatprep.subr.mxu0 0.0
    %288 = vmatpush2.xpose.msra.mxu0 0.0
    %289 = vmatprep.subr.mxu0 0.0
    %290 = vmatpush2.xpose.msra.mxu0 0.0
    %291 = vmatprep.subr.mxu0 0.0
    %292 = vmatpush2.xpose.msra.mxu0 0.0
    %293 = vmatprep.subr.mxu0 0.0
    %294 = vmatpush2.xpose.msra.mxu0 0.0
    %295 = vmatprep.mubr.f32.mxu0 0.0
    %296 = vmatmul.mubr.f32.gmra.mxu0 %v227
    %v297 = vpop.f32.mrf.mxu0
    %v298 = vadd.f32 0.0, %v297
    %v299 = vpop.f32.mrf.mxu0
    %300 = vdwg.mxu0
    %v301 = vsel %vm149, %v221, -inf
    %302 = vmax.xlane.f32.xlu0 %v301
    %v303 = vpop.xlane.xlu0 %302
    %v304 = vsel %vm149, %v298, -inf
    %305 = vmax.xlane.f32.xlu0 %v304
    %v306 = vpop.xlane.xlu0 %305
    %v307 = vsub.f32 %v221, %v303
    %v308 = vsub.f32 %v298, %v306
    %v309 = vmul.f32 %v307, 1.442695
    %v310 = vpow.pop %v309
    %v311 = vmul.f32 %v308, 1.442695
    %v312 = vpow.pop %v311
    %v313 = vsel %vm149, %v310, 0.0
    %314 = vadd.xlane.f32.xlu0 %v313
    %v315 = vpop.xlane.xlu0 %314
    %v316 = vsel %vm149, %v312, 0.0
    %317 = vadd.xlane.f32.xlu0 %v316
    %v318 = vpop.xlane.xlu0 %317
    %v319 = vrcp.pop %v315
    %v320 = vrcp.pop %v318
    %v321 = vmul.f32 %v315, %v319
    %v322 = vmul.f32 %v318, %v320
    %v323 = vsub.f32 2.0, %v321
    %v324 = vsub.f32 2.0, %v322
    %v325 = vmul.f32 %v319, %v323
    %v326 = vmul.f32 %v320, %v324
    %v327 = vmul.f32 %v310, %v325
    %v328 = vmul.f32 %v312, %v326
    %329 = vrot.lane.b32.xlu0 %v138, 64
    %v330 = vpop.permute.xlu0 %329
    %v333 = vsel %vm149, %v327, 0
    %335 = vmatprep.subr.mxu0 0.0
    %336 = vmatpush1.msra.mxu0 0.0
    %337 = vmatprep.subr.mxu0 0.0
    %338 = vmatpush1.msra.mxu0 0.0
    %339 = vmatprep.subr.mxu0 0.0
    %340 = vmatpush1.msra.mxu0 0.0
    %341 = vmatprep.subr.mxu0 0.0
    %342 = vmatpush1.msra.mxu0 0.0
    %343 = vmatprep.subr.mxu0 0.0
    %344 = vmatpush1.msra.mxu0 0.0
    %345 = vmatprep.subr.mxu0 0.0
    %346 = vmatpush1.msra.mxu0 0.0
    %347 = vmatprep.subr.mxu0 0.0
    %348 = vmatpush1.msra.mxu0 0.0
    %349 = vmatprep.subr.mxu0 0.0
    %350 = vmatpush1.msra.mxu0 0.0
    %351 = vmatprep.subr.mxu0 0.0
    %352 = vmatpush1.msra.mxu0 0.0
    %353 = vmatprep.subr.mxu0 0.0
    %354 = vmatpush1.msra.mxu0 0.0
    %355 = vmatprep.subr.mxu0 0.0
    %356 = vmatpush1.msra.mxu0 0.0
    %357 = vmatprep.subr.mxu0 0.0
    %358 = vmatpush1.msra.mxu0 0.0
    %359 = vmatprep.subr.mxu0 0.0
    %360 = vmatpush1.msra.mxu0 0.0
    %361 = vmatprep.subr.mxu0 0.0
    %362 = vmatpush1.msra.mxu0 0.0
    %363 = vmatprep.subr.mxu0 0.0
    %364 = vmatpush1.msra.mxu0 0.0
    %365 = vmatprep.subr.mxu0 0.0
    %366 = vmatpush1.msra.mxu0 %v330
    %367 = vmatprep.subr.mxu0 0.0
    %368 = vmatpush2.msra.mxu0 0.0
    %369 = vmatprep.subr.mxu0 0.0
    %370 = vmatpush2.msra.mxu0 0.0
    %371 = vmatprep.subr.mxu0 0.0
    %372 = vmatpush2.msra.mxu0 0.0
    %373 = vmatprep.subr.mxu0 0.0
    %374 = vmatpush2.msra.mxu0 0.0
    %375 = vmatprep.subr.mxu0 0.0
    %376 = vmatpush2.msra.mxu0 0.0
    %377 = vmatprep.subr.mxu0 0.0
    %378 = vmatpush2.msra.mxu0 0.0
    %379 = vmatprep.subr.mxu0 0.0
    %380 = vmatpush2.msra.mxu0 0.0
    %381 = vmatprep.subr.mxu0 0.0
    %382 = vmatpush2.msra.mxu0 0.0
    %383 = vmatprep.subr.mxu0 0.0
    %384 = vmatpush2.msra.mxu0 0.0
    %385 = vmatprep.subr.mxu0 0.0
    %386 = vmatpush2.msra.mxu0 0.0
    %387 = vmatprep.subr.mxu0 0.0
    %388 = vmatpush2.msra.mxu0 0.0
    %389 = vmatprep.subr.mxu0 0.0
    %390 = vmatpush2.msra.mxu0 0.0
    %391 = vmatprep.subr.mxu0 0.0
    %392 = vmatpush2.msra.mxu0 0.0
    %393 = vmatprep.subr.mxu0 0.0
    %394 = vmatpush2.msra.mxu0 0.0
    %395 = vmatprep.subr.mxu0 0.0
    %396 = vmatpush2.msra.mxu0 0.0
    %397 = vmatprep.subr.mxu0 0.0
    %398 = vmatpush2.msra.mxu0 0.0
    %399 = vmatprep.mubr.f32.mxu0 0.0
    %400 = vmatmul.mubr.f32.gmra.mxu0 %v333
    %v401 = vpop.f32.mrf.mxu0
    %v402 = vadd.f32 0.0, %v401
    %v403 = vpop.f32.mrf.mxu0
    %404 = vdwg.mxu0
    %405 = vrot.lane.b32.xlu0 %v143, 64
    %v406 = vpop.permute.xlu0 %405
    %v409 = vsel %vm149, %v328, 0
    %411 = vmatprep.subr.mxu0 0.0
    %412 = vmatpush1.msra.mxu0 0.0
    %413 = vmatprep.subr.mxu0 0.0
    %414 = vmatpush1.msra.mxu0 0.0
    %415 = vmatprep.subr.mxu0 0.0
    %416 = vmatpush1.msra.mxu0 0.0
    %417 = vmatprep.subr.mxu0 0.0
    %418 = vmatpush1.msra.mxu0 0.0
    %419 = vmatprep.subr.mxu0 0.0
    %420 = vmatpush1.msra.mxu0 0.0
    %421 = vmatprep.subr.mxu0 0.0
    %422 = vmatpush1.msra.mxu0 0.0
    %423 = vmatprep.subr.mxu0 0.0
    %424 = vmatpush1.msra.mxu0 0.0
    %425 = vmatprep.subr.mxu0 0.0
    %426 = vmatpush1.msra.mxu0 0.0
    %427 = vmatprep.subr.mxu0 0.0
    %428 = vmatpush1.msra.mxu0 0.0
    %429 = vmatprep.subr.mxu0 0.0
    %430 = vmatpush1.msra.mxu0 0.0
    %431 = vmatprep.subr.mxu0 0.0
    %432 = vmatpush1.msra.mxu0 0.0
    %433 = vmatprep.subr.mxu0 0.0
    %434 = vmatpush1.msra.mxu0 0.0
    %435 = vmatprep.subr.mxu0 0.0
    %436 = vmatpush1.msra.mxu0 0.0
    %437 = vmatprep.subr.mxu0 0.0
    %438 = vmatpush1.msra.mxu0 0.0
    %439 = vmatprep.subr.mxu0 0.0
    %440 = vmatpush1.msra.mxu0 0.0
    %441 = vmatprep.subr.mxu0 0.0
    %442 = vmatpush1.msra.mxu0 %v406
    %443 = vmatprep.subr.mxu0 0.0
    %444 = vmatpush2.msra.mxu0 0.0
    %445 = vmatprep.subr.mxu0 0.0
    %446 = vmatpush2.msra.mxu0 0.0
    %447 = vmatprep.subr.mxu0 0.0
    %448 = vmatpush2.msra.mxu0 0.0
    %449 = vmatprep.subr.mxu0 0.0
    %450 = vmatpush2.msra.mxu0 0.0
    %451 = vmatprep.subr.mxu0 0.0
    %452 = vmatpush2.msra.mxu0 0.0
    %453 = vmatprep.subr.mxu0 0.0
    %454 = vmatpush2.msra.mxu0 0.0
    %455 = vmatprep.subr.mxu0 0.0
    %456 = vmatpush2.msra.mxu0 0.0
    %457 = vmatprep.subr.mxu0 0.0
    %458 = vmatpush2.msra.mxu0 0.0
    %459 = vmatprep.subr.mxu0 0.0
    %460 = vmatpush2.msra.mxu0 0.0
    %461 = vmatprep.subr.mxu0 0.0
    %462 = vmatpush2.msra.mxu0 0.0
    %463 = vmatprep.subr.mxu0 0.0
    %464 = vmatpush2.msra.mxu0 0.0
    %465 = vmatprep.subr.mxu0 0.0
    %466 = vmatpush2.msra.mxu0 0.0
    %467 = vmatprep.subr.mxu0 0.0
    %468 = vmatpush2.msra.mxu0 0.0
    %469 = vmatprep.subr.mxu0 0.0
    %470 = vmatpush2.msra.mxu0 0.0
    %471 = vmatprep.subr.mxu0 0.0
    %472 = vmatpush2.msra.mxu0 0.0
    %473 = vmatprep.subr.mxu0 0.0
    %474 = vmatpush2.msra.mxu0 0.0
    %475 = vmatprep.mubr.f32.mxu0 0.0
    %476 = vmatmul.mubr.f32.gmra.mxu0 %v409
    %v477 = vpop.f32.mrf.mxu0
    %v478 = vadd.f32 0.0, %v477
    %v479 = vpop.f32.mrf.mxu0
    %480 = vdwg.mxu0
    %481 = vrot.lane.b32.xlu0 %v138, 120
    %v482 = vpop.permute.xlu0 %481
    %483 = vrot.lane.b32.xlu0 %v138, 88
    %v484 = vpop.permute.xlu0 %483
    %v485 = vsel %vm149, %v482, 0
    %v487 = vsel %vm149, %v484, 0
    %489 = vmatprep.subr.mxu0 0.0
    %490 = vmatpush1.xpose.msra.mxu0 0.0
    %491 = vmatprep.subr.mxu0 0.0
    %492 = vmatpush1.xpose.msra.mxu0 0.0
    %493 = vmatprep.subr.mxu0 0.0
    %494 = vmatpush1.xpose.msra.mxu0 0.0
    %495 = vmatprep.subr.mxu0 0.0
    %496 = vmatpush1.xpose.msra.mxu0 0.0
    %497 = vmatprep.subr.mxu0 0.0
    %498 = vmatpush1.xpose.msra.mxu0 0.0
    %499 = vmatprep.subr.mxu0 0.0
    %500 = vmatpush1.xpose.msra.mxu0 0.0
    %501 = vmatprep.subr.mxu0 0.0
    %502 = vmatpush1.xpose.msra.mxu0 0.0
    %503 = vmatprep.subr.mxu0 0.0
    %504 = vmatpush1.xpose.msra.mxu0 0.0
    %505 = vmatprep.subr.mxu0 0.0
    %506 = vmatpush1.xpose.msra.mxu0 0.0
    %507 = vmatprep.subr.mxu0 0.0
    %508 = vmatpush1.xpose.msra.mxu0 0.0
    %509 = vmatprep.subr.mxu0 0.0
    %510 = vmatpush1.xpose.msra.mxu0 0.0
    %511 = vmatprep.subr.mxu0 0.0
    %512 = vmatpush1.xpose.msra.mxu0 0.0
    %513 = vmatprep.subr.mxu0 0.0
    %514 = vmatpush1.xpose.msra.mxu0 0.0
    %515 = vmatprep.subr.mxu0 0.0
    %516 = vmatpush1.xpose.msra.mxu0 0.0
    %517 = vmatprep.subr.mxu0 0.0
    %518 = vmatpush1.xpose.msra.mxu0 0.0
    %519 = vmatprep.subr.mxu0 0.0
    %520 = vmatpush1.xpose.msra.mxu0 %v487
    %521 = vmatprep.subr.mxu0 0.0
    %522 = vmatpush2.xpose.msra.mxu0 0.0
    %523 = vmatprep.subr.mxu0 0.0
    %524 = vmatpush2.xpose.msra.mxu0 0.0
    %525 = vmatprep.subr.mxu0 0.0
    %526 = vmatpush2.xpose.msra.mxu0 0.0
    %527 = vmatprep.subr.mxu0 0.0
    %528 = vmatpush2.xpose.msra.mxu0 0.0
    %529 = vmatprep.subr.mxu0 0.0
    %530 = vmatpush2.xpose.msra.mxu0 0.0
    %531 = vmatprep.subr.mxu0 0.0
    %532 = vmatpush2.xpose.msra.mxu0 0.0
    %533 = vmatprep.subr.mxu0 0.0
    %534 = vmatpush2.xpose.msra.mxu0 0.0
    %535 = vmatprep.subr.mxu0 0.0
    %536 = vmatpush2.xpose.msra.mxu0 0.0
    %537 = vmatprep.subr.mxu0 0.0
    %538 = vmatpush2.xpose.msra.mxu0 0.0
    %539 = vmatprep.subr.mxu0 0.0
    %540 = vmatpush2.xpose.msra.mxu0 0.0
    %541 = vmatprep.subr.mxu0 0.0
    %542 = vmatpush2.xpose.msra.mxu0 0.0
    %543 = vmatprep.subr.mxu0 0.0
    %544 = vmatpush2.xpose.msra.mxu0 0.0
    %545 = vmatprep.subr.mxu0 0.0
    %546 = vmatpush2.xpose.msra.mxu0 0.0
    %547 = vmatprep.subr.mxu0 0.0
    %548 = vmatpush2.xpose.msra.mxu0 0.0
    %549 = vmatprep.subr.mxu0 0.0
    %550 = vmatpush2.xpose.msra.mxu0 0.0
    %551 = vmatprep.subr.mxu0 0.0
    %552 = vmatpush2.xpose.msra.mxu0 0.0
    %553 = vmatprep.mubr.f32.mxu0 0.0
    %554 = vmatmul.mubr.f32.gmra.mxu0 %v485
    %v555 = vpop.f32.mrf.mxu0
    %v556 = vadd.f32 0.0, %v555
    %v557 = vpop.f32.mrf.mxu0
    %558 = vdwg.mxu0
    %559 = vrot.lane.b32.xlu0 %v143, 120
    %v560 = vpop.permute.xlu0 %559
    %561 = vrot.lane.b32.xlu0 %v143, 88
    %v562 = vpop.permute.xlu0 %561
    %v563 = vsel %vm149, %v560, 0
    %v565 = vsel %vm149, %v562, 0
    %567 = vmatprep.subr.mxu0 0.0
    %568 = vmatpush1.xpose.msra.mxu0 0.0
    %569 = vmatprep.subr.mxu0 0.0
    %570 = vmatpush1.xpose.msra.mxu0 0.0
    %571 = vmatprep.subr.mxu0 0.0
    %572 = vmatpush1.xpose.msra.mxu0 0.0
    %573 = vmatprep.subr.mxu0 0.0
    %574 = vmatpush1.xpose.msra.mxu0 0.0
    %575 = vmatprep.subr.mxu0 0.0
    %576 = vmatpush1.xpose.msra.mxu0 0.0
    %577 = vmatprep.subr.mxu0 0.0
    %578 = vmatpush1.xpose.msra.mxu0 0.0
    %579 = vmatprep.subr.mxu0 0.0
    %580 = vmatpush1.xpose.msra.mxu0 0.0
    %581 = vmatprep.subr.mxu0 0.0
    %582 = vmatpush1.xpose.msra.mxu0 0.0
    %583 = vmatprep.subr.mxu0 0.0
    %584 = vmatpush1.xpose.msra.mxu0 0.0
    %585 = vmatprep.subr.mxu0 0.0
    %586 = vmatpush1.xpose.msra.mxu0 0.0
    %587 = vmatprep.subr.mxu0 0.0
    %588 = vmatpush1.xpose.msra.mxu0 0.0
    %589 = vmatprep.subr.mxu0 0.0
    %590 = vmatpush1.xpose.msra.mxu0 0.0
    %591 = vmatprep.subr.mxu0 0.0
    %592 = vmatpush1.xpose.msra.mxu0 0.0
    %593 = vmatprep.subr.mxu0 0.0
    %594 = vmatpush1.xpose.msra.mxu0 0.0
    %595 = vmatprep.subr.mxu0 0.0
    %596 = vmatpush1.xpose.msra.mxu0 0.0
    %597 = vmatprep.subr.mxu0 0.0
    %598 = vmatpush1.xpose.msra.mxu0 %v565
    %599 = vmatprep.subr.mxu0 0.0
    %600 = vmatpush2.xpose.msra.mxu0 0.0
    %601 = vmatprep.subr.mxu0 0.0
    %602 = vmatpush2.xpose.msra.mxu0 0.0
    %603 = vmatprep.subr.mxu0 0.0
    %604 = vmatpush2.xpose.msra.mxu0 0.0
    %605 = vmatprep.subr.mxu0 0.0
    %606 = vmatpush2.xpose.msra.mxu0 0.0
    %607 = vmatprep.subr.mxu0 0.0
    %608 = vmatpush2.xpose.msra.mxu0 0.0
    %609 = vmatprep.subr.mxu0 0.0
    %610 = vmatpush2.xpose.msra.mxu0 0.0
    %611 = vmatprep.subr.mxu0 0.0
    %612 = vmatpush2.xpose.msra.mxu0 0.0
    %613 = vmatprep.subr.mxu0 0.0
    %614 = vmatpush2.xpose.msra.mxu0 0.0
    %615 = vmatprep.subr.mxu0 0.0
    %616 = vmatpush2.xpose.msra.mxu0 0.0
    %617 = vmatprep.subr.mxu0 0.0
    %618 = vmatpush2.xpose.msra.mxu0 0.0
    %619 = vmatprep.subr.mxu0 0.0
    %620 = vmatpush2.xpose.msra.mxu0 0.0
    %621 = vmatprep.subr.mxu0 0.0
    %622 = vmatpush2.xpose.msra.mxu0 0.0
    %623 = vmatprep.subr.mxu0 0.0
    %624 = vmatpush2.xpose.msra.mxu0 0.0
    %625 = vmatprep.subr.mxu0 0.0
    %626 = vmatpush2.xpose.msra.mxu0 0.0
    %627 = vmatprep.subr.mxu0 0.0
    %628 = vmatpush2.xpose.msra.mxu0 0.0
    %629 = vmatprep.subr.mxu0 0.0
    %630 = vmatpush2.xpose.msra.mxu0 0.0
    %631 = vmatprep.mubr.f32.mxu0 0.0
    %632 = vmatmul.mubr.f32.gmra.mxu0 %v563
    %v633 = vpop.f32.mrf.mxu0
    %v634 = vadd.f32 0.0, %v633
    %v635 = vpop.f32.mrf.mxu0
    %636 = vdwg.mxu0
    %v637 = vsel %vm149, %v556, -inf
    %638 = vmax.xlane.f32.xlu0 %v637
    %v639 = vpop.xlane.xlu0 %638
    %v640 = vsel %vm149, %v634, -inf
    %641 = vmax.xlane.f32.xlu0 %v640
    %v642 = vpop.xlane.xlu0 %641
    %v643 = vsub.f32 %v556, %v639
    %v644 = vsub.f32 %v634, %v642
    %v645 = vmul.f32 %v643, 1.442695
    %v646 = vpow.pop %v645
    %v647 = vmul.f32 %v644, 1.442695
    %v648 = vpow.pop %v647
    %v649 = vsel %vm149, %v646, 0.0
    %650 = vadd.xlane.f32.xlu0 %v649
    %v651 = vpop.xlane.xlu0 %650
    %v652 = vsel %vm149, %v648, 0.0
    %653 = vadd.xlane.f32.xlu0 %v652
    %v654 = vpop.xlane.xlu0 %653
    %v655 = vrcp.pop %v651
    %v656 = vrcp.pop %v654
    %v657 = vmul.f32 %v651, %v655
    %v658 = vmul.f32 %v654, %v656
    %v659 = vsub.f32 2.0, %v657
    %v660 = vsub.f32 2.0, %v658
    %v661 = vmul.f32 %v655, %v659
    %v662 = vmul.f32 %v656, %v660
    %v663 = vmul.f32 %v646, %v661
    %v664 = vmul.f32 %v648, %v662
    %665 = vrot.lane.b32.xlu0 %v138, 56
    %v666 = vpop.permute.xlu0 %665
    %v669 = vsel %vm149, %v663, 0
    %671 = vmatprep.subr.mxu0 0.0
    %672 = vmatpush1.msra.mxu0 0.0
    %673 = vmatprep.subr.mxu0 0.0
    %674 = vmatpush1.msra.mxu0 0.0
    %675 = vmatprep.subr.mxu0 0.0
    %676 = vmatpush1.msra.mxu0 0.0
    %677 = vmatprep.subr.mxu0 0.0
    %678 = vmatpush1.msra.mxu0 0.0
    %679 = vmatprep.subr.mxu0 0.0
    %680 = vmatpush1.msra.mxu0 0.0
    %681 = vmatprep.subr.mxu0 0.0
    %682 = vmatpush1.msra.mxu0 0.0
    %683 = vmatprep.subr.mxu0 0.0
    %684 = vmatpush1.msra.mxu0 0.0
    %685 = vmatprep.subr.mxu0 0.0
    %686 = vmatpush1.msra.mxu0 0.0
    %687 = vmatprep.subr.mxu0 0.0
    %688 = vmatpush1.msra.mxu0 0.0
    %689 = vmatprep.subr.mxu0 0.0
    %690 = vmatpush1.msra.mxu0 0.0
    %691 = vmatprep.subr.mxu0 0.0
    %692 = vmatpush1.msra.mxu0 0.0
    %693 = vmatprep.subr.mxu0 0.0
    %694 = vmatpush1.msra.mxu0 0.0
    %695 = vmatprep.subr.mxu0 0.0
    %696 = vmatpush1.msra.mxu0 0.0
    %697 = vmatprep.subr.mxu0 0.0
    %698 = vmatpush1.msra.mxu0 0.0
    %699 = vmatprep.subr.mxu0 0.0
    %700 = vmatpush1.msra.mxu0 0.0
    %701 = vmatprep.subr.mxu0 0.0
    %702 = vmatpush1.msra.mxu0 %v666
    %703 = vmatprep.subr.mxu0 0.0
    %704 = vmatpush2.msra.mxu0 0.0
    %705 = vmatprep.subr.mxu0 0.0
    %706 = vmatpush2.msra.mxu0 0.0
    %707 = vmatprep.subr.mxu0 0.0
    %708 = vmatpush2.msra.mxu0 0.0
    %709 = vmatprep.subr.mxu0 0.0
    %710 = vmatpush2.msra.mxu0 0.0
    %711 = vmatprep.subr.mxu0 0.0
    %712 = vmatpush2.msra.mxu0 0.0
    %713 = vmatprep.subr.mxu0 0.0
    %714 = vmatpush2.msra.mxu0 0.0
    %715 = vmatprep.subr.mxu0 0.0
    %716 = vmatpush2.msra.mxu0 0.0
    %717 = vmatprep.subr.mxu0 0.0
    %718 = vmatpush2.msra.mxu0 0.0
    %719 = vmatprep.subr.mxu0 0.0
    %720 = vmatpush2.msra.mxu0 0.0
    %721 = vmatprep.subr.mxu0 0.0
    %722 = vmatpush2.msra.mxu0 0.0
    %723 = vmatprep.subr.mxu0 0.0
    %724 = vmatpush2.msra.mxu0 0.0
    %725 = vmatprep.subr.mxu0 0.0
    %726 = vmatpush2.msra.mxu0 0.0
    %727 = vmatprep.subr.mxu0 0.0
    %728 = vmatpush2.msra.mxu0 0.0
    %729 = vmatprep.subr.mxu0 0.0
    %730 = vmatpush2.msra.mxu0 0.0
    %731 = vmatprep.subr.mxu0 0.0
    %732 = vmatpush2.msra.mxu0 0.0
    %733 = vmatprep.subr.mxu0 0.0
    %734 = vmatpush2.msra.mxu0 0.0
    %735 = vmatprep.mubr.f32.mxu0 0.0
    %736 = vmatmul.mubr.f32.gmra.mxu0 %v669
    %v737 = vpop.f32.mrf.mxu0
    %v738 = vadd.f32 0.0, %v737
    %v739 = vpop.f32.mrf.mxu0
    %740 = vdwg.mxu0
    %741 = vrot.lane.b32.xlu0 %v143, 56
    %v742 = vpop.permute.xlu0 %741
    %v745 = vsel %vm149, %v664, 0
    %747 = vmatprep.subr.mxu0 0.0
    %748 = vmatpush1.msra.mxu0 0.0
    %749 = vmatprep.subr.mxu0 0.0
    %750 = vmatpush1.msra.mxu0 0.0
    %751 = vmatprep.subr.mxu0 0.0
    %752 = vmatpush1.msra.mxu0 0.0
    %753 = vmatprep.subr.mxu0 0.0
    %754 = vmatpush1.msra.mxu0 0.0
    %755 = vmatprep.subr.mxu0 0.0
    %756 = vmatpush1.msra.mxu0 0.0
    %757 = vmatprep.subr.mxu0 0.0
    %758 = vmatpush1.msra.mxu0 0.0
    %759 = vmatprep.subr.mxu0 0.0
    %760 = vmatpush1.msra.mxu0 0.0
    %761 = vmatprep.subr.mxu0 0.0
    %762 = vmatpush1.msra.mxu0 0.0
    %763 = vmatprep.subr.mxu0 0.0
    %764 = vmatpush1.msra.mxu0 0.0
    %765 = vmatprep.subr.mxu0 0.0
    %766 = vmatpush1.msra.mxu0 0.0
    %767 = vmatprep.subr.mxu0 0.0
    %768 = vmatpush1.msra.mxu0 0.0
    %769 = vmatprep.subr.mxu0 0.0
    %770 = vmatpush1.msra.mxu0 0.0
    %771 = vmatprep.subr.mxu0 0.0
    %772 = vmatpush1.msra.mxu0 0.0
    %773 = vmatprep.subr.mxu0 0.0
    %774 = vmatpush1.msra.mxu0 0.0
    %775 = vmatprep.subr.mxu0 0.0
    %776 = vmatpush1.msra.mxu0 0.0
    %777 = vmatprep.subr.mxu0 0.0
    %778 = vmatpush1.msra.mxu0 %v742
    %779 = vmatprep.subr.mxu0 0.0
    %780 = vmatpush2.msra.mxu0 0.0
    %781 = vmatprep.subr.mxu0 0.0
    %782 = vmatpush2.msra.mxu0 0.0
    %783 = vmatprep.subr.mxu0 0.0
    %784 = vmatpush2.msra.mxu0 0.0
    %785 = vmatprep.subr.mxu0 0.0
    %786 = vmatpush2.msra.mxu0 0.0
    %787 = vmatprep.subr.mxu0 0.0
    %788 = vmatpush2.msra.mxu0 0.0
    %789 = vmatprep.subr.mxu0 0.0
    %790 = vmatpush2.msra.mxu0 0.0
    %791 = vmatprep.subr.mxu0 0.0
    %792 = vmatpush2.msra.mxu0 0.0
    %793 = vmatprep.subr.mxu0 0.0
    %794 = vmatpush2.msra.mxu0 0.0
    %795 = vmatprep.subr.mxu0 0.0
    %796 = vmatpush2.msra.mxu0 0.0
    %797 = vmatprep.subr.mxu0 0.0
    %798 = vmatpush2.msra.mxu0 0.0
    %799 = vmatprep.subr.mxu0 0.0
    %800 = vmatpush2.msra.mxu0 0.0
    %801 = vmatprep.subr.mxu0 0.0
    %802 = vmatpush2.msra.mxu0 0.0
    %803 = vmatprep.subr.mxu0 0.0
    %804 = vmatpush2.msra.mxu0 0.0
    %805 = vmatprep.subr.mxu0 0.0
    %806 = vmatpush2.msra.mxu0 0.0
    %807 = vmatprep.subr.mxu0 0.0
    %808 = vmatpush2.msra.mxu0 0.0
    %809 = vmatprep.subr.mxu0 0.0
    %810 = vmatpush2.msra.mxu0 0.0
    %811 = vmatprep.mubr.f32.mxu0 0.0
    %812 = vmatmul.mubr.f32.gmra.mxu0 %v745
    %v813 = vpop.f32.mrf.mxu0
    %v814 = vadd.f32 0.0, %v813
    %v815 = vpop.f32.mrf.mxu0
    %816 = vdwg.mxu0
    %817 = vrot.lane.b32.xlu0 %v138, 112
    %v818 = vpop.permute.xlu0 %817
    %819 = vrot.lane.b32.xlu0 %v138, 80
    %v820 = vpop.permute.xlu0 %819
    %v821 = vsel %vm149, %v818, 0
    %v823 = vsel %vm149, %v820, 0
    %825 = vmatprep.subr.mxu0 0.0
    %826 = vmatpush1.xpose.msra.mxu0 0.0
    %827 = vmatprep.subr.mxu0 0.0
    %828 = vmatpush1.xpose.msra.mxu0 0.0
    %829 = vmatprep.subr.mxu0 0.0
    %830 = vmatpush1.xpose.msra.mxu0 0.0
    %831 = vmatprep.subr.mxu0 0.0
    %832 = vmatpush1.xpose.msra.mxu0 0.0
    %833 = vmatprep.subr.mxu0 0.0
    %834 = vmatpush1.xpose.msra.mxu0 0.0
    %835 = vmatprep.subr.mxu0 0.0
    %836 = vmatpush1.xpose.msra.mxu0 0.0
    %837 = vmatprep.subr.mxu0 0.0
    %838 = vmatpush1.xpose.msra.mxu0 0.0
    %839 = vmatprep.subr.mxu0 0.0
    %840 = vmatpush1.xpose.msra.mxu0 0.0
    %841 = vmatprep.subr.mxu0 0.0
    %842 = vmatpush1.xpose.msra.mxu0 0.0
    %843 = vmatprep.subr.mxu0 0.0
    %844 = vmatpush1.xpose.msra.mxu0 0.0
    %845 = vmatprep.subr.mxu0 0.0
    %846 = vmatpush1.xpose.msra.mxu0 0.0
    %847 = vmatprep.subr.mxu0 0.0
    %848 = vmatpush1.xpose.msra.mxu0 0.0
    %849 = vmatprep.subr.mxu0 0.0
    %850 = vmatpush1.xpose.msra.mxu0 0.0
    %851 = vmatprep.subr.mxu0 0.0
    %852 = vmatpush1.xpose.msra.mxu0 0.0
    %853 = vmatprep.subr.mxu0 0.0
    %854 = vmatpush1.xpose.msra.mxu0 0.0
    %855 = vmatprep.subr.mxu0 0.0
    %856 = vmatpush1.xpose.msra.mxu0 %v823
    %857 = vmatprep.subr.mxu0 0.0
    %858 = vmatpush2.xpose.msra.mxu0 0.0
    %859 = vmatprep.subr.mxu0 0.0
    %860 = vmatpush2.xpose.msra.mxu0 0.0
    %861 = vmatprep.subr.mxu0 0.0
    %862 = vmatpush2.xpose.msra.mxu0 0.0
    %863 = vmatprep.subr.mxu0 0.0
    %864 = vmatpush2.xpose.msra.mxu0 0.0
    %865 = vmatprep.subr.mxu0 0.0
    %866 = vmatpush2.xpose.msra.mxu0 0.0
    %867 = vmatprep.subr.mxu0 0.0
    %868 = vmatpush2.xpose.msra.mxu0 0.0
    %869 = vmatprep.subr.mxu0 0.0
    %870 = vmatpush2.xpose.msra.mxu0 0.0
    %871 = vmatprep.subr.mxu0 0.0
    %872 = vmatpush2.xpose.msra.mxu0 0.0
    %873 = vmatprep.subr.mxu0 0.0
    %874 = vmatpush2.xpose.msra.mxu0 0.0
    %875 = vmatprep.subr.mxu0 0.0
    %876 = vmatpush2.xpose.msra.mxu0 0.0
    %877 = vmatprep.subr.mxu0 0.0
    %878 = vmatpush2.xpose.msra.mxu0 0.0
    %879 = vmatprep.subr.mxu0 0.0
    %880 = vmatpush2.xpose.msra.mxu0 0.0
    %881 = vmatprep.subr.mxu0 0.0
    %882 = vmatpush2.xpose.msra.mxu0 0.0
    %883 = vmatprep.subr.mxu0 0.0
    %884 = vmatpush2.xpose.msra.mxu0 0.0
    %885 = vmatprep.subr.mxu0 0.0
    %886 = vmatpush2.xpose.msra.mxu0 0.0
    %887 = vmatprep.subr.mxu0 0.0
    %888 = vmatpush2.xpose.msra.mxu0 0.0
    %889 = vmatprep.mubr.f32.mxu0 0.0
    %890 = vmatmul.mubr.f32.gmra.mxu0 %v821
    %v891 = vpop.f32.mrf.mxu0
    %v892 = vadd.f32 0.0, %v891
    %v893 = vpop.f32.mrf.mxu0
    %894 = vdwg.mxu0
    %895 = vrot.lane.b32.xlu0 %v143, 112
    %v896 = vpop.permute.xlu0 %895
    %897 = vrot.lane.b32.xlu0 %v143, 80
    %v898 = vpop.permute.xlu0 %897
    %v899 = vsel %vm149, %v896, 0
    %v901 = vsel %vm149, %v898, 0
    %903 = vmatprep.subr.mxu0 0.0
    %904 = vmatpush1.xpose.msra.mxu0 0.0
    %905 = vmatprep.subr.mxu0 0.0
    %906 = vmatpush1.xpose.msra.mxu0 0.0
    %907 = vmatprep.subr.mxu0 0.0
    %908 = vmatpush1.xpose.msra.mxu0 0.0
    %909 = vmatprep.subr.mxu0 0.0
    %910 = vmatpush1.xpose.msra.mxu0 0.0
    %911 = vmatprep.subr.mxu0 0.0
    %912 = vmatpush1.xpose.msra.mxu0 0.0
    %913 = vmatprep.subr.mxu0 0.0
    %914 = vmatpush1.xpose.msra.mxu0 0.0
    %915 = vmatprep.subr.mxu0 0.0
    %916 = vmatpush1.xpose.msra.mxu0 0.0
    %917 = vmatprep.subr.mxu0 0.0
    %918 = vmatpush1.xpose.msra.mxu0 0.0
    %919 = vmatprep.subr.mxu0 0.0
    %920 = vmatpush1.xpose.msra.mxu0 0.0
    %921 = vmatprep.subr.mxu0 0.0
    %922 = vmatpush1.xpose.msra.mxu0 0.0
    %923 = vmatprep.subr.mxu0 0.0
    %924 = vmatpush1.xpose.msra.mxu0 0.0
    %925 = vmatprep.subr.mxu0 0.0
    %926 = vmatpush1.xpose.msra.mxu0 0.0
    %927 = vmatprep.subr.mxu0 0.0
    %928 = vmatpush1.xpose.msra.mxu0 0.0
    %929 = vmatprep.subr.mxu0 0.0
    %930 = vmatpush1.xpose.msra.mxu0 0.0
    %931 = vmatprep.subr.mxu0 0.0
    %932 = vmatpush1.xpose.msra.mxu0 0.0
    %933 = vmatprep.subr.mxu0 0.0
    %934 = vmatpush1.xpose.msra.mxu0 %v901
    %935 = vmatprep.subr.mxu0 0.0
    %936 = vmatpush2.xpose.msra.mxu0 0.0
    %937 = vmatprep.subr.mxu0 0.0
    %938 = vmatpush2.xpose.msra.mxu0 0.0
    %939 = vmatprep.subr.mxu0 0.0
    %940 = vmatpush2.xpose.msra.mxu0 0.0
    %941 = vmatprep.subr.mxu0 0.0
    %942 = vmatpush2.xpose.msra.mxu0 0.0
    %943 = vmatprep.subr.mxu0 0.0
    %944 = vmatpush2.xpose.msra.mxu0 0.0
    %945 = vmatprep.subr.mxu0 0.0
    %946 = vmatpush2.xpose.msra.mxu0 0.0
    %947 = vmatprep.subr.mxu0 0.0
    %948 = vmatpush2.xpose.msra.mxu0 0.0
    %949 = vmatprep.subr.mxu0 0.0
    %950 = vmatpush2.xpose.msra.mxu0 0.0
    %951 = vmatprep.subr.mxu0 0.0
    %952 = vmatpush2.xpose.msra.mxu0 0.0
    %953 = vmatprep.subr.mxu0 0.0
    %954 = vmatpush2.xpose.msra.mxu0 0.0
    %955 = vmatprep.subr.mxu0 0.0
    %956 = vmatpush2.xpose.msra.mxu0 0.0
    %957 = vmatprep.subr.mxu0 0.0
    %958 = vmatpush2.xpose.msra.mxu0 0.0
    %959 = vmatprep.subr.mxu0 0.0
    %960 = vmatpush2.xpose.msra.mxu0 0.0
    %961 = vmatprep.subr.mxu0 0.0
    %962 = vmatpush2.xpose.msra.mxu0 0.0
    %963 = vmatprep.subr.mxu0 0.0
    %964 = vmatpush2.xpose.msra.mxu0 0.0
    %965 = vmatprep.subr.mxu0 0.0
    %966 = vmatpush2.xpose.msra.mxu0 0.0
    %967 = vmatprep.mubr.f32.mxu0 0.0
    %968 = vmatmul.mubr.f32.gmra.mxu0 %v899
    %v969 = vpop.f32.mrf.mxu0
    %v970 = vadd.f32 0.0, %v969
    %v971 = vpop.f32.mrf.mxu0
    %972 = vdwg.mxu0
    %v973 = vsel %vm149, %v892, -inf
    %974 = vmax.xlane.f32.xlu0 %v973
    %v975 = vpop.xlane.xlu0 %974
    %v976 = vsel %vm149, %v970, -inf
    %977 = vmax.xlane.f32.xlu0 %v976
    %v978 = vpop.xlane.xlu0 %977
    %v979 = vsub.f32 %v892, %v975
    %v980 = vsub.f32 %v970, %v978
    %v981 = vmul.f32 %v979, 1.442695
    %v982 = vpow.pop %v981
    %v983 = vmul.f32 %v980, 1.442695
    %v984 = vpow.pop %v983
    %v985 = vsel %vm149, %v982, 0.0
    %986 = vadd.xlane.f32.xlu0 %v985
    %v987 = vpop.xlane.xlu0 %986
    %v988 = vsel %vm149, %v984, 0.0
    %989 = vadd.xlane.f32.xlu0 %v988
    %v990 = vpop.xlane.xlu0 %989
    %v991 = vrcp.pop %v987
    %v992 = vrcp.pop %v990
    %v993 = vmul.f32 %v987, %v991
    %v994 = vmul.f32 %v990, %v992
    %v995 = vsub.f32 2.0, %v993
    %v996 = vsub.f32 2.0, %v994
    %v997 = vmul.f32 %v991, %v995
    %v998 = vmul.f32 %v992, %v996
    %v999 = vmul.f32 %v982, %v997
    %v1000 = vmul.f32 %v984, %v998
    %1001 = vrot.lane.b32.xlu0 %v138, 48
    %v1002 = vpop.permute.xlu0 %1001
    %v1005 = vsel %vm149, %v999, 0
    %1007 = vmatprep.subr.mxu0 0.0
    %1008 = vmatpush1.msra.mxu0 0.0
    %1009 = vmatprep.subr.mxu0 0.0
    %1010 = vmatpush1.msra.mxu0 0.0
    %1011 = vmatprep.subr.mxu0 0.0
    %1012 = vmatpush1.msra.mxu0 0.0
    %1013 = vmatprep.subr.mxu0 0.0
    %1014 = vmatpush1.msra.mxu0 0.0
    %1015 = vmatprep.subr.mxu0 0.0
    %1016 = vmatpush1.msra.mxu0 0.0
    %1017 = vmatprep.subr.mxu0 0.0
    %1018 = vmatpush1.msra.mxu0 0.0
    %1019 = vmatprep.subr.mxu0 0.0
    %1020 = vmatpush1.msra.mxu0 0.0
    %1021 = vmatprep.subr.mxu0 0.0
    %1022 = vmatpush1.msra.mxu0 0.0
    %1023 = vmatprep.subr.mxu0 0.0
    %1024 = vmatpush1.msra.mxu0 0.0
    %1025 = vmatprep.subr.mxu0 0.0
    %1026 = vmatpush1.msra.mxu0 0.0
    %1027 = vmatprep.subr.mxu0 0.0
    %1028 = vmatpush1.msra.mxu0 0.0
    %1029 = vmatprep.subr.mxu0 0.0
    %1030 = vmatpush1.msra.mxu0 0.0
    %1031 = vmatprep.subr.mxu0 0.0
    %1032 = vmatpush1.msra.mxu0 0.0
    %1033 = vmatprep.subr.mxu0 0.0
    %1034 = vmatpush1.msra.mxu0 0.0
    %1035 = vmatprep.subr.mxu0 0.0
    %1036 = vmatpush1.msra.mxu0 0.0
    %1037 = vmatprep.subr.mxu0 0.0
    %1038 = vmatpush1.msra.mxu0 %v1002
    %1039 = vmatprep.subr.mxu0 0.0
    %1040 = vmatpush2.msra.mxu0 0.0
    %1041 = vmatprep.subr.mxu0 0.0
    %1042 = vmatpush2.msra.mxu0 0.0
    %1043 = vmatprep.subr.mxu0 0.0
    %1044 = vmatpush2.msra.mxu0 0.0
    %1045 = vmatprep.subr.mxu0 0.0
    %1046 = vmatpush2.msra.mxu0 0.0
    %1047 = vmatprep.subr.mxu0 0.0
    %1048 = vmatpush2.msra.mxu0 0.0
    %1049 = vmatprep.subr.mxu0 0.0
    %1050 = vmatpush2.msra.mxu0 0.0
    %1051 = vmatprep.subr.mxu0 0.0
    %1052 = vmatpush2.msra.mxu0 0.0
    %1053 = vmatprep.subr.mxu0 0.0
    %1054 = vmatpush2.msra.mxu0 0.0
    %1055 = vmatprep.subr.mxu0 0.0
    %1056 = vmatpush2.msra.mxu0 0.0
    %1057 = vmatprep.subr.mxu0 0.0
    %1058 = vmatpush2.msra.mxu0 0.0
    %1059 = vmatprep.subr.mxu0 0.0
    %1060 = vmatpush2.msra.mxu0 0.0
    %1061 = vmatprep.subr.mxu0 0.0
    %1062 = vmatpush2.msra.mxu0 0.0
    %1063 = vmatprep.subr.mxu0 0.0
    %1064 = vmatpush2.msra.mxu0 0.0
    %1065 = vmatprep.subr.mxu0 0.0
    %1066 = vmatpush2.msra.mxu0 0.0
    %1067 = vmatprep.subr.mxu0 0.0
    %1068 = vmatpush2.msra.mxu0 0.0
    %1069 = vmatprep.subr.mxu0 0.0
    %1070 = vmatpush2.msra.mxu0 0.0
    %1071 = vmatprep.mubr.f32.mxu0 0.0
    %1072 = vmatmul.mubr.f32.gmra.mxu0 %v1005
    %v1073 = vpop.f32.mrf.mxu0
    %v1074 = vadd.f32 0.0, %v1073
    %v1075 = vpop.f32.mrf.mxu0
    %1076 = vdwg.mxu0
    %1077 = vrot.lane.b32.xlu0 %v143, 48
    %v1078 = vpop.permute.xlu0 %1077
    %v1081 = vsel %vm149, %v1000, 0
    %1083 = vmatprep.subr.mxu0 0.0
    %1084 = vmatpush1.msra.mxu0 0.0
    %1085 = vmatprep.subr.mxu0 0.0
    %1086 = vmatpush1.msra.mxu0 0.0
    %1087 = vmatprep.subr.mxu0 0.0
    %1088 = vmatpush1.msra.mxu0 0.0
    %1089 = vmatprep.subr.mxu0 0.0
    %1090 = vmatpush1.msra.mxu0 0.0
    %1091 = vmatprep.subr.mxu0 0.0
    %1092 = vmatpush1.msra.mxu0 0.0
    %1093 = vmatprep.subr.mxu0 0.0
    %1094 = vmatpush1.msra.mxu0 0.0
    %1095 = vmatprep.subr.mxu0 0.0
    %1096 = vmatpush1.msra.mxu0 0.0
    %1097 = vmatprep.subr.mxu0 0.0
    %1098 = vmatpush1.msra.mxu0 0.0
    %1099 = vmatprep.subr.mxu0 0.0
    %1100 = vmatpush1.msra.mxu0 0.0
    %1101 = vmatprep.subr.mxu0 0.0
    %1102 = vmatpush1.msra.mxu0 0.0
    %1103 = vmatprep.subr.mxu0 0.0
    %1104 = vmatpush1.msra.mxu0 0.0
    %1105 = vmatprep.subr.mxu0 0.0
    %1106 = vmatpush1.msra.mxu0 0.0
    %1107 = vmatprep.subr.mxu0 0.0
    %1108 = vmatpush1.msra.mxu0 0.0
    %1109 = vmatprep.subr.mxu0 0.0
    %1110 = vmatpush1.msra.mxu0 0.0
    %1111 = vmatprep.subr.mxu0 0.0
    %1112 = vmatpush1.msra.mxu0 0.0
    %1113 = vmatprep.subr.mxu0 0.0
    %1114 = vmatpush1.msra.mxu0 %v1078
    %1115 = vmatprep.subr.mxu0 0.0
    %1116 = vmatpush2.msra.mxu0 0.0
    %1117 = vmatprep.subr.mxu0 0.0
    %1118 = vmatpush2.msra.mxu0 0.0
    %1119 = vmatprep.subr.mxu0 0.0
    %1120 = vmatpush2.msra.mxu0 0.0
    %1121 = vmatprep.subr.mxu0 0.0
    %1122 = vmatpush2.msra.mxu0 0.0
    %1123 = vmatprep.subr.mxu0 0.0
    %1124 = vmatpush2.msra.mxu0 0.0
    %1125 = vmatprep.subr.mxu0 0.0
    %1126 = vmatpush2.msra.mxu0 0.0
    %1127 = vmatprep.subr.mxu0 0.0
    %1128 = vmatpush2.msra.mxu0 0.0
    %1129 = vmatprep.subr.mxu0 0.0
    %1130 = vmatpush2.msra.mxu0 0.0
    %1131 = vmatprep.subr.mxu0 0.0
    %1132 = vmatpush2.msra.mxu0 0.0
    %1133 = vmatprep.subr.mxu0 0.0
    %1134 = vmatpush2.msra.mxu0 0.0
    %1135 = vmatprep.subr.mxu0 0.0
    %1136 = vmatpush2.msra.mxu0 0.0
    %1137 = vmatprep.subr.mxu0 0.0
    %1138 = vmatpush2.msra.mxu0 0.0
    %1139 = vmatprep.subr.mxu0 0.0
    %1140 = vmatpush2.msra.mxu0 0.0
    %1141 = vmatprep.subr.mxu0 0.0
    %1142 = vmatpush2.msra.mxu0 0.0
    %1143 = vmatprep.subr.mxu0 0.0
    %1144 = vmatpush2.msra.mxu0 0.0
    %1145 = vmatprep.subr.mxu0 0.0
    %1146 = vmatpush2.msra.mxu0 0.0
    %1147 = vmatprep.mubr.f32.mxu0 0.0
    %1148 = vmatmul.mubr.f32.gmra.mxu0 %v1081
    %v1149 = vpop.f32.mrf.mxu0
    %v1150 = vadd.f32 0.0, %v1149
    %v1151 = vpop.f32.mrf.mxu0
    %1152 = vdwg.mxu0
    %1153 = vrot.lane.b32.xlu0 %v138, 104
    %v1154 = vpop.permute.xlu0 %1153
    %1155 = vrot.lane.b32.xlu0 %v138, 72
    %v1156 = vpop.permute.xlu0 %1155
    %v1157 = vsel %vm149, %v1154, 0
    %v1159 = vsel %vm149, %v1156, 0
    %1161 = vmatprep.subr.mxu0 0.0
    %1162 = vmatpush1.xpose.msra.mxu0 0.0
    %1163 = vmatprep.subr.mxu0 0.0
    %1164 = vmatpush1.xpose.msra.mxu0 0.0
    %1165 = vmatprep.subr.mxu0 0.0
    %1166 = vmatpush1.xpose.msra.mxu0 0.0
    %1167 = vmatprep.subr.mxu0 0.0
    %1168 = vmatpush1.xpose.msra.mxu0 0.0
    %1169 = vmatprep.subr.mxu0 0.0
    %1170 = vmatpush1.xpose.msra.mxu0 0.0
    %1171 = vmatprep.subr.mxu0 0.0
    %1172 = vmatpush1.xpose.msra.mxu0 0.0
    %1173 = vmatprep.subr.mxu0 0.0
    %1174 = vmatpush1.xpose.msra.mxu0 0.0
    %1175 = vmatprep.subr.mxu0 0.0
    %1176 = vmatpush1.xpose.msra.mxu0 0.0
    %1177 = vmatprep.subr.mxu0 0.0
    %1178 = vmatpush1.xpose.msra.mxu0 0.0
    %1179 = vmatprep.subr.mxu0 0.0
    %1180 = vmatpush1.xpose.msra.mxu0 0.0
    %1181 = vmatprep.subr.mxu0 0.0
    %1182 = vmatpush1.xpose.msra.mxu0 0.0
    %1183 = vmatprep.subr.mxu0 0.0
    %1184 = vmatpush1.xpose.msra.mxu0 0.0
    %1185 = vmatprep.subr.mxu0 0.0
    %1186 = vmatpush1.xpose.msra.mxu0 0.0
    %1187 = vmatprep.subr.mxu0 0.0
    %1188 = vmatpush1.xpose.msra.mxu0 0.0
    %1189 = vmatprep.subr.mxu0 0.0
    %1190 = vmatpush1.xpose.msra.mxu0 0.0
    %1191 = vmatprep.subr.mxu0 0.0
    %1192 = vmatpush1.xpose.msra.mxu0 %v1159
    %1193 = vmatprep.subr.mxu0 0.0
    %1194 = vmatpush2.xpose.msra.mxu0 0.0
    %1195 = vmatprep.subr.mxu0 0.0
    %1196 = vmatpush2.xpose.msra.mxu0 0.0
    %1197 = vmatprep.subr.mxu0 0.0
    %1198 = vmatpush2.xpose.msra.mxu0 0.0
    %1199 = vmatprep.subr.mxu0 0.0
    %1200 = vmatpush2.xpose.msra.mxu0 0.0
    %1201 = vmatprep.subr.mxu0 0.0
    %1202 = vmatpush2.xpose.msra.mxu0 0.0
    %1203 = vmatprep.subr.mxu0 0.0
    %1204 = vmatpush2.xpose.msra.mxu0 0.0
    %1205 = vmatprep.subr.mxu0 0.0
    %1206 = vmatpush2.xpose.msra.mxu0 0.0
    %1207 = vmatprep.subr.mxu0 0.0
    %1208 = vmatpush2.xpose.msra.mxu0 0.0
    %1209 = vmatprep.subr.mxu0 0.0
    %1210 = vmatpush2.xpose.msra.mxu0 0.0
    %1211 = vmatprep.subr.mxu0 0.0
    %1212 = vmatpush2.xpose.msra.mxu0 0.0
    %1213 = vmatprep.subr.mxu0 0.0
    %1214 = vmatpush2.xpose.msra.mxu0 0.0
    %1215 = vmatprep.subr.mxu0 0.0
    %1216 = vmatpush2.xpose.msra.mxu0 0.0
    %1217 = vmatprep.subr.mxu0 0.0
    %1218 = vmatpush2.xpose.msra.mxu0 0.0
    %1219 = vmatprep.subr.mxu0 0.0
    %1220 = vmatpush2.xpose.msra.mxu0 0.0
    %1221 = vmatprep.subr.mxu0 0.0
    %1222 = vmatpush2.xpose.msra.mxu0 0.0
    %1223 = vmatprep.subr.mxu0 0.0
    %1224 = vmatpush2.xpose.msra.mxu0 0.0
    %1225 = vmatprep.mubr.f32.mxu0 0.0
    %1226 = vmatmul.mubr.f32.gmra.mxu0 %v1157
    %v1227 = vpop.f32.mrf.mxu0
    %v1228 = vadd.f32 0.0, %v1227
    %v1229 = vpop.f32.mrf.mxu0
    %1230 = vdwg.mxu0
    %1231 = vrot.lane.b32.xlu0 %v143, 104
    %v1232 = vpop.permute.xlu0 %1231
    %1233 = vrot.lane.b32.xlu0 %v143, 72
    %v1234 = vpop.permute.xlu0 %1233
    %v1235 = vsel %vm149, %v1232, 0
    %v1237 = vsel %vm149, %v1234, 0
    %1239 = vmatprep.subr.mxu0 0.0
    %1240 = vmatpush1.xpose.msra.mxu0 0.0
    %1241 = vmatprep.subr.mxu0 0.0
    %1242 = vmatpush1.xpose.msra.mxu0 0.0
    %1243 = vmatprep.subr.mxu0 0.0
    %1244 = vmatpush1.xpose.msra.mxu0 0.0
    %1245 = vmatprep.subr.mxu0 0.0
    %1246 = vmatpush1.xpose.msra.mxu0 0.0
    %1247 = vmatprep.subr.mxu0 0.0
    %1248 = vmatpush1.xpose.msra.mxu0 0.0
    %1249 = vmatprep.subr.mxu0 0.0
    %1250 = vmatpush1.xpose.msra.mxu0 0.0
    %1251 = vmatprep.subr.mxu0 0.0
    %1252 = vmatpush1.xpose.msra.mxu0 0.0
    %1253 = vmatprep.subr.mxu0 0.0
    %1254 = vmatpush1.xpose.msra.mxu0 0.0
    %1255 = vmatprep.subr.mxu0 0.0
    %1256 = vmatpush1.xpose.msra.mxu0 0.0
    %1257 = vmatprep.subr.mxu0 0.0
    %1258 = vmatpush1.xpose.msra.mxu0 0.0
    %1259 = vmatprep.subr.mxu0 0.0
    %1260 = vmatpush1.xpose.msra.mxu0 0.0
    %1261 = vmatprep.subr.mxu0 0.0
    %1262 = vmatpush1.xpose.msra.mxu0 0.0
    %1263 = vmatprep.subr.mxu0 0.0
    %1264 = vmatpush1.xpose.msra.mxu0 0.0
    %1265 = vmatprep.subr.mxu0 0.0
    %1266 = vmatpush1.xpose.msra.mxu0 0.0
    %1267 = vmatprep.subr.mxu0 0.0
    %1268 = vmatpush1.xpose.msra.mxu0 0.0
    %1269 = vmatprep.subr.mxu0 0.0
    %1270 = vmatpush1.xpose.msra.mxu0 %v1237
    %1271 = vmatprep.subr.mxu0 0.0
    %1272 = vmatpush2.xpose.msra.mxu0 0.0
    %1273 = vmatprep.subr.mxu0 0.0
    %1274 = vmatpush2.xpose.msra.mxu0 0.0
    %1275 = vmatprep.subr.mxu0 0.0
    %1276 = vmatpush2.xpose.msra.mxu0 0.0
    %1277 = vmatprep.subr.mxu0 0.0
    %1278 = vmatpush2.xpose.msra.mxu0 0.0
    %1279 = vmatprep.subr.mxu0 0.0
    %1280 = vmatpush2.xpose.msra.mxu0 0.0
    %1281 = vmatprep.subr.mxu0 0.0
    %1282 = vmatpush2.xpose.msra.mxu0 0.0
    %1283 = vmatprep.subr.mxu0 0.0
    %1284 = vmatpush2.xpose.msra.mxu0 0.0
    %1285 = vmatprep.subr.mxu0 0.0
    %1286 = vmatpush2.xpose.msra.mxu0 0.0
    %1287 = vmatprep.subr.mxu0 0.0
    %1288 = vmatpush2.xpose.msra.mxu0 0.0
    %1289 = vmatprep.subr.mxu0 0.0
    %1290 = vmatpush2.xpose.msra.mxu0 0.0
    %1291 = vmatprep.subr.mxu0 0.0
    %1292 = vmatpush2.xpose.msra.mxu0 0.0
    %1293 = vmatprep.subr.mxu0 0.0
    %1294 = vmatpush2.xpose.msra.mxu0 0.0
    %1295 = vmatprep.subr.mxu0 0.0
    %1296 = vmatpush2.xpose.msra.mxu0 0.0
    %1297 = vmatprep.subr.mxu0 0.0
    %1298 = vmatpush2.xpose.msra.mxu0 0.0
    %1299 = vmatprep.subr.mxu0 0.0
    %1300 = vmatpush2.xpose.msra.mxu0 0.0
    %1301 = vmatprep.subr.mxu0 0.0
    %1302 = vmatpush2.xpose.msra.mxu0 0.0
    %1303 = vmatprep.mubr.f32.mxu0 0.0
    %1304 = vmatmul.mubr.f32.gmra.mxu0 %v1235
    %v1305 = vpop.f32.mrf.mxu0
    %v1306 = vadd.f32 0.0, %v1305
    %v1307 = vpop.f32.mrf.mxu0
    %1308 = vdwg.mxu0
    %v1309 = vsel %vm149, %v1228, -inf
    %1310 = vmax.xlane.f32.xlu0 %v1309
    %v1311 = vpop.xlane.xlu0 %1310
    %v1312 = vsel %vm149, %v1306, -inf
    %1313 = vmax.xlane.f32.xlu0 %v1312
    %v1314 = vpop.xlane.xlu0 %1313
    %v1315 = vsub.f32 %v1228, %v1311
    %v1316 = vsub.f32 %v1306, %v1314
    %v1317 = vmul.f32 %v1315, 1.442695
    %v1318 = vpow.pop %v1317
    %v1319 = vmul.f32 %v1316, 1.442695
    %v1320 = vpow.pop %v1319
    %v1321 = vsel %vm149, %v1318, 0.0
    %1322 = vadd.xlane.f32.xlu0 %v1321
    %v1323 = vpop.xlane.xlu0 %1322
    %v1324 = vsel %vm149, %v1320, 0.0
    %1325 = vadd.xlane.f32.xlu0 %v1324
    %v1326 = vpop.xlane.xlu0 %1325
    %v1327 = vrcp.pop %v1323
    %v1328 = vrcp.pop %v1326
    %v1329 = vmul.f32 %v1323, %v1327
    %v1330 = vmul.f32 %v1326, %v1328
    %v1331 = vsub.f32 2.0, %v1329
    %v1332 = vsub.f32 2.0, %v1330
    %v1333 = vmul.f32 %v1327, %v1331
    %v1334 = vmul.f32 %v1328, %v1332
    %v1335 = vmul.f32 %v1318, %v1333
    %v1336 = vmul.f32 %v1320, %v1334
    %1337 = vrot.lane.b32.xlu0 %v138, 40
    %v1338 = vpop.permute.xlu0 %1337
    %v1341 = vsel %vm149, %v1335, 0
    %1343 = vmatprep.subr.mxu0 0.0
    %1344 = vmatpush1.msra.mxu0 0.0
    %1345 = vmatprep.subr.mxu0 0.0
    %1346 = vmatpush1.msra.mxu0 0.0
    %1347 = vmatprep.subr.mxu0 0.0
    %1348 = vmatpush1.msra.mxu0 0.0
    %1349 = vmatprep.subr.mxu0 0.0
    %1350 = vmatpush1.msra.mxu0 0.0
    %1351 = vmatprep.subr.mxu0 0.0
    %1352 = vmatpush1.msra.mxu0 0.0
    %1353 = vmatprep.subr.mxu0 0.0
    %1354 = vmatpush1.msra.mxu0 0.0
    %1355 = vmatprep.subr.mxu0 0.0
    %1356 = vmatpush1.msra.mxu0 0.0
    %1357 = vmatprep.subr.mxu0 0.0
    %1358 = vmatpush1.msra.mxu0 0.0
    %1359 = vmatprep.subr.mxu0 0.0
    %1360 = vmatpush1.msra.mxu0 0.0
    %1361 = vmatprep.subr.mxu0 0.0
    %1362 = vmatpush1.msra.mxu0 0.0
    %1363 = vmatprep.subr.mxu0 0.0
    %1364 = vmatpush1.msra.mxu0 0.0
    %1365 = vmatprep.subr.mxu0 0.0
    %1366 = vmatpush1.msra.mxu0 0.0
    %1367 = vmatprep.subr.mxu0 0.0
    %1368 = vmatpush1.msra.mxu0 0.0
    %1369 = vmatprep.subr.mxu0 0.0
    %1370 = vmatpush1.msra.mxu0 0.0
    %1371 = vmatprep.subr.mxu0 0.0
    %1372 = vmatpush1.msra.mxu0 0.0
    %1373 = vmatprep.subr.mxu0 0.0
    %1374 = vmatpush1.msra.mxu0 %v1338
    %1375 = vmatprep.subr.mxu0 0.0
    %1376 = vmatpush2.msra.mxu0 0.0
    %1377 = vmatprep.subr.mxu0 0.0
    %1378 = vmatpush2.msra.mxu0 0.0
    %1379 = vmatprep.subr.mxu0 0.0
    %1380 = vmatpush2.msra.mxu0 0.0
    %1381 = vmatprep.subr.mxu0 0.0
    %1382 = vmatpush2.msra.mxu0 0.0
    %1383 = vmatprep.subr.mxu0 0.0
    %1384 = vmatpush2.msra.mxu0 0.0
    %1385 = vmatprep.subr.mxu0 0.0
    %1386 = vmatpush2.msra.mxu0 0.0
    %1387 = vmatprep.subr.mxu0 0.0
    %1388 = vmatpush2.msra.mxu0 0.0
    %1389 = vmatprep.subr.mxu0 0.0
    %1390 = vmatpush2.msra.mxu0 0.0
    %1391 = vmatprep.subr.mxu0 0.0
    %1392 = vmatpush2.msra.mxu0 0.0
    %1393 = vmatprep.subr.mxu0 0.0
    %1394 = vmatpush2.msra.mxu0 0.0
    %1395 = vmatprep.subr.mxu0 0.0
    %1396 = vmatpush2.msra.mxu0 0.0
    %1397 = vmatprep.subr.mxu0 0.0
    %1398 = vmatpush2.msra.mxu0 0.0
    %1399 = vmatprep.subr.mxu0 0.0
    %1400 = vmatpush2.msra.mxu0 0.0
    %1401 = vmatprep.subr.mxu0 0.0
    %1402 = vmatpush2.msra.mxu0 0.0
    %1403 = vmatprep.subr.mxu0 0.0
    %1404 = vmatpush2.msra.mxu0 0.0
    %1405 = vmatprep.subr.mxu0 0.0
    %1406 = vmatpush2.msra.mxu0 0.0
    %1407 = vmatprep.mubr.f32.mxu0 0.0
    %1408 = vmatmul.mubr.f32.gmra.mxu0 %v1341
    %v1409 = vpop.f32.mrf.mxu0
    %v1410 = vadd.f32 0.0, %v1409
    %v1411 = vpop.f32.mrf.mxu0
    %1412 = vdwg.mxu0
    %1413 = vrot.lane.b32.xlu0 %v143, 40
    %v1414 = vpop.permute.xlu0 %1413
    %v1417 = vsel %vm149, %v1336, 0
    %1419 = vmatprep.subr.mxu0 0.0
    %1420 = vmatpush1.msra.mxu0 0.0
    %1421 = vmatprep.subr.mxu0 0.0
    %1422 = vmatpush1.msra.mxu0 0.0
    %1423 = vmatprep.subr.mxu0 0.0
    %1424 = vmatpush1.msra.mxu0 0.0
    %1425 = vmatprep.subr.mxu0 0.0
    %1426 = vmatpush1.msra.mxu0 0.0
    %1427 = vmatprep.subr.mxu0 0.0
    %1428 = vmatpush1.msra.mxu0 0.0
    %1429 = vmatprep.subr.mxu0 0.0
    %1430 = vmatpush1.msra.mxu0 0.0
    %1431 = vmatprep.subr.mxu0 0.0
    %1432 = vmatpush1.msra.mxu0 0.0
    %1433 = vmatprep.subr.mxu0 0.0
    %1434 = vmatpush1.msra.mxu0 0.0
    %1435 = vmatprep.subr.mxu0 0.0
    %1436 = vmatpush1.msra.mxu0 0.0
    %1437 = vmatprep.subr.mxu0 0.0
    %1438 = vmatpush1.msra.mxu0 0.0
    %1439 = vmatprep.subr.mxu0 0.0
    %1440 = vmatpush1.msra.mxu0 0.0
    %1441 = vmatprep.subr.mxu0 0.0
    %1442 = vmatpush1.msra.mxu0 0.0
    %1443 = vmatprep.subr.mxu0 0.0
    %1444 = vmatpush1.msra.mxu0 0.0
    %1445 = vmatprep.subr.mxu0 0.0
    %1446 = vmatpush1.msra.mxu0 0.0
    %1447 = vmatprep.subr.mxu0 0.0
    %1448 = vmatpush1.msra.mxu0 0.0
    %1449 = vmatprep.subr.mxu0 0.0
    %1450 = vmatpush1.msra.mxu0 %v1414
    %1451 = vmatprep.subr.mxu0 0.0
    %1452 = vmatpush2.msra.mxu0 0.0
    %1453 = vmatprep.subr.mxu0 0.0
    %1454 = vmatpush2.msra.mxu0 0.0
    %1455 = vmatprep.subr.mxu0 0.0
    %1456 = vmatpush2.msra.mxu0 0.0
    %1457 = vmatprep.subr.mxu0 0.0
    %1458 = vmatpush2.msra.mxu0 0.0
    %1459 = vmatprep.subr.mxu0 0.0
    %1460 = vmatpush2.msra.mxu0 0.0
    %1461 = vmatprep.subr.mxu0 0.0
    %1462 = vmatpush2.msra.mxu0 0.0
    %1463 = vmatprep.subr.mxu0 0.0
    %1464 = vmatpush2.msra.mxu0 0.0
    %1465 = vmatprep.subr.mxu0 0.0
    %1466 = vmatpush2.msra.mxu0 0.0
    %1467 = vmatprep.subr.mxu0 0.0
    %1468 = vmatpush2.msra.mxu0 0.0
    %1469 = vmatprep.subr.mxu0 0.0
    %1470 = vmatpush2.msra.mxu0 0.0
    %1471 = vmatprep.subr.mxu0 0.0
    %1472 = vmatpush2.msra.mxu0 0.0
    %1473 = vmatprep.subr.mxu0 0.0
    %1474 = vmatpush2.msra.mxu0 0.0
    %1475 = vmatprep.subr.mxu0 0.0
    %1476 = vmatpush2.msra.mxu0 0.0
    %1477 = vmatprep.subr.mxu0 0.0
    %1478 = vmatpush2.msra.mxu0 0.0
    %1479 = vmatprep.subr.mxu0 0.0
    %1480 = vmatpush2.msra.mxu0 0.0
    %1481 = vmatprep.subr.mxu0 0.0
    %1482 = vmatpush2.msra.mxu0 0.0
    %1483 = vmatprep.mubr.f32.mxu0 0.0
    %1484 = vmatmul.mubr.f32.gmra.mxu0 %v1417
    %v1485 = vpop.f32.mrf.mxu0
    %v1486 = vadd.f32 0.0, %v1485
    %v1487 = vpop.f32.mrf.mxu0
    %1488 = vdwg.mxu0
    %1491 = vrot.lane.b32.xlu0 %v738, 8
    %v1492 = vpop.permute.xlu0 %1491
    %1493 = vrot.lane.b32.xlu0 %v814, 8
    %v1494 = vpop.permute.xlu0 %1493
    %1499 = vrot.lane.b32.xlu0 %v1074, 16
    %v1500 = vpop.permute.xlu0 %1499
    %1501 = vrot.lane.b32.xlu0 %v1150, 16
    %v1502 = vpop.permute.xlu0 %1501
    %1507 = vrot.lane.b32.xlu0 %v1410, 24
    %v1508 = vpop.permute.xlu0 %1507
    %1509 = vrot.lane.b32.xlu0 %v1486, 24
    %v1510 = vpop.permute.xlu0 %1509
    %v1513 = vsel %vm149, %v402, %v1492
    %v1514 = vsel %vm149, %v478, %v1494
    %vm1515 = vcmask 130048
    %v1516 = vsel %vm1515, %v1513, %v1500
    %v1517 = vsel %vm1515, %v1514, %v1502
    %vm1518 = vcmask 195584
    %v1519 = vsel %vm1518, %v1516, %v1508
    %v1520 = vsel %vm1518, %v1517, %v1510
    %v1521 = vld [vmem:[%s3] sm:$0xff]
    %v1522 = vld [vmem:[%s3 + $0x8] sm:$0xff]
    %v1523 = vld [vmem:[%s3 + $0x10] sm:$0xff]
    %v1524 = vld [vmem:[%s3 + $0x18] sm:$0xff]
    %v1525 = vld [vmem:[%s4] sm:$0x1]
    %v1527 = vlaneseq
    %v1528 = vshrl.u32 %v1527, 7
    %v1529 = vsub.s32 0, %v1528
    %v1530 = vrot.slane %v1525, %v1529
    %v1533 = vsel %vm64, %v1519, 0
    %v1536 = vsel %vm64, %v1520, 0
    %1538 = vmatprep.subr.mxu0 0.0
    %1539 = vmatpush1.msra.mxu0 0.0
    %1540 = vmatprep.subr.mxu0 0.0
    %1541 = vmatpush1.msra.mxu0 0.0
    %1542 = vmatprep.subr.mxu0 0.0
    %1543 = vmatpush1.msra.mxu0 0.0
    %1544 = vmatprep.subr.mxu0 0.0
    %1545 = vmatpush1.msra.mxu0 0.0
    %1546 = vmatprep.subr.mxu0 0.0
    %1547 = vmatpush1.msra.mxu0 0.0
    %1548 = vmatprep.subr.mxu0 0.0
    %1549 = vmatpush1.msra.mxu0 0.0
    %1550 = vmatprep.subr.mxu0 0.0
    %1551 = vmatpush1.msra.mxu0 0.0
    %1552 = vmatprep.subr.mxu0 0.0
    %1553 = vmatpush1.msra.mxu0 0.0
    %1554 = vmatprep.subr.mxu0 0.0
    %1555 = vmatpush1.msra.mxu0 0.0
    %1556 = vmatprep.subr.mxu0 0.0
    %1557 = vmatpush1.msra.mxu0 0.0
    %1558 = vmatprep.subr.mxu0 0.0
    %1559 = vmatpush1.msra.mxu0 0.0
    %1560 = vmatprep.subr.mxu0 0.0
    %1561 = vmatpush1.msra.mxu0 0.0
    %1562 = vmatprep.subr.mxu0 0.0
    %1563 = vmatpush1.msra.mxu0 %v1524
    %1564 = vmatprep.subr.mxu0 0.0
    %1565 = vmatpush1.msra.mxu0 %v1523
    %1566 = vmatprep.subr.mxu0 0.0
    %1567 = vmatpush1.msra.mxu0 %v1522
    %1568 = vmatprep.subr.mxu0 0.0
    %1569 = vmatpush1.msra.mxu0 %v1521
    %1570 = vmatprep.subr.mxu0 0.0
    %1571 = vmatpush2.msra.mxu0 0.0
    %1572 = vmatprep.subr.mxu0 0.0
    %1573 = vmatpush2.msra.mxu0 0.0
    %1574 = vmatprep.subr.mxu0 0.0
    %1575 = vmatpush2.msra.mxu0 0.0
    %1576 = vmatprep.subr.mxu0 0.0
    %1577 = vmatpush2.msra.mxu0 0.0
    %1578 = vmatprep.subr.mxu0 0.0
    %1579 = vmatpush2.msra.mxu0 0.0
    %1580 = vmatprep.subr.mxu0 0.0
    %1581 = vmatpush2.msra.mxu0 0.0
    %1582 = vmatprep.subr.mxu0 0.0
    %1583 = vmatpush2.msra.mxu0 0.0
    %1584 = vmatprep.subr.mxu0 0.0
    %1585 = vmatpush2.msra.mxu0 0.0
    %1586 = vmatprep.subr.mxu0 0.0
    %1587 = vmatpush2.msra.mxu0 0.0
    %1588 = vmatprep.subr.mxu0 0.0
    %1589 = vmatpush2.msra.mxu0 0.0
    %1590 = vmatprep.subr.mxu0 0.0
    %1591 = vmatpush2.msra.mxu0 0.0
    %1592 = vmatprep.subr.mxu0 0.0
    %1593 = vmatpush2.msra.mxu0 0.0
    %1594 = vmatprep.subr.mxu0 0.0
    %1595 = vmatpush2.msra.mxu0 0.0
    %1596 = vmatprep.subr.mxu0 0.0
    %1597 = vmatpush2.msra.mxu0 0.0
    %1598 = vmatprep.subr.mxu0 0.0
    %1599 = vmatpush2.msra.mxu0 0.0
    %1600 = vmatprep.subr.mxu0 0.0
    %1601 = vmatpush2.msra.mxu0 0.0
    %1602 = vmatprep.mubr.f32.mxu0 0.0
    %1603 = vmatmul.mubr.f32.gmra.mxu0 %v1533
    %v1604 = vpop.f32.mrf.mxu0
    %v1605 = vadd.f32 %v1530, %v1604
    %v1606 = vpop.f32.mrf.mxu0
    %1607 = vmatprep.mubr.f32.mxu0 0.0
    %1608 = vmatmul.mubr.f32.gmra.mxu0 %v1536
    %v1609 = vpop.f32.mrf.mxu0
    %v1610 = vadd.f32 %v1530, %v1609
    %v1611 = vpop.f32.mrf.mxu0
    %1612 = vdwg.mxu0
    %v1613 = vadd.f32 %v51, %v1605
    %v1614 = vadd.f32 %v52, %v1610
    %v1615 = vld [vmem:[%s5] sm:$0x1]
    %v1616 = vld [vmem:[%s6] sm:$0x1]
    %v1617 = vsel %vm64, %v1613, 0.0
    %1618 = vadd.xlane.f32.xlu0 %v1617
    %v1619 = vpop.xlane.xlu0 %1618
    %v1620 = vsel %vm64, %v1614, 0.0
    %1621 = vadd.xlane.f32.xlu0 %v1620
    %v1622 = vpop.xlane.xlu0 %1621
    %v1623 = vrcp.pop 32.0
    %v1624 = vmul.f32 %v1619, %v1623
    %v1625 = vmul.f32 %v1622, %v1623
    %v1626 = vsub.f32 %v1613, %v1624
    %v1627 = vsub.f32 %v1614, %v1625
    %v1628 = vmul.f32 %v1626, %v1626
    %v1629 = vmul.f32 %v1627, %v1627
    %v1630 = vsel %vm64, %v1628, 0.0
    %1631 = vadd.xlane.f32.xlu0 %v1630
    %v1632 = vpop.xlane.xlu0 %1631
    %v1633 = vsel %vm64, %v1629, 0.0
    %1634 = vadd.xlane.f32.xlu0 %v1633
    %v1635 = vpop.xlane.xlu0 %1634
    %v1636 = vmul.f32 %v1632, %v1623
    %v1637 = vmul.f32 %v1635, %v1623
    %v1638 = vadd.f32 %v1636, 1e-05
    %v1639 = vadd.f32 %v1637, 1e-05
    %v1640 = vrsqrt.pop %v1638
    %v1641 = vrsqrt.pop %v1639
    %v1642 = vmul.f32 %v1626, %v1640
    %v1643 = vmul.f32 %v1627, %v1641
    %v1645 = vlaneseq
    %v1646 = vshrl.u32 %v1645, 7
    %v1647 = vsub.s32 0, %v1646
    %v1648 = vrot.slane %v1615, %v1647
    %v1650 = vmul.f32 %v1642, %v1648
    %v1651 = vmul.f32 %v1643, %v1648
    %v1653 = vlaneseq
    %v1654 = vshrl.u32 %v1653, 7
    %v1655 = vsub.s32 0, %v1654
    %v1656 = vrot.slane %v1616, %v1655
    %v1658 = vadd.f32 %v1650, %v1656
    %v1659 = vadd.f32 %v1651, %v1656
    %v1660 = vld [vmem:[%s7] sm:$0xff]
    %v1661 = vld [vmem:[%s7 + $0x8] sm:$0xff]
    %v1662 = vld [vmem:[%s7 + $0x10] sm:$0xff]
    %v1663 = vld [vmem:[%s7 + $0x18] sm:$0xff]
    %v1664 = vld [vmem:[%s7 + $0x80] sm:$0xff]
    %v1665 = vld [vmem:[%s7 + $0x88] sm:$0xff]
    %v1666 = vld [vmem:[%s7 + $0x90] sm:$0xff]
    %v1667 = vld [vmem:[%s7 + $0x98] sm:$0xff]
    %v1668 = vld [vmem:[%s7 + $0x100] sm:$0xff]
    %v1669 = vld [vmem:[%s7 + $0x108] sm:$0xff]
    %v1670 = vld [vmem:[%s7 + $0x110] sm:$0xff]
    %v1671 = vld [vmem:[%s7 + $0x118] sm:$0xff]
    %v1672 = vld [vmem:[%s7 + $0x180] sm:$0xff]
    %v1673 = vld [vmem:[%s7 + $0x188] sm:$0xff]
    %v1674 = vld [vmem:[%s7 + $0x190] sm:$0xff]
    %v1675 = vld [vmem:[%s7 + $0x198] sm:$0xff]
    %v1676 = vld [vmem:[%s8] sm:$0xf]
    %v1678 = vlaneseq
    %v1679 = vshrl.u32 %v1678, 7
    %v1680 = vsub.s32 0, %v1679
    %v1681 = vrot.slane %v1676, %v1680
    %v1682 = vlaneseq
    %v1683 = vshrl.u32 %v1682, 7
    %v1684 = vsub.s32 1, %v1683
    %v1685 = vrot.slane %v1676, %v1684
    %v1686 = vlaneseq
    %v1687 = vshrl.u32 %v1686, 7
    %v1688 = vsub.s32 2, %v1687
    %v1689 = vrot.slane %v1676, %v1688
    %v1690 = vlaneseq
    %v1691 = vshrl.u32 %v1690, 7
    %v1692 = vsub.s32 3, %v1691
    %v1693 = vrot.slane %v1676, %v1692
    %v1699 = vsel %vm64, %v1658, 0
    %v1702 = vsel %vm64, %v1659, 0
    %1704 = vmatprep.subr.mxu0 0.0
    %1705 = vmatpush1.msra.mxu0 0.0
    %1706 = vmatprep.subr.mxu0 0.0
    %1707 = vmatpush1.msra.mxu0 0.0
    %1708 = vmatprep.subr.mxu0 0.0
    %1709 = vmatpush1.msra.mxu0 0.0
    %1710 = vmatprep.subr.mxu0 0.0
    %1711 = vmatpush1.msra.mxu0 0.0
    %1712 = vmatprep.subr.mxu0 0.0
    %1713 = vmatpush1.msra.mxu0 0.0
    %1714 = vmatprep.subr.mxu0 0.0
    %1715 = vmatpush1.msra.mxu0 0.0
    %1716 = vmatprep.subr.mxu0 0.0
    %1717 = vmatpush1.msra.mxu0 0.0
    %1718 = vmatprep.subr.mxu0 0.0
    %1719 = vmatpush1.msra.mxu0 0.0
    %1720 = vmatprep.subr.mxu0 0.0
    %1721 = vmatpush1.msra.mxu0 0.0
    %1722 = vmatprep.subr.mxu0 0.0
    %1723 = vmatpush1.msra.mxu0 0.0
    %1724 = vmatprep.subr.mxu0 0.0
    %1725 = vmatpush1.msra.mxu0 0.0
    %1726 = vmatprep.subr.mxu0 0.0
    %1727 = vmatpush1.msra.mxu0 0.0
    %1728 = vmatprep.subr.mxu0 %v1673
    %1729 = vmatpush1.msra.mxu0 %v1672
    %1730 = vmatprep.subr.mxu0 %v1669
    %1731 = vmatpush1.msra.mxu0 %v1668
    %1732 = vmatprep.subr.mxu0 %v1665
    %1733 = vmatpush1.msra.mxu0 %v1664
    %1734 = vmatprep.subr.mxu0 %v1661
    %1735 = vmatpush1.msra.mxu0 %v1660
    %1736 = vmatprep.subr.mxu0 0.0
    %1737 = vmatpush2.msra.mxu0 0.0
    %1738 = vmatprep.subr.mxu0 0.0
    %1739 = vmatpush2.msra.mxu0 0.0
    %1740 = vmatprep.subr.mxu0 0.0
    %1741 = vmatpush2.msra.mxu0 0.0
    %1742 = vmatprep.subr.mxu0 0.0
    %1743 = vmatpush2.msra.mxu0 0.0
    %1744 = vmatprep.subr.mxu0 0.0
    %1745 = vmatpush2.msra.mxu0 0.0
    %1746 = vmatprep.subr.mxu0 0.0
    %1747 = vmatpush2.msra.mxu0 0.0
    %1748 = vmatprep.subr.mxu0 0.0
    %1749 = vmatpush2.msra.mxu0 0.0
    %1750 = vmatprep.subr.mxu0 0.0
    %1751 = vmatpush2.msra.mxu0 0.0
    %1752 = vmatprep.subr.mxu0 0.0
    %1753 = vmatpush2.msra.mxu0 0.0
    %1754 = vmatprep.subr.mxu0 0.0
    %1755 = vmatpush2.msra.mxu0 0.0
    %1756 = vmatprep.subr.mxu0 0.0
    %1757 = vmatpush2.msra.mxu0 0.0
    %1758 = vmatprep.subr.mxu0 0.0
    %1759 = vmatpush2.msra.mxu0 0.0
    %1760 = vmatprep.subr.mxu0 0.0
    %1761 = vmatpush2.msra.mxu0 0.0
    %1762 = vmatprep.subr.mxu0 0.0
    %1763 = vmatpush2.msra.mxu0 0.0
    %1764 = vmatprep.subr.mxu0 0.0
    %1765 = vmatpush2.msra.mxu0 0.0
    %1766 = vmatprep.subr.mxu0 0.0
    %1767 = vmatpush2.msra.mxu0 0.0
    %1768 = vmatprep.mubr.f32.mxu0 0.0
    %1769 = vmatmul.mubr.f32.gmra.mxu0 %v1699
    %v1770 = vpop.f32.mrf.mxu0
    %v1771 = vadd.f32 %v1681, %v1770
    %v1772 = vpop.f32.mrf.mxu0
    %v1773 = vadd.f32 %v1685, %v1772
    %1774 = vmatprep.mubr.f32.mxu0 0.0
    %1775 = vmatmul.mubr.f32.gmra.mxu0 %v1702
    %v1776 = vpop.f32.mrf.mxu0
    %v1777 = vadd.f32 %v1681, %v1776
    %v1778 = vpop.f32.mrf.mxu0
    %v1779 = vadd.f32 %v1685, %v1778
    %1780 = vdwg.mxu0
    %1781 = vmatprep.subr.mxu0 0.0
    %1782 = vmatpush1.msra.mxu0 0.0
    %1783 = vmatprep.subr.mxu0 0.0
    %1784 = vmatpush1.msra.mxu0 0.0
    %1785 = vmatprep.subr.mxu0 0.0
    %1786 = vmatpush1.msra.mxu0 0.0
    %1787 = vmatprep.subr.mxu0 0.0
    %1788 = vmatpush1.msra.mxu0 0.0
    %1789 = vmatprep.subr.mxu0 0.0
    %1790 = vmatpush1.msra.mxu0 0.0
    %1791 = vmatprep.subr.mxu0 0.0
    %1792 = vmatpush1.msra.mxu0 0.0
    %1793 = vmatprep.subr.mxu0 0.0
    %1794 = vmatpush1.msra.mxu0 0.0
    %1795 = vmatprep.subr.mxu0 0.0
    %1796 = vmatpush1.msra.mxu0 0.0
    %1797 = vmatprep.subr.mxu0 0.0
    %1798 = vmatpush1.msra.mxu0 0.0
    %1799 = vmatprep.subr.mxu0 0.0
    %1800 = vmatpush1.msra.mxu0 0.0
    %1801 = vmatprep.subr.mxu0 0.0
    %1802 = vmatpush1.msra.mxu0 0.0
    %1803 = vmatprep.subr.mxu0 0.0
    %1804 = vmatpush1.msra.mxu0 0.0
    %1805 = vmatprep.subr.mxu0 %v1675
    %1806 = vmatpush1.msra.mxu0 %v1674
    %1807 = vmatprep.subr.mxu0 %v1671
    %1808 = vmatpush1.msra.mxu0 %v1670
    %1809 = vmatprep.subr.mxu0 %v1667
    %1810 = vmatpush1.msra.mxu0 %v1666
    %1811 = vmatprep.subr.mxu0 %v1663
    %1812 = vmatpush1.msra.mxu0 %v1662
    %1813 = vmatprep.subr.mxu0 0.0
    %1814 = vmatpush2.msra.mxu0 0.0
    %1815 = vmatprep.subr.mxu0 0.0
    %1816 = vmatpush2.msra.mxu0 0.0
    %1817 = vmatprep.subr.mxu0 0.0
    %1818 = vmatpush2.msra.mxu0 0.0
    %1819 = vmatprep.subr.mxu0 0.0
    %1820 = vmatpush2.msra.mxu0 0.0
    %1821 = vmatprep.subr.mxu0 0.0
    %1822 = vmatpush2.msra.mxu0 0.0
    %1823 = vmatprep.subr.mxu0 0.0
    %1824 = vmatpush2.msra.mxu0 0.0
    %1825 = vmatprep.subr.mxu0 0.0
    %1826 = vmatpush2.msra.mxu0 0.0
    %1827 = vmatprep.subr.mxu0 0.0
    %1828 = vmatpush2.msra.mxu0 0.0
    %1829 = vmatprep.subr.mxu0 0.0
    %1830 = vmatpush2.msra.mxu0 0.0
    %1831 = vmatprep.subr.mxu0 0.0
    %1832 = vmatpush2.msra.mxu0 0.0
    %1833 = vmatprep.subr.mxu0 0.0
    %1834 = vmatpush2.msra.mxu0 0.0
    %1835 = vmatprep.subr.mxu0 0.0
    %1836 = vmatpush2.msra.mxu0 0.0
    %1837 = vmatprep.subr.mxu0 0.0
    %1838 = vmatpush2.msra.mxu0 0.0
    %1839 = vmatprep.subr.mxu0 0.0
    %1840 = vmatpush2.msra.mxu0 0.0
    %1841 = vmatprep.subr.mxu0 0.0
    %1842 = vmatpush2.msra.mxu0 0.0
    %1843 = vmatprep.subr.mxu0 0.0
    %1844 = vmatpush2.msra.mxu0 0.0
    %1845 = vmatprep.mubr.f32.mxu0 0.0
    %1846 = vmatmul.mubr.f32.gmra.mxu0 %v1699
    %v1847 = vpop.f32.mrf.mxu0
    %v1848 = vadd.f32 %v1689, %v1847
    %v1849 = vpop.f32.mrf.mxu0
    %v1850 = vadd.f32 %v1693, %v1849
    %1851 = vmatprep.mubr.f32.mxu0 0.0
    %1852 = vmatmul.mubr.f32.gmra.mxu0 %v1702
    %v1853 = vpop.f32.mrf.mxu0
    %v1854 = vadd.f32 %v1689, %v1853
    %v1855 = vpop.f32.mrf.mxu0
    %v1856 = vadd.f32 %v1693, %v1855
    %1857 = vdwg.mxu0
    %v1858 = vmax.f32 %v1771, 0.0
    %v1859 = vmax.f32 %v1773, 0.0
    %v1860 = vmax.f32 %v1848, 0.0
    %v1861 = vmax.f32 %v1850, 0.0
    %v1862 = vmax.f32 %v1777, 0.0
    %v1863 = vmax.f32 %v1779, 0.0
    %v1864 = vmax.f32 %v1854, 0.0
    %v1865 = vmax.f32 %v1856, 0.0
    %v1866 = vld [vmem:[%s9] sm:$0xff]
    %v1867 = vld [vmem:[%s9 + $0x8] sm:$0xff]
    %v1868 = vld [vmem:[%s9 + $0x10] sm:$0xff]
    %v1869 = vld [vmem:[%s9 + $0x18] sm:$0xff]
    %v1870 = vld [vmem:[%s9 + $0x20] sm:$0xff]
    %v1871 = vld [vmem:[%s9 + $0x28] sm:$0xff]
    %v1872 = vld [vmem:[%s9 + $0x30] sm:$0xff]
    %v1873 = vld [vmem:[%s9 + $0x38] sm:$0xff]
    %v1874 = vld [vmem:[%s9 + $0x40] sm:$0xff]
    %v1875 = vld [vmem:[%s9 + $0x48] sm:$0xff]
    %v1876 = vld [vmem:[%s9 + $0x50] sm:$0xff]
    %v1877 = vld [vmem:[%s9 + $0x58] sm:$0xff]
    %v1878 = vld [vmem:[%s9 + $0x60] sm:$0xff]
    %v1879 = vld [vmem:[%s9 + $0x68] sm:$0xff]
    %v1880 = vld [vmem:[%s9 + $0x70] sm:$0xff]
    %v1881 = vld [vmem:[%s9 + $0x78] sm:$0xff]
    %v1882 = vld [vmem:[%s9 + $0x80] sm:$0xff]
    %v1883 = vld [vmem:[%s9 + $0x88] sm:$0xff]
    %v1884 = vld [vmem:[%s9 + $0x90] sm:$0xff]
    %v1885 = vld [vmem:[%s9 + $0x98] sm:$0xff]
    %v1886 = vld [vmem:[%s9 + $0xa0] sm:$0xff]
    %v1887 = vld [vmem:[%s9 + $0xa8] sm:$0xff]
    %v1888 = vld [vmem:[%s9 + $0xb0] sm:$0xff]
    %v1889 = vld [vmem:[%s9 + $0xb8] sm:$0xff]
    %v1890 = vld [vmem:[%s9 + $0xc0] sm:$0xff]
    %v1891 = vld [vmem:[%s9 + $0xc8] sm:$0xff]
    %v1892 = vld [vmem:[%s9 + $0xd0] sm:$0xff]
    %v1893 = vld [vmem:[%s9 + $0xd8] sm:$0xff]
    %v1894 = vld [vmem:[%s9 + $0xe0] sm:$0xff]
    %v1895 = vld [vmem:[%s9 + $0xe8] sm:$0xff]
    %v1896 = vld [vmem:[%s9 + $0xf0] sm:$0xff]
    %v1897 = vld [vmem:[%s9 + $0xf8] sm:$0xff]
    %v1898 = vld [vmem:[%s9 + $0x100] sm:$0xff]
    %v1899 = vld [vmem:[%s9 + $0x108] sm:$0xff]
    %v1900 = vld [vmem:[%s9 + $0x110] sm:$0xff]
    %v1901 = vld [vmem:[%s9 + $0x118] sm:$0xff]
    %v1902 = vld [vmem:[%s9 + $0x120] sm:$0xff]
    %v1903 = vld [vmem:[%s9 + $0x128] sm:$0xff]
    %v1904 = vld [vmem:[%s9 + $0x130] sm:$0xff]
    %v1905 = vld [vmem:[%s9 + $0x138] sm:$0xff]
    %v1906 = vld [vmem:[%s9 + $0x140] sm:$0xff]
    %v1907 = vld [vmem:[%s9 + $0x148] sm:$0xff]
    %v1908 = vld [vmem:[%s9 + $0x150] sm:$0xff]
    %v1909 = vld [vmem:[%s9 + $0x158] sm:$0xff]
    %v1910 = vld [vmem:[%s9 + $0x160] sm:$0xff]
    %v1911 = vld [vmem:[%s9 + $0x168] sm:$0xff]
    %v1912 = vld [vmem:[%s9 + $0x170] sm:$0xff]
    %v1913 = vld [vmem:[%s9 + $0x178] sm:$0xff]
    %v1914 = vld [vmem:[%s9 + $0x180] sm:$0xff]
    %v1915 = vld [vmem:[%s9 + $0x188] sm:$0xff]
    %v1916 = vld [vmem:[%s9 + $0x190] sm:$0xff]
    %v1917 = vld [vmem:[%s9 + $0x198] sm:$0xff]
    %v1918 = vld [vmem:[%s9 + $0x1a0] sm:$0xff]
    %v1919 = vld [vmem:[%s9 + $0x1a8] sm:$0xff]
    %v1920 = vld [vmem:[%s9 + $0x1b0] sm:$0xff]
    %v1921 = vld [vmem:[%s9 + $0x1b8] sm:$0xff]
    %v1922 = vld [vmem:[%s9 + $0x1c0] sm:$0xff]
    %v1923 = vld [vmem:[%s9 + $0x1c8] sm:$0xff]
    %v1924 = vld [vmem:[%s9 + $0x1d0] sm:$0xff]
    %v1925 = vld [vmem:[%s9 + $0x1d8] sm:$0xff]
    %v1926 = vld [vmem:[%s9 + $0x1e0] sm:$0xff]
    %v1927 = vld [vmem:[%s9 + $0x1e8] sm:$0xff]
    %v1928 = vld [vmem:[%s9 + $0x1f0] sm:$0xff]
    %v1929 = vld [vmem:[%s9 + $0x1f8] sm:$0xff]
    %v1930 = vld [vmem:[%s7 + $0x20] sm:$0xff]
    %v1931 = vld [vmem:[%s7 + $0x28] sm:$0xff]
    %v1932 = vld [vmem:[%s7 + $0x30] sm:$0xff]
    %v1933 = vld [vmem:[%s7 + $0x38] sm:$0xff]
    %v1934 = vld [vmem:[%s7 + $0xa0] sm:$0xff]
    %v1935 = vld [vmem:[%s7 + $0xa8] sm:$0xff]
    %v1936 = vld [vmem:[%s7 + $0xb0] sm:$0xff]
    %v1937 = vld [vmem:[%s7 + $0xb8] sm:$0xff]
    %v1938 = vld [vmem:[%s7 + $0x120] sm:$0xff]
    %v1939 = vld [vmem:[%s7 + $0x128] sm:$0xff]
    %v1940 = vld [vmem:[%s7 + $0x130] sm:$0xff]
    %v1941 = vld [vmem:[%s7 + $0x138] sm:$0xff]
    %v1942 = vld [vmem:[%s7 + $0x1a0] sm:$0xff]
    %v1943 = vld [vmem:[%s7 + $0x1a8] sm:$0xff]
    %v1944 = vld [vmem:[%s7 + $0x1b0] sm:$0xff]
    %v1945 = vld [vmem:[%s7 + $0x1b8] sm:$0xff]
    %v1946 = vld [vmem:[%s8 + $0x4] sm:$0xf]
    %v1948 = vlaneseq
    %v1949 = vshrl.u32 %v1948, 7
    %v1950 = vsub.s32 0, %v1949
    %v1951 = vrot.slane %v1946, %v1950
    %v1952 = vlaneseq
    %v1953 = vshrl.u32 %v1952, 7
    %v1954 = vsub.s32 1, %v1953
    %v1955 = vrot.slane %v1946, %v1954
    %v1956 = vlaneseq
    %v1957 = vshrl.u32 %v1956, 7
    %v1958 = vsub.s32 2, %v1957
    %v1959 = vrot.slane %v1946, %v1958
    %v1960 = vlaneseq
    %v1961 = vshrl.u32 %v1960, 7
    %v1962 = vsub.s32 3, %v1961
    %v1963 = vrot.slane %v1946, %v1962
    %1968 = vmatprep.subr.mxu0 0.0
    %1969 = vmatpush1.msra.mxu0 0.0
    %1970 = vmatprep.subr.mxu0 0.0
    %1971 = vmatpush1.msra.mxu0 0.0
    %1972 = vmatprep.subr.mxu0 0.0
    %1973 = vmatpush1.msra.mxu0 0.0
    %1974 = vmatprep.subr.mxu0 0.0
    %1975 = vmatpush1.msra.mxu0 0.0
    %1976 = vmatprep.subr.mxu0 0.0
    %1977 = vmatpush1.msra.mxu0 0.0
    %1978 = vmatprep.subr.mxu0 0.0
    %1979 = vmatpush1.msra.mxu0 0.0
    %1980 = vmatprep.subr.mxu0 0.0
    %1981 = vmatpush1.msra.mxu0 0.0
    %1982 = vmatprep.subr.mxu0 0.0
    %1983 = vmatpush1.msra.mxu0 0.0
    %1984 = vmatprep.subr.mxu0 0.0
    %1985 = vmatpush1.msra.mxu0 0.0
    %1986 = vmatprep.subr.mxu0 0.0
    %1987 = vmatpush1.msra.mxu0 0.0
    %1988 = vmatprep.subr.mxu0 0.0
    %1989 = vmatpush1.msra.mxu0 0.0
    %1990 = vmatprep.subr.mxu0 0.0
    %1991 = vmatpush1.msra.mxu0 0.0
    %1992 = vmatprep.subr.mxu0 %v1943
    %1993 = vmatpush1.msra.mxu0 %v1942
    %1994 = vmatprep.subr.mxu0 %v1939
    %1995 = vmatpush1.msra.mxu0 %v1938
    %1996 = vmatprep.subr.mxu0 %v1935
    %1997 = vmatpush1.msra.mxu0 %v1934
    %1998 = vmatprep.subr.mxu0 %v1931
    %1999 = vmatpush1.msra.mxu0 %v1930
    %2000 = vmatprep.subr.mxu0 0.0
    %2001 = vmatpush2.msra.mxu0 0.0
    %2002 = vmatprep.subr.mxu0 0.0
    %2003 = vmatpush2.msra.mxu0 0.0
    %2004 = vmatprep.subr.mxu0 0.0
    %2005 = vmatpush2.msra.mxu0 0.0
    %2006 = vmatprep.subr.mxu0 0.0
    %2007 = vmatpush2.msra.mxu0 0.0
    %2008 = vmatprep.subr.mxu0 0.0
    %2009 = vmatpush2.msra.mxu0 0.0
    %2010 = vmatprep.subr.mxu0 0.0
    %2011 = vmatpush2.msra.mxu0 0.0
    %2012 = vmatprep.subr.mxu0 0.0
    %2013 = vmatpush2.msra.mxu0 0.0
    %2014 = vmatprep.subr.mxu0 0.0
    %2015 = vmatpush2.msra.mxu0 0.0
    %2016 = vmatprep.subr.mxu0 0.0
    %2017 = vmatpush2.msra.mxu0 0.0
    %2018 = vmatprep.subr.mxu0 0.0
    %2019 = vmatpush2.msra.mxu0 0.0
    %2020 = vmatprep.subr.mxu0 0.0
    %2021 = vmatpush2.msra.mxu0 0.0
    %2022 = vmatprep.subr.mxu0 0.0
    %2023 = vmatpush2.msra.mxu0 0.0
    %2024 = vmatprep.subr.mxu0 0.0
    %2025 = vmatpush2.msra.mxu0 0.0
    %2026 = vmatprep.subr.mxu0 0.0
    %2027 = vmatpush2.msra.mxu0 0.0
    %2028 = vmatprep.subr.mxu0 0.0
    %2029 = vmatpush2.msra.mxu0 0.0
    %2030 = vmatprep.subr.mxu0 0.0
    %2031 = vmatpush2.msra.mxu0 0.0
    %2032 = vmatprep.mubr.f32.mxu0 0.0
    %2033 = vmatmul.mubr.f32.gmra.mxu0 %v1699
    %v2034 = vpop.f32.mrf.mxu0
    %v2035 = vadd.f32 %v1951, %v2034
    %v2036 = vpop.f32.mrf.mxu0
    %v2037 = vadd.f32 %v1955, %v2036
    %2038 = vmatprep.mubr.f32.mxu0 0.0
    %2039 = vmatmul.mubr.f32.gmra.mxu0 %v1702
    %v2040 = vpop.f32.mrf.mxu0
    %v2041 = vadd.f32 %v1951, %v2040
    %v2042 = vpop.f32.mrf.mxu0
    %v2043 = vadd.f32 %v1955, %v2042
    %2044 = vdwg.mxu0
    %2045 = vmatprep.subr.mxu0 0.0
    %2046 = vmatpush1.msra.mxu0 0.0
    %2047 = vmatprep.subr.mxu0 0.0
    %2048 = vmatpush1.msra.mxu0 0.0
    %2049 = vmatprep.subr.mxu0 0.0
    %2050 = vmatpush1.msra.mxu0 0.0
    %2051 = vmatprep.subr.mxu0 0.0
    %2052 = vmatpush1.msra.mxu0 0.0
    %2053 = vmatprep.subr.mxu0 0.0
    %2054 = vmatpush1.msra.mxu0 0.0
    %2055 = vmatprep.subr.mxu0 0.0
    %2056 = vmatpush1.msra.mxu0 0.0
    %2057 = vmatprep.subr.mxu0 0.0
    %2058 = vmatpush1.msra.mxu0 0.0
    %2059 = vmatprep.subr.mxu0 0.0
    %2060 = vmatpush1.msra.mxu0 0.0
    %2061 = vmatprep.subr.mxu0 0.0
    %2062 = vmatpush1.msra.mxu0 0.0
    %2063 = vmatprep.subr.mxu0 0.0
    %2064 = vmatpush1.msra.mxu0 0.0
    %2065 = vmatprep.subr.mxu0 0.0
    %2066 = vmatpush1.msra.mxu0 0.0
    %2067 = vmatprep.subr.mxu0 0.0
    %2068 = vmatpush1.msra.mxu0 0.0
    %2069 = vmatprep.subr.mxu0 %v1945
    %2070 = vmatpush1.msra.mxu0 %v1944
    %2071 = vmatprep.subr.mxu0 %v1941
    %2072 = vmatpush1.msra.mxu0 %v1940
    %2073 = vmatprep.subr.mxu0 %v1937
    %2074 = vmatpush1.msra.mxu0 %v1936
    %2075 = vmatprep.subr.mxu0 %v1933
    %2076 = vmatpush1.msra.mxu0 %v1932
    %2077 = vmatprep.subr.mxu0 0.0
    %2078 = vmatpush2.msra.mxu0 0.0
    %2079 = vmatprep.subr.mxu0 0.0
    %2080 = vmatpush2.msra.mxu0 0.0
    %2081 = vmatprep.subr.mxu0 0.0
    %2082 = vmatpush2.msra.mxu0 0.0
    %2083 = vmatprep.subr.mxu0 0.0
    %2084 = vmatpush2.msra.mxu0 0.0
    %2085 = vmatprep.subr.mxu0 0.0
    %2086 = vmatpush2.msra.mxu0 0.0
    %2087 = vmatprep.subr.mxu0 0.0
    %2088 = vmatpush2.msra.mxu0 0.0
    %2089 = vmatprep.subr.mxu0 0.0
    %2090 = vmatpush2.msra.mxu0 0.0
    %2091 = vmatprep.subr.mxu0 0.0
    %2092 = vmatpush2.msra.mxu0 0.0
    %2093 = vmatprep.subr.mxu0 0.0
    %2094 = vmatpush2.msra.mxu0 0.0
    %2095 = vmatprep.subr.mxu0 0.0
    %2096 = vmatpush2.msra.mxu0 0.0
    %2097 = vmatprep.subr.mxu0 0.0
    %2098 = vmatpush2.msra.mxu0 0.0
    %2099 = vmatprep.subr.mxu0 0.0
    %2100 = vmatpush2.msra.mxu0 0.0
    %2101 = vmatprep.subr.mxu0 0.0
    %2102 = vmatpush2.msra.mxu0 0.0
    %2103 = vmatprep.subr.mxu0 0.0
    %2104 = vmatpush2.msra.mxu0 0.0
    %2105 = vmatprep.subr.mxu0 0.0
    %2106 = vmatpush2.msra.mxu0 0.0
    %2107 = vmatprep.subr.mxu0 0.0
    %2108 = vmatpush2.msra.mxu0 0.0
    %2109 = vmatprep.mubr.f32.mxu0 0.0
    %2110 = vmatmul.mubr.f32.gmra.mxu0 %v1699
    %v2111 = vpop.f32.mrf.mxu0
    %v2112 = vadd.f32 %v1959, %v2111
    %v2113 = vpop.f32.mrf.mxu0
    %v2114 = vadd.f32 %v1963, %v2113
    %2115 = vmatprep.mubr.f32.mxu0 0.0
    %2116 = vmatmul.mubr.f32.gmra.mxu0 %v1702
    %v2117 = vpop.f32.mrf.mxu0
    %v2118 = vadd.f32 %v1959, %v2117
    %v2119 = vpop.f32.mrf.mxu0
    %v2120 = vadd.f32 %v1963, %v2119
    %2121 = vdwg.mxu0
    %v2122 = vmax.f32 %v2035, 0.0
    %v2123 = vmax.f32 %v2037, 0.0
    %v2124 = vmax.f32 %v2112, 0.0
    %v2125 = vmax.f32 %v2114, 0.0
    %v2126 = vmax.f32 %v2041, 0.0
    %v2127 = vmax.f32 %v2043, 0.0
    %v2128 = vmax.f32 %v2118, 0.0
    %v2129 = vmax.f32 %v2120, 0.0
    %v2130 = vld [vmem:[%s9 + $0x200] sm:$0xff]
    %v2131 = vld [vmem:[%s9 + $0x208] sm:$0xff]
    %v2132 = vld [vmem:[%s9 + $0x210] sm:$0xff]
    %v2133 = vld [vmem:[%s9 + $0x218] sm:$0xff]
    %v2134 = vld [vmem:[%s9 + $0x220] sm:$0xff]
    %v2135 = vld [vmem:[%s9 + $0x228] sm:$0xff]
    %v2136 = vld [vmem:[%s9 + $0x230] sm:$0xff]
    %v2137 = vld [vmem:[%s9 + $0x238] sm:$0xff]
    %v2138 = vld [vmem:[%s9 + $0x240] sm:$0xff]
    %v2139 = vld [vmem:[%s9 + $0x248] sm:$0xff]
    %v2140 = vld [vmem:[%s9 + $0x250] sm:$0xff]
    %v2141 = vld [vmem:[%s9 + $0x258] sm:$0xff]
    %v2142 = vld [vmem:[%s9 + $0x260] sm:$0xff]
    %v2143 = vld [vmem:[%s9 + $0x268] sm:$0xff]
    %v2144 = vld [vmem:[%s9 + $0x270] sm:$0xff]
    %v2145 = vld [vmem:[%s9 + $0x278] sm:$0xff]
    %v2146 = vld [vmem:[%s9 + $0x280] sm:$0xff]
    %v2147 = vld [vmem:[%s9 + $0x288] sm:$0xff]
    %v2148 = vld [vmem:[%s9 + $0x290] sm:$0xff]
    %v2149 = vld [vmem:[%s9 + $0x298] sm:$0xff]
    %v2150 = vld [vmem:[%s9 + $0x2a0] sm:$0xff]
    %v2151 = vld [vmem:[%s9 + $0x2a8] sm:$0xff]
    %v2152 = vld [vmem:[%s9 + $0x2b0] sm:$0xff]
    %v2153 = vld [vmem:[%s9 + $0x2b8] sm:$0xff]
    %v2154 = vld [vmem:[%s9 + $0x2c0] sm:$0xff]
    %v2155 = vld [vmem:[%s9 + $0x2c8] sm:$0xff]
    %v2156 = vld [vmem:[%s9 + $0x2d0] sm:$0xff]
    %v2157 = vld [vmem:[%s9 + $0x2d8] sm:$0xff]
    %v2158 = vld [vmem:[%s9 + $0x2e0] sm:$0xff]
    %v2159 = vld [vmem:[%s9 + $0x2e8] sm:$0xff]
    %v2160 = vld [vmem:[%s9 + $0x2f0] sm:$0xff]
    %v2161 = vld [vmem:[%s9 + $0x2f8] sm:$0xff]
    %v2162 = vld [vmem:[%s9 + $0x300] sm:$0xff]
    %v2163 = vld [vmem:[%s9 + $0x308] sm:$0xff]
    %v2164 = vld [vmem:[%s9 + $0x310] sm:$0xff]
    %v2165 = vld [vmem:[%s9 + $0x318] sm:$0xff]
    %v2166 = vld [vmem:[%s9 + $0x320] sm:$0xff]
    %v2167 = vld [vmem:[%s9 + $0x328] sm:$0xff]
    %v2168 = vld [vmem:[%s9 + $0x330] sm:$0xff]
    %v2169 = vld [vmem:[%s9 + $0x338] sm:$0xff]
    %v2170 = vld [vmem:[%s9 + $0x340] sm:$0xff]
    %v2171 = vld [vmem:[%s9 + $0x348] sm:$0xff]
    %v2172 = vld [vmem:[%s9 + $0x350] sm:$0xff]
    %v2173 = vld [vmem:[%s9 + $0x358] sm:$0xff]
    %v2174 = vld [vmem:[%s9 + $0x360] sm:$0xff]
    %v2175 = vld [vmem:[%s9 + $0x368] sm:$0xff]
    %v2176 = vld [vmem:[%s9 + $0x370] sm:$0xff]
    %v2177 = vld [vmem:[%s9 + $0x378] sm:$0xff]
    %v2178 = vld [vmem:[%s9 + $0x380] sm:$0xff]
    %v2179 = vld [vmem:[%s9 + $0x388] sm:$0xff]
    %v2180 = vld [vmem:[%s9 + $0x390] sm:$0xff]
    %v2181 = vld [vmem:[%s9 + $0x398] sm:$0xff]
    %v2182 = vld [vmem:[%s9 + $0x3a0] sm:$0xff]
    %v2183 = vld [vmem:[%s9 + $0x3a8] sm:$0xff]
    %v2184 = vld [vmem:[%s9 + $0x3b0] sm:$0xff]
    %v2185 = vld [vmem:[%s9 + $0x3b8] sm:$0xff]
    %v2186 = vld [vmem:[%s9 + $0x3c0] sm:$0xff]
    %v2187 = vld [vmem:[%s9 + $0x3c8] sm:$0xff]
    %v2188 = vld [vmem:[%s9 + $0x3d0] sm:$0xff]
    %v2189 = vld [vmem:[%s9 + $0x3d8] sm:$0xff]
    %v2190 = vld [vmem:[%s9 + $0x3e0] sm:$0xff]
    %v2191 = vld [vmem:[%s9 + $0x3e8] sm:$0xff]
    %v2192 = vld [vmem:[%s9 + $0x3f0] sm:$0xff]
    %v2193 = vld [vmem:[%s9 + $0x3f8] sm:$0xff]
    %2194 = vmatprep.subr.mxu0 0.0
    %2195 = vmatpush1.msra.mxu0 %v2145
    %2196 = vmatprep.subr.mxu0 0.0
    %2197 = vmatpush1.msra.mxu0 %v2144
    %2198 = vmatprep.subr.mxu0 0.0
    %2199 = vmatpush1.msra.mxu0 %v2143
    %2200 = vmatprep.subr.mxu0 0.0
    %2201 = vmatpush1.msra.mxu0 %v2142
    %2202 = vmatprep.subr.mxu0 0.0
    %2203 = vmatpush1.msra.mxu0 %v2141
    %2204 = vmatprep.subr.mxu0 0.0
    %2205 = vmatpush1.msra.mxu0 %v2140
    %2206 = vmatprep.subr.mxu0 0.0
    %2207 = vmatpush1.msra.mxu0 %v2139
    %2208 = vmatprep.subr.mxu0 0.0
    %2209 = vmatpush1.msra.mxu0 %v2138
    %2210 = vmatprep.subr.mxu0 0.0
    %2211 = vmatpush1.msra.mxu0 %v2137
    %2212 = vmatprep.subr.mxu0 0.0
    %2213 = vmatpush1.msra.mxu0 %v2136
    %2214 = vmatprep.subr.mxu0 0.0
    %2215 = vmatpush1.msra.mxu0 %v2135
    %2216 = vmatprep.subr.mxu0 0.0
    %2217 = vmatpush1.msra.mxu0 %v2134
    %2218 = vmatprep.subr.mxu0 0.0
    %2219 = vmatpush1.msra.mxu0 %v2133
    %2220 = vmatprep.subr.mxu0 0.0
    %2221 = vmatpush1.msra.mxu0 %v2132
    %2222 = vmatprep.subr.mxu0 0.0
    %2223 = vmatpush1.msra.mxu0 %v2131
    %2224 = vmatprep.subr.mxu0 0.0
    %2225 = vmatpush1.msra.mxu0 %v2130
    %2226 = vmatprep.subr.mxu0 0.0
    %2227 = vmatpush2.msra.mxu0 %v2161
    %2228 = vmatprep.subr.mxu0 0.0
    %2229 = vmatpush2.msra.mxu0 %v2160
    %2230 = vmatprep.subr.mxu0 0.0
    %2231 = vmatpush2.msra.mxu0 %v2159
    %2232 = vmatprep.subr.mxu0 0.0
    %2233 = vmatpush2.msra.mxu0 %v2158
    %2234 = vmatprep.subr.mxu0 0.0
    %2235 = vmatpush2.msra.mxu0 %v2157
    %2236 = vmatprep.subr.mxu0 0.0
    %2237 = vmatpush2.msra.mxu0 %v2156
    %2238 = vmatprep.subr.mxu0 0.0
    %2239 = vmatpush2.msra.mxu0 %v2155
    %2240 = vmatprep.subr.mxu0 0.0
    %2241 = vmatpush2.msra.mxu0 %v2154
    %2242 = vmatprep.subr.mxu0 0.0
    %2243 = vmatpush2.msra.mxu0 %v2153
    %2244 = vmatprep.subr.mxu0 0.0
    %2245 = vmatpush2.msra.mxu0 %v2152
    %2246 = vmatprep.subr.mxu0 0.0
    %2247 = vmatpush2.msra.mxu0 %v2151
    %2248 = vmatprep.subr.mxu0 0.0
    %2249 = vmatpush2.msra.mxu0 %v2150
    %2250 = vmatprep.subr.mxu0 0.0
    %2251 = vmatpush2.msra.mxu0 %v2149
    %2252 = vmatprep.subr.mxu0 0.0
    %2253 = vmatpush2.msra.mxu0 %v2148
    %2254 = vmatprep.subr.mxu0 0.0
    %2255 = vmatpush2.msra.mxu0 %v2147
    %2256 = vmatprep.subr.mxu0 0.0
    %2257 = vmatpush2.msra.mxu0 %v2146
    %2258 = vmatprep.mubr.f32.mxu0 %v2123
    %2259 = vmatmul.mubr.f32.gmra.mxu0 %v2122
    %v2260 = vpop.f32.mrf.mxu0
    %v2261 = vadd.f32 0.0, %v2260
    %v2262 = vpop.f32.mrf.mxu0
    %2263 = vmatprep.mubr.f32.mxu0 %v2127
    %2264 = vmatmul.mubr.f32.gmra.mxu0 %v2126
    %v2265 = vpop.f32.mrf.mxu0
    %v2266 = vadd.f32 0.0, %v2265
    %v2267 = vpop.f32.mrf.mxu0
    %2268 = vdwg.mxu0
    %2269 = vmatprep.subr.mxu0 0.0
    %2270 = vmatpush1.msra.mxu0 %v2177
    %2271 = vmatprep.subr.mxu0 0.0
    %2272 = vmatpush1.msra.mxu0 %v2176
    %2273 = vmatprep.subr.mxu0 0.0
    %2274 = vmatpush1.msra.mxu0 %v2175
    %2275 = vmatprep.subr.mxu0 0.0
    %2276 = vmatpush1.msra.mxu0 %v2174
    %2277 = vmatprep.subr.mxu0 0.0
    %2278 = vmatpush1.msra.mxu0 %v2173
    %2279 = vmatprep.subr.mxu0 0.0
    %2280 = vmatpush1.msra.mxu0 %v2172
    %2281 = vmatprep.subr.mxu0 0.0
    %2282 = vmatpush1.msra.mxu0 %v2171
    %2283 = vmatprep.subr.mxu0 0.0
    %2284 = vmatpush1.msra.mxu0 %v2170
    %2285 = vmatprep.subr.mxu0 0.0
    %2286 = vmatpush1.msra.mxu0 %v2169
    %2287 = vmatprep.subr.mxu0 0.0
    %2288 = vmatpush1.msra.mxu0 %v2168
    %2289 = vmatprep.subr.mxu0 0.0
    %2290 = vmatpush1.msra.mxu0 %v2167
    %2291 = vmatprep.subr.mxu0 0.0
    %2292 = vmatpush1.msra.mxu0 %v2166
    %2293 = vmatprep.subr.mxu0 0.0
    %2294 = vmatpush1.msra.mxu0 %v2165
    %2295 = vmatprep.subr.mxu0 0.0
    %2296 = vmatpush1.msra.mxu0 %v2164
    %2297 = vmatprep.subr.mxu0 0.0
    %2298 = vmatpush1.msra.mxu0 %v2163
    %2299 = vmatprep.subr.mxu0 0.0
    %2300 = vmatpush1.msra.mxu0 %v2162
    %2301 = vmatprep.subr.mxu0 0.0
    %2302 = vmatpush2.msra.mxu0 %v2193
    %2303 = vmatprep.subr.mxu0 0.0
    %2304 = vmatpush2.msra.mxu0 %v2192
    %2305 = vmatprep.subr.mxu0 0.0
    %2306 = vmatpush2.msra.mxu0 %v2191
    %2307 = vmatprep.subr.mxu0 0.0
    %2308 = vmatpush2.msra.mxu0 %v2190
    %2309 = vmatprep.subr.mxu0 0.0
    %2310 = vmatpush2.msra.mxu0 %v2189
    %2311 = vmatprep.subr.mxu0 0.0
    %2312 = vmatpush2.msra.mxu0 %v2188
    %2313 = vmatprep.subr.mxu0 0.0
    %2314 = vmatpush2.msra.mxu0 %v2187
    %2315 = vmatprep.subr.mxu0 0.0
    %2316 = vmatpush2.msra.mxu0 %v2186
    %2317 = vmatprep.subr.mxu0 0.0
    %2318 = vmatpush2.msra.mxu0 %v2185
    %2319 = vmatprep.subr.mxu0 0.0
    %2320 = vmatpush2.msra.mxu0 %v2184
    %2321 = vmatprep.subr.mxu0 0.0
    %2322 = vmatpush2.msra.mxu0 %v2183
    %2323 = vmatprep.subr.mxu0 0.0
    %2324 = vmatpush2.msra.mxu0 %v2182
    %2325 = vmatprep.subr.mxu0 0.0
    %2326 = vmatpush2.msra.mxu0 %v2181
    %2327 = vmatprep.subr.mxu0 0.0
    %2328 = vmatpush2.msra.mxu0 %v2180
    %2329 = vmatprep.subr.mxu0 0.0
    %2330 = vmatpush2.msra.mxu0 %v2179
    %2331 = vmatprep.subr.mxu0 0.0
    %2332 = vmatpush2.msra.mxu0 %v2178
    %2333 = vmatprep.mubr.f32.mxu0 %v2125
    %2334 = vmatmul.mubr.f32.gmra.mxu0 %v2124
    %v2335 = vpop.f32.mrf.mxu0
    %v2336 = vadd.f32 %v2261, %v2335
    %v2337 = vpop.f32.mrf.mxu0
    %2338 = vmatprep.mubr.f32.mxu0 %v2129
    %2339 = vmatmul.mubr.f32.gmra.mxu0 %v2128
    %v2340 = vpop.f32.mrf.mxu0
    %v2341 = vadd.f32 %v2266, %v2340
    %v2342 = vpop.f32.mrf.mxu0
    %2343 = vdwg.mxu0
    %2344 = vmatprep.subr.mxu0 0.0
    %2345 = vmatpush1.msra.mxu0 %v1881
    %2346 = vmatprep.subr.mxu0 0.0
    %2347 = vmatpush1.msra.mxu0 %v1880
    %2348 = vmatprep.subr.mxu0 0.0
    %2349 = vmatpush1.msra.mxu0 %v1879
    %2350 = vmatprep.subr.mxu0 0.0
    %2351 = vmatpush1.msra.mxu0 %v1878
    %2352 = vmatprep.subr.mxu0 0.0
    %2353 = vmatpush1.msra.mxu0 %v1877
    %2354 = vmatprep.subr.mxu0 0.0
    %2355 = vmatpush1.msra.mxu0 %v1876
    %2356 = vmatprep.subr.mxu0 0.0
    %2357 = vmatpush1.msra.mxu0 %v1875
    %2358 = vmatprep.subr.mxu0 0.0
    %2359 = vmatpush1.msra.mxu0 %v1874
    %2360 = vmatprep.subr.mxu0 0.0
    %2361 = vmatpush1.msra.mxu0 %v1873
    %2362 = vmatprep.subr.mxu0 0.0
    %2363 = vmatpush1.msra.mxu0 %v1872
    %2364 = vmatprep.subr.mxu0 0.0
    %2365 = vmatpush1.msra.mxu0 %v1871
    %2366 = vmatprep.subr.mxu0 0.0
    %2367 = vmatpush1.msra.mxu0 %v1870
    %2368 = vmatprep.subr.mxu0 0.0
    %2369 = vmatpush1.msra.mxu0 %v1869
    %2370 = vmatprep.subr.mxu0 0.0
    %2371 = vmatpush1.msra.mxu0 %v1868
    %2372 = vmatprep.subr.mxu0 0.0
    %2373 = vmatpush1.msra.mxu0 %v1867
    %2374 = vmatprep.subr.mxu0 0.0
    %2375 = vmatpush1.msra.mxu0 %v1866
    %2376 = vmatprep.subr.mxu0 0.0
    %2377 = vmatpush2.msra.mxu0 %v1897
    %2378 = vmatprep.subr.mxu0 0.0
    %2379 = vmatpush2.msra.mxu0 %v1896
    %2380 = vmatprep.subr.mxu0 0.0
    %2381 = vmatpush2.msra.mxu0 %v1895
    %2382 = vmatprep.subr.mxu0 0.0
    %2383 = vmatpush2.msra.mxu0 %v1894
    %2384 = vmatprep.subr.mxu0 0.0
    %2385 = vmatpush2.msra.mxu0 %v1893
    %2386 = vmatprep.subr.mxu0 0.0
    %2387 = vmatpush2.msra.mxu0 %v1892
    %2388 = vmatprep.subr.mxu0 0.0
    %2389 = vmatpush2.msra.mxu0 %v1891
    %2390 = vmatprep.subr.mxu0 0.0
    %2391 = vmatpush2.msra.mxu0 %v1890
    %2392 = vmatprep.subr.mxu0 0.0
    %2393 = vmatpush2.msra.mxu0 %v1889
    %2394 = vmatprep.subr.mxu0 0.0
    %2395 = vmatpush2.msra.mxu0 %v1888
    %2396 = vmatprep.subr.mxu0 0.0
    %2397 = vmatpush2.msra.mxu0 %v1887
    %2398 = vmatprep.subr.mxu0 0.0
    %2399 = vmatpush2.msra.mxu0 %v1886
    %2400 = vmatprep.subr.mxu0 0.0
    %2401 = vmatpush2.msra.mxu0 %v1885
    %2402 = vmatprep.subr.mxu0 0.0
    %2403 = vmatpush2.msra.mxu0 %v1884
    %2404 = vmatprep.subr.mxu0 0.0
    %2405 = vmatpush2.msra.mxu0 %v1883
    %2406 = vmatprep.subr.mxu0 0.0
    %2407 = vmatpush2.msra.mxu0 %v1882
    %2408 = vmatprep.mubr.f32.mxu0 %v1859
    %2409 = vmatmul.mubr.f32.gmra.mxu0 %v1858
    %v2410 = vpop.f32.mrf.mxu0
    %v2411 = vadd.f32 %v2336, %v2410
    %v2412 = vpop.f32.mrf.mxu0
    %2413 = vmatprep.mubr.f32.mxu0 %v1863
    %2414 = vmatmul.mubr.f32.gmra.mxu0 %v1862
    %v2415 = vpop.f32.mrf.mxu0
    %v2416 = vadd.f32 %v2341, %v2415
    %v2417 = vpop.f32.mrf.mxu0
    %2418 = vdwg.mxu0
    %2419 = vmatprep.subr.mxu0 0.0
    %2420 = vmatpush1.msra.mxu0 %v1913
    %2421 = vmatprep.subr.mxu0 0.0
    %2422 = vmatpush1.msra.mxu0 %v1912
    %2423 = vmatprep.subr.mxu0 0.0
    %2424 = vmatpush1.msra.mxu0 %v1911
    %2425 = vmatprep.subr.mxu0 0.0
    %2426 = vmatpush1.msra.mxu0 %v1910
    %2427 = vmatprep.subr.mxu0 0.0
    %2428 = vmatpush1.msra.mxu0 %v1909
    %2429 = vmatprep.subr.mxu0 0.0
    %2430 = vmatpush1.msra.mxu0 %v1908
    %2431 = vmatprep.subr.mxu0 0.0
    %2432 = vmatpush1.msra.mxu0 %v1907
    %2433 = vmatprep.subr.mxu0 0.0
    %2434 = vmatpush1.msra.mxu0 %v1906
    %2435 = vmatprep.subr.mxu0 0.0
    %2436 = vmatpush1.msra.mxu0 %v1905
    %2437 = vmatprep.subr.mxu0 0.0
    %2438 = vmatpush1.msra.mxu0 %v1904
    %2439 = vmatprep.subr.mxu0 0.0
    %2440 = vmatpush1.msra.mxu0 %v1903
    %2441 = vmatprep.subr.mxu0 0.0
    %2442 = vmatpush1.msra.mxu0 %v1902
    %2443 = vmatprep.subr.mxu0 0.0
    %2444 = vmatpush1.msra.mxu0 %v1901
    %2445 = vmatprep.subr.mxu0 0.0
    %2446 = vmatpush1.msra.mxu0 %v1900
    %2447 = vmatprep.subr.mxu0 0.0
    %2448 = vmatpush1.msra.mxu0 %v1899
    %2449 = vmatprep.subr.mxu0 0.0
    %2450 = vmatpush1.msra.mxu0 %v1898
    %2451 = vmatprep.subr.mxu0 0.0
    %2452 = vmatpush2.msra.mxu0 %v1929
    %2453 = vmatprep.subr.mxu0 0.0
    %2454 = vmatpush2.msra.mxu0 %v1928
    %2455 = vmatprep.subr.mxu0 0.0
    %2456 = vmatpush2.msra.mxu0 %v1927
    %2457 = vmatprep.subr.mxu0 0.0
    %2458 = vmatpush2.msra.mxu0 %v1926
    %2459 = vmatprep.subr.mxu0 0.0
    %2460 = vmatpush2.msra.mxu0 %v1925
    %2461 = vmatprep.subr.mxu0 0.0
    %2462 = vmatpush2.msra.mxu0 %v1924
    %2463 = vmatprep.subr.mxu0 0.0
    %2464 = vmatpush2.msra.mxu0 %v1923
    %2465 = vmatprep.subr.mxu0 0.0
    %2466 = vmatpush2.msra.mxu0 %v1922
    %2467 = vmatprep.subr.mxu0 0.0
    %2468 = vmatpush2.msra.mxu0 %v1921
    %2469 = vmatprep.subr.mxu0 0.0
    %2470 = vmatpush2.msra.mxu0 %v1920
    %2471 = vmatprep.subr.mxu0 0.0
    %2472 = vmatpush2.msra.mxu0 %v1919
    %2473 = vmatprep.subr.mxu0 0.0
    %2474 = vmatpush2.msra.mxu0 %v1918
    %2475 = vmatprep.subr.mxu0 0.0
    %2476 = vmatpush2.msra.mxu0 %v1917
    %2477 = vmatprep.subr.mxu0 0.0
    %2478 = vmatpush2.msra.mxu0 %v1916
    %2479 = vmatprep.subr.mxu0 0.0
    %2480 = vmatpush2.msra.mxu0 %v1915
    %2481 = vmatprep.subr.mxu0 0.0
    %2482 = vmatpush2.msra.mxu0 %v1914
    %2483 = vmatprep.mubr.f32.mxu0 %v1861
    %2484 = vmatmul.mubr.f32.gmra.mxu0 %v1860
    %v2485 = vpop.f32.mrf.mxu0
    %v2486 = vadd.f32 %v2411, %v2485
    %v2487 = vpop.f32.mrf.mxu0
    %2488 = vmatprep.mubr.f32.mxu0 %v1865
    %2489 = vmatmul.mubr.f32.gmra.mxu0 %v1864
    %v2490 = vpop.f32.mrf.mxu0
    %v2491 = vadd.f32 %v2416, %v2490
    %v2492 = vpop.f32.mrf.mxu0
    %2493 = vdwg.mxu0
    %v2494 = vld [vmem:[%s7 + $0x40] sm:$0xff]
    %v2495 = vld [vmem:[%s7 + $0x48] sm:$0xff]
    %v2496 = vld [vmem:[%s7 + $0x50] sm:$0xff]
    %v2497 = vld [vmem:[%s7 + $0x58] sm:$0xff]
    %v2498 = vld [vmem:[%s7 + $0xc0] sm:$0xff]
    %v2499 = vld [vmem:[%s7 + $0xc8] sm:$0xff]
    %v2500 = vld [vmem:[%s7 + $0xd0] sm:$0xff]
    %v2501 = vld [vmem:[%s7 + $0xd8] sm:$0xff]
    %v2502 = vld [vmem:[%s7 + $0x140] sm:$0xff]
    %v2503 = vld [vmem:[%s7 + $0x148] sm:$0xff]
    %v2504 = vld [vmem:[%s7 + $0x150] sm:$0xff]
    %v2505 = vld [vmem:[%s7 + $0x158] sm:$0xff]
    %v2506 = vld [vmem:[%s7 + $0x1c0] sm:$0xff]
    %v2507 = vld [vmem:[%s7 + $0x1c8] sm:$0xff]
    %v2508 = vld [vmem:[%s7 + $0x1d0] sm:$0xff]
    %v2509 = vld [vmem:[%s7 + $0x1d8] sm:$0xff]
    %v2510 = vld [vmem:[%s8 + $0x8] sm:$0xf]
    %v2512 = vlaneseq
    %v2513 = vshrl.u32 %v2512, 7
    %v2514 = vsub.s32 0, %v2513
    %v2515 = vrot.slane %v2510, %v2514
    %v2516 = vlaneseq
    %v2517 = vshrl.u32 %v2516, 7
    %v2518 = vsub.s32 1, %v2517
    %v2519 = vrot.slane %v2510, %v2518
    %v2520 = vlaneseq
    %v2521 = vshrl.u32 %v2520, 7
    %v2522 = vsub.s32 2, %v2521
    %v2523 = vrot.slane %v2510, %v2522
    %v2524 = vlaneseq
    %v2525 = vshrl.u32 %v2524, 7
    %v2526 = vsub.s32 3, %v2525
    %v2527 = vrot.slane %v2510, %v2526
    %2532 = vmatprep.subr.mxu0 0.0
    %2533 = vmatpush1.msra.mxu0 0.0
    %2534 = vmatprep.subr.mxu0 0.0
    %2535 = vmatpush1.msra.mxu0 0.0
    %2536 = vmatprep.subr.mxu0 0.0
    %2537 = vmatpush1.msra.mxu0 0.0
    %2538 = vmatprep.subr.mxu0 0.0
    %2539 = vmatpush1.msra.mxu0 0.0
    %2540 = vmatprep.subr.mxu0 0.0
    %2541 = vmatpush1.msra.mxu0 0.0
    %2542 = vmatprep.subr.mxu0 0.0
    %2543 = vmatpush1.msra.mxu0 0.0
    %2544 = vmatprep.subr.mxu0 0.0
    %2545 = vmatpush1.msra.mxu0 0.0
    %2546 = vmatprep.subr.mxu0 0.0
    %2547 = vmatpush1.msra.mxu0 0.0
    %2548 = vmatprep.subr.mxu0 0.0
    %2549 = vmatpush1.msra.mxu0 0.0
    %2550 = vmatprep.subr.mxu0 0.0
    %2551 = vmatpush1.msra.mxu0 0.0
    %2552 = vmatprep.subr.mxu0 0.0
    %2553 = vmatpush1.msra.mxu0 0.0
    %2554 = vmatprep.subr.mxu0 0.0
    %2555 = vmatpush1.msra.mxu0 0.0
    %2556 = vmatprep.subr.mxu0 %v2507
    %2557 = vmatpush1.msra.mxu0 %v2506
    %2558 = vmatprep.subr.mxu0 %v2503
    %2559 = vmatpush1.msra.mxu0 %v2502
    %2560 = vmatprep.subr.mxu0 %v2499
    %2561 = vmatpush1.msra.mxu0 %v2498
    %2562 = vmatprep.subr.mxu0 %v2495
    %2563 = vmatpush1.msra.mxu0 %v2494
    %2564 = vmatprep.subr.mxu0 0.0
    %2565 = vmatpush2.msra.mxu0 0.0
    %2566 = vmatprep.subr.mxu0 0.0
    %2567 = vmatpush2.msra.mxu0 0.0
    %2568 = vmatprep.subr.mxu0 0.0
    %2569 = vmatpush2.msra.mxu0 0.0
    %2570 = vmatprep.subr.mxu0 0.0
    %2571 = vmatpush2.msra.mxu0 0.0
    %2572 = vmatprep.subr.mxu0 0.0
    %2573 = vmatpush2.msra.mxu0 0.0
    %2574 = vmatprep.subr.mxu0 0.0
    %2575 = vmatpush2.msra.mxu0 0.0
    %2576 = vmatprep.subr.mxu0 0.0
    %2577 = vmatpush2.msra.mxu0 0.0
    %2578 = vmatprep.subr.mxu0 0.0
    %2579 = vmatpush2.msra.mxu0 0.0
    %2580 = vmatprep.subr.mxu0 0.0
    %2581 = vmatpush2.msra.mxu0 0.0
    %2582 = vmatprep.subr.mxu0 0.0
    %2583 = vmatpush2.msra.mxu0 0.0
    %2584 = vmatprep.subr.mxu0 0.0
    %2585 = vmatpush2.msra.mxu0 0.0
    %2586 = vmatprep.subr.mxu0 0.0
    %2587 = vmatpush2.msra.mxu0 0.0
    %2588 = vmatprep.subr.mxu0 0.0
    %2589 = vmatpush2.msra.mxu0 0.0
    %2590 = vmatprep.subr.mxu0 0.0
    %2591 = vmatpush2.msra.mxu0 0.0
    %2592 = vmatprep.subr.mxu0 0.0
    %2593 = vmatpush2.msra.mxu0 0.0
    %2594 = vmatprep.subr.mxu0 0.0
    %2595 = vmatpush2.msra.mxu0 0.0
    %2596 = vmatprep.mubr.f32.mxu0 0.0
    %2597 = vmatmul.mubr.f32.gmra.mxu0 %v1699
    %v2598 = vpop.f32.mrf.mxu0
    %v2599 = vadd.f32 %v2515, %v2598
    %v2600 = vpop.f32.mrf.mxu0
    %v2601 = vadd.f32 %v2519, %v2600
    %2602 = vmatprep.mubr.f32.mxu0 0.0
    %2603 = vmatmul.mubr.f32.gmra.mxu0 %v1702
    %v2604 = vpop.f32.mrf.mxu0
    %v2605 = vadd.f32 %v2515, %v2604
    %v2606 = vpop.f32.mrf.mxu0
    %v2607 = vadd.f32 %v2519, %v2606
    %2608 = vdwg.mxu0
    %2609 = vmatprep.subr.mxu0 0.0
    %2610 = vmatpush1.msra.mxu0 0.0
    %2611 = vmatprep.subr.mxu0 0.0
    %2612 = vmatpush1.msra.mxu0 0.0
    %2613 = vmatprep.subr.mxu0 0.0
    %2614 = vmatpush1.msra.mxu0 0.0
    %2615 = vmatprep.subr.mxu0 0.0
    %2616 = vmatpush1.msra.mxu0 0.0
    %2617 = vmatprep.subr.mxu0 0.0
    %2618 = vmatpush1.msra.mxu0 0.0
    %2619 = vmatprep.subr.mxu0 0.0
    %2620 = vmatpush1.msra.mxu0 0.0
    %2621 = vmatprep.subr.mxu0 0.0
    %2622 = vmatpush1.msra.mxu0 0.0
    %2623 = vmatprep.subr.mxu0 0.0
    %2624 = vmatpush1.msra.mxu0 0.0
    %2625 = vmatprep.subr.mxu0 0.0
    %2626 = vmatpush1.msra.mxu0 0.0
    %2627 = vmatprep.subr.mxu0 0.0
    %2628 = vmatpush1.msra.mxu0 0.0
    %2629 = vmatprep.subr.mxu0 0.0
    %2630 = vmatpush1.msra.mxu0 0.0
    %2631 = vmatprep.subr.mxu0 0.0
    %2632 = vmatpush1.msra.mxu0 0.0
    %2633 = vmatprep.subr.mxu0 %v2509
    %2634 = vmatpush1.msra.mxu0 %v2508
    %2635 = vmatprep.subr.mxu0 %v2505
    %2636 = vmatpush1.msra.mxu0 %v2504
    %2637 = vmatprep.subr.mxu0 %v2501
    %2638 = vmatpush1.msra.mxu0 %v2500
    %2639 = vmatprep.subr.mxu0 %v2497
    %2640 = vmatpush1.msra.mxu0 %v2496
    %2641 = vmatprep.subr.mxu0 0.0
    %2642 = vmatpush2.msra.mxu0 0.0
    %2643 = vmatprep.subr.mxu0 0.0
    %2644 = vmatpush2.msra.mxu0 0.0
    %2645 = vmatprep.subr.mxu0 0.0
    %2646 = vmatpush2.msra.mxu0 0.0
    %2647 = vmatprep.subr.mxu0 0.0
    %2648 = vmatpush2.msra.mxu0 0.0
    %2649 = vmatprep.subr.mxu0 0.0
    %2650 = vmatpush2.msra.mxu0 0.0
    %2651 = vmatprep.subr.mxu0 0.0
    %2652 = vmatpush2.msra.mxu0 0.0
    %2653 = vmatprep.subr.mxu0 0.0
    %2654 = vmatpush2.msra.mxu0 0.0
    %2655 = vmatprep.subr.mxu0 0.0
    %2656 = vmatpush2.msra.mxu0 0.0
    %2657 = vmatprep.subr.mxu0 0.0
    %2658 = vmatpush2.msra.mxu0 0.0
    %2659 = vmatprep.subr.mxu0 0.0
    %2660 = vmatpush2.msra.mxu0 0.0
    %2661 = vmatprep.subr.mxu0 0.0
    %2662 = vmatpush2.msra.mxu0 0.0
    %2663 = vmatprep.subr.mxu0 0.0
    %2664 = vmatpush2.msra.mxu0 0.0
    %2665 = vmatprep.subr.mxu0 0.0
    %2666 = vmatpush2.msra.mxu0 0.0
    %2667 = vmatprep.subr.mxu0 0.0
    %2668 = vmatpush2.msra.mxu0 0.0
    %2669 = vmatprep.subr.mxu0 0.0
    %2670 = vmatpush2.msra.mxu0 0.0
    %2671 = vmatprep.subr.mxu0 0.0
    %2672 = vmatpush2.msra.mxu0 0.0
    %2673 = vmatprep.mubr.f32.mxu0 0.0
    %2674 = vmatmul.mubr.f32.gmra.mxu0 %v1699
    %v2675 = vpop.f32.mrf.mxu0
    %v2676 = vadd.f32 %v2523, %v2675
    %v2677 = vpop.f32.mrf.mxu0
    %v2678 = vadd.f32 %v2527, %v2677
    %2679 = vmatprep.mubr.f32.mxu0 0.0
    %2680 = vmatmul.mubr.f32.gmra.mxu0 %v1702
    %v2681 = vpop.f32.mrf.mxu0
    %v2682 = vadd.f32 %v2523, %v2681
    %v2683 = vpop.f32.mrf.mxu0
    %v2684 = vadd.f32 %v2527, %v2683
    %2685 = vdwg.mxu0
    %v2686 = vmax.f32 %v2599, 0.0
    %v2687 = vmax.f32 %v2601, 0.0
    %v2688 = vmax.f32 %v2676, 0.0
    %v2689 = vmax.f32 %v2678, 0.0
    %v2690 = vmax.f32 %v2605, 0.0
    %v2691 = vmax.f32 %v2607, 0.0
    %v2692 = vmax.f32 %v2682, 0.0
    %v2693 = vmax.f32 %v2684, 0.0
    %v2694 = vld [vmem:[%s9 + $0x400] sm:$0xff]
    %v2695 = vld [vmem:[%s9 + $0x408] sm:$0xff]
    %v2696 = vld [vmem:[%s9 + $0x410] sm:$0xff]
    %v2697 = vld [vmem:[%s9 + $0x418] sm:$0xff]
    %v2698 = vld [vmem:[%s9 + $0x420] sm:$0xff]
    %v2699 = vld [vmem:[%s9 + $0x428] sm:$0xff]
    %v2700 = vld [vmem:[%s9 + $0x430] sm:$0xff]
    %v2701 = vld [vmem:[%s9 + $0x438] sm:$0xff]
    %v2702 = vld [vmem:[%s9 + $0x440] sm:$0xff]
    %v2703 = vld [vmem:[%s9 + $0x448] sm:$0xff]
    %v2704 = vld [vmem:[%s9 + $0x450] sm:$0xff]
    %v2705 = vld [vmem:[%s9 + $0x458] sm:$0xff]
    %v2706 = vld [vmem:[%s9 + $0x460] sm:$0xff]
    %v2707 = vld [vmem:[%s9 + $0x468] sm:$0xff]
    %v2708 = vld [vmem:[%s9 + $0x470] sm:$0xff]
    %v2709 = vld [vmem:[%s9 + $0x478] sm:$0xff]
    %v2710 = vld [vmem:[%s9 + $0x480] sm:$0xff]
    %v2711 = vld [vmem:[%s9 + $0x488] sm:$0xff]
    %v2712 = vld [vmem:[%s9 + $0x490] sm:$0xff]
    %v2713 = vld [vmem:[%s9 + $0x498] sm:$0xff]
    %v2714 = vld [vmem:[%s9 + $0x4a0] sm:$0xff]
    %v2715 = vld [vmem:[%s9 + $0x4a8] sm:$0xff]
    %v2716 = vld [vmem:[%s9 + $0x4b0] sm:$0xff]
    %v2717 = vld [vmem:[%s9 + $0x4b8] sm:$0xff]
    %v2718 = vld [vmem:[%s9 + $0x4c0] sm:$0xff]
    %v2719 = vld [vmem:[%s9 + $0x4c8] sm:$0xff]
    %v2720 = vld [vmem:[%s9 + $0x4d0] sm:$0xff]
    %v2721 = vld [vmem:[%s9 + $0x4d8] sm:$0xff]
    %v2722 = vld [vmem:[%s9 + $0x4e0] sm:$0xff]
    %v2723 = vld [vmem:[%s9 + $0x4e8] sm:$0xff]
    %v2724 = vld [vmem:[%s9 + $0x4f0] sm:$0xff]
    %v2725 = vld [vmem:[%s9 + $0x4f8] sm:$0xff]
    %v2726 = vld [vmem:[%s9 + $0x500] sm:$0xff]
    %v2727 = vld [vmem:[%s9 + $0x508] sm:$0xff]
    %v2728 = vld [vmem:[%s9 + $0x510] sm:$0xff]
    %v2729 = vld [vmem:[%s9 + $0x518] sm:$0xff]
    %v2730 = vld [vmem:[%s9 + $0x520] sm:$0xff]
    %v2731 = vld [vmem:[%s9 + $0x528] sm:$0xff]
    %v2732 = vld [vmem:[%s9 + $0x530] sm:$0xff]
    %v2733 = vld [vmem:[%s9 + $0x538] sm:$0xff]
    %v2734 = vld [vmem:[%s9 + $0x540] sm:$0xff]
    %v2735 = vld [vmem:[%s9 + $0x548] sm:$0xff]
    %v2736 = vld [vmem:[%s9 + $0x550] sm:$0xff]
    %v2737 = vld [vmem:[%s9 + $0x558] sm:$0xff]
    %v2738 = vld [vmem:[%s9 + $0x560] sm:$0xff]
    %v2739 = vld [vmem:[%s9 + $0x568] sm:$0xff]
    %v2740 = vld [vmem:[%s9 + $0x570] sm:$0xff]
    %v2741 = vld [vmem:[%s9 + $0x578] sm:$0xff]
    %v2742 = vld [vmem:[%s9 + $0x580] sm:$0xff]
    %v2743 = vld [vmem:[%s9 + $0x588] sm:$0xff]
    %v2744 = vld [vmem:[%s9 + $0x590] sm:$0xff]
    %v2745 = vld [vmem:[%s9 + $0x598] sm:$0xff]
    %v2746 = vld [vmem:[%s9 + $0x5a0] sm:$0xff]
    %v2747 = vld [vmem:[%s9 + $0x5a8] sm:$0xff]
    %v2748 = vld [vmem:[%s9 + $0x5b0] sm:$0xff]
    %v2749 = vld [vmem:[%s9 + $0x5b8] sm:$0xff]
    %v2750 = vld [vmem:[%s9 + $0x5c0] sm:$0xff]
    %v2751 = vld [vmem:[%s9 + $0x5c8] sm:$0xff]
    %v2752 = vld [vmem:[%s9 + $0x5d0] sm:$0xff]
    %v2753 = vld [vmem:[%s9 + $0x5d8] sm:$0xff]
    %v2754 = vld [vmem:[%s9 + $0x5e0] sm:$0xff]
    %v2755 = vld [vmem:[%s9 + $0x5e8] sm:$0xff]
    %v2756 = vld [vmem:[%s9 + $0x5f0] sm:$0xff]
    %v2757 = vld [vmem:[%s9 + $0x5f8] sm:$0xff]
    %2758 = vmatprep.subr.mxu0 0.0
    %2759 = vmatpush1.msra.mxu0 %v2709
    %2760 = vmatprep.subr.mxu0 0.0
    %2761 = vmatpush1.msra.mxu0 %v2708
    %2762 = vmatprep.subr.mxu0 0.0
    %2763 = vmatpush1.msra.mxu0 %v2707
    %2764 = vmatprep.subr.mxu0 0.0
    %2765 = vmatpush1.msra.mxu0 %v2706
    %2766 = vmatprep.subr.mxu0 0.0
    %2767 = vmatpush1.msra.mxu0 %v2705
    %2768 = vmatprep.subr.mxu0 0.0
    %2769 = vmatpush1.msra.mxu0 %v2704
    %2770 = vmatprep.subr.mxu0 0.0
    %2771 = vmatpush1.msra.mxu0 %v2703
    %2772 = vmatprep.subr.mxu0 0.0
    %2773 = vmatpush1.msra.mxu0 %v2702
    %2774 = vmatprep.subr.mxu0 0.0
    %2775 = vmatpush1.msra.mxu0 %v2701
    %2776 = vmatprep.subr.mxu0 0.0
    %2777 = vmatpush1.msra.mxu0 %v2700
    %2778 = vmatprep.subr.mxu0 0.0
    %2779 = vmatpush1.msra.mxu0 %v2699
    %2780 = vmatprep.subr.mxu0 0.0
    %2781 = vmatpush1.msra.mxu0 %v2698
    %2782 = vmatprep.subr.mxu0 0.0
    %2783 = vmatpush1.msra.mxu0 %v2697
    %2784 = vmatprep.subr.mxu0 0.0
    %2785 = vmatpush1.msra.mxu0 %v2696
    %2786 = vmatprep.subr.mxu0 0.0
    %2787 = vmatpush1.msra.mxu0 %v2695
    %2788 = vmatprep.subr.mxu0 0.0
    %2789 = vmatpush1.msra.mxu0 %v2694
    %2790 = vmatprep.subr.mxu0 0.0
    %2791 = vmatpush2.msra.mxu0 %v2725
    %2792 = vmatprep.subr.mxu0 0.0
    %2793 = vmatpush2.msra.mxu0 %v2724
    %2794 = vmatprep.subr.mxu0 0.0
    %2795 = vmatpush2.msra.mxu0 %v2723
    %2796 = vmatprep.subr.mxu0 0.0
    %2797 = vmatpush2.msra.mxu0 %v2722
    %2798 = vmatprep.subr.mxu0 0.0
    %2799 = vmatpush2.msra.mxu0 %v2721
    %2800 = vmatprep.subr.mxu0 0.0
    %2801 = vmatpush2.msra.mxu0 %v2720
    %2802 = vmatprep.subr.mxu0 0.0
    %2803 = vmatpush2.msra.mxu0 %v2719
    %2804 = vmatprep.subr.mxu0 0.0
    %2805 = vmatpush2.msra.mxu0 %v2718
    %2806 = vmatprep.subr.mxu0 0.0
    %2807 = vmatpush2.msra.mxu0 %v2717
    %2808 = vmatprep.subr.mxu0 0.0
    %2809 = vmatpush2.msra.mxu0 %v2716
    %2810 = vmatprep.subr.mxu0 0.0
    %2811 = vmatpush2.msra.mxu0 %v2715
    %2812 = vmatprep.subr.mxu0 0.0
    %2813 = vmatpush2.msra.mxu0 %v2714
    %2814 = vmatprep.subr.mxu0 0.0
    %2815 = vmatpush2.msra.mxu0 %v2713
    %2816 = vmatprep.subr.mxu0 0.0
    %2817 = vmatpush2.msra.mxu0 %v2712
    %2818 = vmatprep.subr.mxu0 0.0
    %2819 = vmatpush2.msra.mxu0 %v2711
    %2820 = vmatprep.subr.mxu0 0.0
    %2821 = vmatpush2.msra.mxu0 %v2710
    %2822 = vmatprep.mubr.f32.mxu0 %v2687
    %2823 = vmatmul.mubr.f32.gmra.mxu0 %v2686
    %v2824 = vpop.f32.mrf.mxu0
    %v2825 = vadd.f32 0.0, %v2824
    %v2826 = vpop.f32.mrf.mxu0
    %2827 = vmatprep.mubr.f32.mxu0 %v2691
    %2828 = vmatmul.mubr.f32.gmra.mxu0 %v2690
    %v2829 = vpop.f32.mrf.mxu0
    %v2830 = vadd.f32 0.0, %v2829
    %v2831 = vpop.f32.mrf.mxu0
    %2832 = vdwg.mxu0
    %2833 = vmatprep.subr.mxu0 0.0
    %2834 = vmatpush1.msra.mxu0 %v2741
    %2835 = vmatprep.subr.mxu0 0.0
    %2836 = vmatpush1.msra.mxu0 %v2740
    %2837 = vmatprep.subr.mxu0 0.0
    %2838 = vmatpush1.msra.mxu0 %v2739
    %2839 = vmatprep.subr.mxu0 0.0
    %2840 = vmatpush1.msra.mxu0 %v2738
    %2841 = vmatprep.subr.mxu0 0.0
    %2842 = vmatpush1.msra.mxu0 %v2737
    %2843 = vmatprep.subr.mxu0 0.0
    %2844 = vmatpush1.msra.mxu0 %v2736
    %2845 = vmatprep.subr.mxu0 0.0
    %2846 = vmatpush1.msra.mxu0 %v2735
    %2847 = vmatprep.subr.mxu0 0.0
    %2848 = vmatpush1.msra.mxu0 %v2734
    %2849 = vmatprep.subr.mxu0 0.0
    %2850 = vmatpush1.msra.mxu0 %v2733
    %2851 = vmatprep.subr.mxu0 0.0
    %2852 = vmatpush1.msra.mxu0 %v2732
    %2853 = vmatprep.subr.mxu0 0.0
    %2854 = vmatpush1.msra.mxu0 %v2731
    %2855 = vmatprep.subr.mxu0 0.0
    %2856 = vmatpush1.msra.mxu0 %v2730
    %2857 = vmatprep.subr.mxu0 0.0
    %2858 = vmatpush1.msra.mxu0 %v2729
    %2859 = vmatprep.subr.mxu0 0.0
    %2860 = vmatpush1.msra.mxu0 %v2728
    %2861 = vmatprep.subr.mxu0 0.0
    %2862 = vmatpush1.msra.mxu0 %v2727
    %2863 = vmatprep.subr.mxu0 0.0
    %2864 = vmatpush1.msra.mxu0 %v2726
    %2865 = vmatprep.subr.mxu0 0.0
    %2866 = vmatpush2.msra.mxu0 %v2757
    %2867 = vmatprep.subr.mxu0 0.0
    %2868 = vmatpush2.msra.mxu0 %v2756
    %2869 = vmatprep.subr.mxu0 0.0
    %2870 = vmatpush2.msra.mxu0 %v2755
    %2871 = vmatprep.subr.mxu0 0.0
    %2872 = vmatpush2.msra.mxu0 %v2754
    %2873 = vmatprep.subr.mxu0 0.0
    %2874 = vmatpush2.msra.mxu0 %v2753
    %2875 = vmatprep.subr.mxu0 0.0
    %2876 = vmatpush2.msra.mxu0 %v2752
    %2877 = vmatprep.subr.mxu0 0.0
    %2878 = vmatpush2.msra.mxu0 %v2751
    %2879 = vmatprep.subr.mxu0 0.0
    %2880 = vmatpush2.msra.mxu0 %v2750
    %2881 = vmatprep.subr.mxu0 0.0
    %2882 = vmatpush2.msra.mxu0 %v2749
    %2883 = vmatprep.subr.mxu0 0.0
    %2884 = vmatpush2.msra.mxu0 %v2748
    %2885 = vmatprep.subr.mxu0 0.0
    %2886 = vmatpush2.msra.mxu0 %v2747
    %2887 = vmatprep.subr.mxu0 0.0
    %2888 = vmatpush2.msra.mxu0 %v2746
    %2889 = vmatprep.subr.mxu0 0.0
    %2890 = vmatpush2.msra.mxu0 %v2745
    %2891 = vmatprep.subr.mxu0 0.0
    %2892 = vmatpush2.msra.mxu0 %v2744
    %2893 = vmatprep.subr.mxu0 0.0
    %2894 = vmatpush2.msra.mxu0 %v2743
    %2895 = vmatprep.subr.mxu0 0.0
    %2896 = vmatpush2.msra.mxu0 %v2742
    %2897 = vmatprep.mubr.f32.mxu0 %v2689
    %2898 = vmatmul.mubr.f32.gmra.mxu0 %v2688
    %v2899 = vpop.f32.mrf.mxu0
    %v2900 = vadd.f32 %v2825, %v2899
    %v2901 = vpop.f32.mrf.mxu0
    %2902 = vmatprep.mubr.f32.mxu0 %v2693
    %2903 = vmatmul.mubr.f32.gmra.mxu0 %v2692
    %v2904 = vpop.f32.mrf.mxu0
    %v2905 = vadd.f32 %v2830, %v2904
    %v2906 = vpop.f32.mrf.mxu0
    %2907 = vdwg.mxu0
    %v2908 = vadd.f32 %v2486, %v2900
    %v2909 = vadd.f32 %v2491, %v2905
    %v2910 = vld [vmem:[%s7 + $0x60] sm:$0xff]
    %v2911 = vld [vmem:[%s7 + $0x68] sm:$0xff]
    %v2912 = vld [vmem:[%s7 + $0x70] sm:$0xff]
    %v2913 = vld [vmem:[%s7 + $0x78] sm:$0xff]
    %v2914 = vld [vmem:[%s7 + $0xe0] sm:$0xff]
    %v2915 = vld [vmem:[%s7 + $0xe8] sm:$0xff]
    %v2916 = vld [vmem:[%s7 + $0xf0] sm:$0xff]
    %v2917 = vld [vmem:[%s7 + $0xf8] sm:$0xff]
    %v2918 = vld [vmem:[%s7 + $0x160] sm:$0xff]
    %v2919 = vld [vmem:[%s7 + $0x168] sm:$0xff]
    %v2920 = vld [vmem:[%s7 + $0x170] sm:$0xff]
    %v2921 = vld [vmem:[%s7 + $0x178] sm:$0xff]
    %v2922 = vld [vmem:[%s7 + $0x1e0] sm:$0xff]
    %v2923 = vld [vmem:[%s7 + $0x1e8] sm:$0xff]
    %v2924 = vld [vmem:[%s7 + $0x1f0] sm:$0xff]
    %v2925 = vld [vmem:[%s7 + $0x1f8] sm:$0xff]
    %v2926 = vld [vmem:[%s8 + $0xc] sm:$0xf]
    %v2928 = vlaneseq
    %v2929 = vshrl.u32 %v2928, 7
    %v2930 = vsub.s32 0, %v2929
    %v2931 = vrot.slane %v2926, %v2930
    %v2932 = vlaneseq
    %v2933 = vshrl.u32 %v2932, 7
    %v2934 = vsub.s32 1, %v2933
    %v2935 = vrot.slane %v2926, %v2934
    %v2936 = vlaneseq
    %v2937 = vshrl.u32 %v2936, 7
    %v2938 = vsub.s32 2, %v2937
    %v2939 = vrot.slane %v2926, %v2938
    %v2940 = vlaneseq
    %v2941 = vshrl.u32 %v2940, 7
    %v2942 = vsub.s32 3, %v2941
    %v2943 = vrot.slane %v2926, %v2942
    %2948 = vmatprep.subr.mxu0 0.0
    %2949 = vmatpush1.msra.mxu0 0.0
    %2950 = vmatprep.subr.mxu0 0.0
    %2951 = vmatpush1.msra.mxu0 0.0
    %2952 = vmatprep.subr.mxu0 0.0
    %2953 = vmatpush1.msra.mxu0 0.0
    %2954 = vmatprep.subr.mxu0 0.0
    %2955 = vmatpush1.msra.mxu0 0.0
    %2956 = vmatprep.subr.mxu0 0.0
    %2957 = vmatpush1.msra.mxu0 0.0
    %2958 = vmatprep.subr.mxu0 0.0
    %2959 = vmatpush1.msra.mxu0 0.0
    %2960 = vmatprep.subr.mxu0 0.0
    %2961 = vmatpush1.msra.mxu0 0.0
    %2962 = vmatprep.subr.mxu0 0.0
    %2963 = vmatpush1.msra.mxu0 0.0
    %2964 = vmatprep.subr.mxu0 0.0
    %2965 = vmatpush1.msra.mxu0 0.0
    %2966 = vmatprep.subr.mxu0 0.0
    %2967 = vmatpush1.msra.mxu0 0.0
    %2968 = vmatprep.subr.mxu0 0.0
    %2969 = vmatpush1.msra.mxu0 0.0
    %2970 = vmatprep.subr.mxu0 0.0
    %2971 = vmatpush1.msra.mxu0 0.0
    %2972 = vmatprep.subr.mxu0 %v2923
    %2973 = vmatpush1.msra.mxu0 %v2922
    %2974 = vmatprep.subr.mxu0 %v2919
    %2975 = vmatpush1.msra.mxu0 %v2918
    %2976 = vmatprep.subr.mxu0 %v2915
    %2977 = vmatpush1.msra.mxu0 %v2914
    %2978 = vmatprep.subr.mxu0 %v2911
    %2979 = vmatpush1.msra.mxu0 %v2910
    %2980 = vmatprep.subr.mxu0 0.0
    %2981 = vmatpush2.msra.mxu0 0.0
    %2982 = vmatprep.subr.mxu0 0.0
    %2983 = vmatpush2.msra.mxu0 0.0
    %2984 = vmatprep.subr.mxu0 0.0
    %2985 = vmatpush2.msra.mxu0 0.0
    %2986 = vmatprep.subr.mxu0 0.0
    %2987 = vmatpush2.msra.mxu0 0.0
    %2988 = vmatprep.subr.mxu0 0.0
    %2989 = vmatpush2.msra.mxu0 0.0
    %2990 = vmatprep.subr.mxu0 0.0
    %2991 = vmatpush2.msra.mxu0 0.0
    %2992 = vmatprep.subr.mxu0 0.0
    %2993 = vmatpush2.msra.mxu0 0.0
    %2994 = vmatprep.subr.mxu0 0.0
    %2995 = vmatpush2.msra.mxu0 0.0
    %2996 = vmatprep.subr.mxu0 0.0
    %2997 = vmatpush2.msra.mxu0 0.0
    %2998 = vmatprep.subr.mxu0 0.0
    %2999 = vmatpush2.msra.mxu0 0.0
    %3000 = vmatprep.subr.mxu0 0.0
    %3001 = vmatpush2.msra.mxu0 0.0
    %3002 = vmatprep.subr.mxu0 0.0
    %3003 = vmatpush2.msra.mxu0 0.0
    %3004 = vmatprep.subr.mxu0 0.0
    %3005 = vmatpush2.msra.mxu0 0.0
    %3006 = vmatprep.subr.mxu0 0.0
    %3007 = vmatpush2.msra.mxu0 0.0
    %3008 = vmatprep.subr.mxu0 0.0
    %3009 = vmatpush2.msra.mxu0 0.0
    %3010 = vmatprep.subr.mxu0 0.0
    %3011 = vmatpush2.msra.mxu0 0.0
    %3012 = vmatprep.mubr.f32.mxu0 0.0
    %3013 = vmatmul.mubr.f32.gmra.mxu0 %v1699
    %v3014 = vpop.f32.mrf.mxu0
    %v3015 = vadd.f32 %v2931, %v3014
    %v3016 = vpop.f32.mrf.mxu0
    %v3017 = vadd.f32 %v2935, %v3016
    %3018 = vmatprep.mubr.f32.mxu0 0.0
    %3019 = vmatmul.mubr.f32.gmra.mxu0 %v1702
    %v3020 = vpop.f32.mrf.mxu0
    %v3021 = vadd.f32 %v2931, %v3020
    %v3022 = vpop.f32.mrf.mxu0
    %v3023 = vadd.f32 %v2935, %v3022
    %3024 = vdwg.mxu0
    %3025 = vmatprep.subr.mxu0 0.0
    %3026 = vmatpush1.msra.mxu0 0.0
    %3027 = vmatprep.subr.mxu0 0.0
    %3028 = vmatpush1.msra.mxu0 0.0
    %3029 = vmatprep.subr.mxu0 0.0
    %3030 = vmatpush1.msra.mxu0 0.0
    %3031 = vmatprep.subr.mxu0 0.0
    %3032 = vmatpush1.msra.mxu0 0.0
    %3033 = vmatprep.subr.mxu0 0.0
    %3034 = vmatpush1.msra.mxu0 0.0
    %3035 = vmatprep.subr.mxu0 0.0
    %3036 = vmatpush1.msra.mxu0 0.0
    %3037 = vmatprep.subr.mxu0 0.0
    %3038 = vmatpush1.msra.mxu0 0.0
    %3039 = vmatprep.subr.mxu0 0.0
    %3040 = vmatpush1.msra.mxu0 0.0
    %3041 = vmatprep.subr.mxu0 0.0
    %3042 = vmatpush1.msra.mxu0 0.0
    %3043 = vmatprep.subr.mxu0 0.0
    %3044 = vmatpush1.msra.mxu0 0.0
    %3045 = vmatprep.subr.mxu0 0.0
    %3046 = vmatpush1.msra.mxu0 0.0
    %3047 = vmatprep.subr.mxu0 0.0
    %3048 = vmatpush1.msra.mxu0 0.0
    %3049 = vmatprep.subr.mxu0 %v2925
    %3050 = vmatpush1.msra.mxu0 %v2924
    %3051 = vmatprep.subr.mxu0 %v2921
    %3052 = vmatpush1.msra.mxu0 %v2920
    %3053 = vmatprep.subr.mxu0 %v2917
    %3054 = vmatpush1.msra.mxu0 %v2916
    %3055 = vmatprep.subr.mxu0 %v2913
    %3056 = vmatpush1.msra.mxu0 %v2912
    %3057 = vmatprep.subr.mxu0 0.0
    %3058 = vmatpush2.msra.mxu0 0.0
    %3059 = vmatprep.subr.mxu0 0.0
    %3060 = vmatpush2.msra.mxu0 0.0
    %3061 = vmatprep.subr.mxu0 0.0
    %3062 = vmatpush2.msra.mxu0 0.0
    %3063 = vmatprep.subr.mxu0 0.0
    %3064 = vmatpush2.msra.mxu0 0.0
    %3065 = vmatprep.subr.mxu0 0.0
    %3066 = vmatpush2.msra.mxu0 0.0
    %3067 = vmatprep.subr.mxu0 0.0
    %3068 = vmatpush2.msra.mxu0 0.0
    %3069 = vmatprep.subr.mxu0 0.0
    %3070 = vmatpush2.msra.mxu0 0.0
    %3071 = vmatprep.subr.mxu0 0.0
    %3072 = vmatpush2.msra.mxu0 0.0
    %3073 = vmatprep.subr.mxu0 0.0
    %3074 = vmatpush2.msra.mxu0 0.0
    %3075 = vmatprep.subr.mxu0 0.0
    %3076 = vmatpush2.msra.mxu0 0.0
    %3077 = vmatprep.subr.mxu0 0.0
    %3078 = vmatpush2.msra.mxu0 0.0
    %3079 = vmatprep.subr.mxu0 0.0
    %3080 = vmatpush2.msra.mxu0 0.0
    %3081 = vmatprep.subr.mxu0 0.0
    %3082 = vmatpush2.msra.mxu0 0.0
    %3083 = vmatprep.subr.mxu0 0.0
    %3084 = vmatpush2.msra.mxu0 0.0
    %3085 = vmatprep.subr.mxu0 0.0
    %3086 = vmatpush2.msra.mxu0 0.0
    %3087 = vmatprep.subr.mxu0 0.0
    %3088 = vmatpush2.msra.mxu0 0.0
    %3089 = vmatprep.mubr.f32.mxu0 0.0
    %3090 = vmatmul.mubr.f32.gmra.mxu0 %v1699
    %v3091 = vpop.f32.mrf.mxu0
    %v3092 = vadd.f32 %v2939, %v3091
    %v3093 = vpop.f32.mrf.mxu0
    %v3094 = vadd.f32 %v2943, %v3093
    %3095 = vmatprep.mubr.f32.mxu0 0.0
    %3096 = vmatmul.mubr.f32.gmra.mxu0 %v1702
    %v3097 = vpop.f32.mrf.mxu0
    %v3098 = vadd.f32 %v2939, %v3097
    %v3099 = vpop.f32.mrf.mxu0
    %v3100 = vadd.f32 %v2943, %v3099
    %3101 = vdwg.mxu0
    %v3102 = vmax.f32 %v3015, 0.0
    %v3103 = vmax.f32 %v3017, 0.0
    %v3104 = vmax.f32 %v3092, 0.0
    %v3105 = vmax.f32 %v3094, 0.0
    %v3106 = vmax.f32 %v3021, 0.0
    %v3107 = vmax.f32 %v3023, 0.0
    %v3108 = vmax.f32 %v3098, 0.0
    %v3109 = vmax.f32 %v3100, 0.0
    %v3110 = vld [vmem:[%s9 + $0x600] sm:$0xff]
    %v3111 = vld [vmem:[%s9 + $0x608] sm:$0xff]
    %v3112 = vld [vmem:[%s9 + $0x610] sm:$0xff]
    %v3113 = vld [vmem:[%s9 + $0x618] sm:$0xff]
    %v3114 = vld [vmem:[%s9 + $0x620] sm:$0xff]
    %v3115 = vld [vmem:[%s9 + $0x628] sm:$0xff]
    %v3116 = vld [vmem:[%s9 + $0x630] sm:$0xff]
    %v3117 = vld [vmem:[%s9 + $0x638] sm:$0xff]
    %v3118 = vld [vmem:[%s9 + $0x640] sm:$0xff]
    %v3119 = vld [vmem:[%s9 + $0x648] sm:$0xff]
    %v3120 = vld [vmem:[%s9 + $0x650] sm:$0xff]
    %v3121 = vld [vmem:[%s9 + $0x658] sm:$0xff]
    %v3122 = vld [vmem:[%s9 + $0x660] sm:$0xff]
    %v3123 = vld [vmem:[%s9 + $0x668] sm:$0xff]
    %v3124 = vld [vmem:[%s9 + $0x670] sm:$0xff]
    %v3125 = vld [vmem:[%s9 + $0x678] sm:$0xff]
    %v3126 = vld [vmem:[%s9 + $0x680] sm:$0xff]
    %v3127 = vld [vmem:[%s9 + $0x688] sm:$0xff]
    %v3128 = vld [vmem:[%s9 + $0x690] sm:$0xff]
    %v3129 = vld [vmem:[%s9 + $0x698] sm:$0xff]
    %v3130 = vld [vmem:[%s9 + $0x6a0] sm:$0xff]
    %v3131 = vld [vmem:[%s9 + $0x6a8] sm:$0xff]
    %v3132 = vld [vmem:[%s9 + $0x6b0] sm:$0xff]
    %v3133 = vld [vmem:[%s9 + $0x6b8] sm:$0xff]
    %v3134 = vld [vmem:[%s9 + $0x6c0] sm:$0xff]
    %v3135 = vld [vmem:[%s9 + $0x6c8] sm:$0xff]
    %v3136 = vld [vmem:[%s9 + $0x6d0] sm:$0xff]
    %v3137 = vld [vmem:[%s9 + $0x6d8] sm:$0xff]
    %v3138 = vld [vmem:[%s9 + $0x6e0] sm:$0xff]
    %v3139 = vld [vmem:[%s9 + $0x6e8] sm:$0xff]
    %v3140 = vld [vmem:[%s9 + $0x6f0] sm:$0xff]
    %v3141 = vld [vmem:[%s9 + $0x6f8] sm:$0xff]
    %v3142 = vld [vmem:[%s9 + $0x700] sm:$0xff]
    %v3143 = vld [vmem:[%s9 + $0x708] sm:$0xff]
    %v3144 = vld [vmem:[%s9 + $0x710] sm:$0xff]
    %v3145 = vld [vmem:[%s9 + $0x718] sm:$0xff]
    %v3146 = vld [vmem:[%s9 + $0x720] sm:$0xff]
    %v3147 = vld [vmem:[%s9 + $0x728] sm:$0xff]
    %v3148 = vld [vmem:[%s9 + $0x730] sm:$0xff]
    %v3149 = vld [vmem:[%s9 + $0x738] sm:$0xff]
    %v3150 = vld [vmem:[%s9 + $0x740] sm:$0xff]
    %v3151 = vld [vmem:[%s9 + $0x748] sm:$0xff]
    %v3152 = vld [vmem:[%s9 + $0x750] sm:$0xff]
    %v3153 = vld [vmem:[%s9 + $0x758] sm:$0xff]
    %v3154 = vld [vmem:[%s9 + $0x760] sm:$0xff]
    %v3155 = vld [vmem:[%s9 + $0x768] sm:$0xff]
    %v3156 = vld [vmem:[%s9 + $0x770] sm:$0xff]
    %v3157 = vld [vmem:[%s9 + $0x778] sm:$0xff]
    %v3158 = vld [vmem:[%s9 + $0x780] sm:$0xff]
    %v3159 = vld [vmem:[%s9 + $0x788] sm:$0xff]
    %v3160 = vld [vmem:[%s9 + $0x790] sm:$0xff]
    %v3161 = vld [vmem:[%s9 + $0x798] sm:$0xff]
    %v3162 = vld [vmem:[%s9 + $0x7a0] sm:$0xff]
    %v3163 = vld [vmem:[%s9 + $0x7a8] sm:$0xff]
    %v3164 = vld [vmem:[%s9 + $0x7b0] sm:$0xff]
    %v3165 = vld [vmem:[%s9 + $0x7b8] sm:$0xff]
    %v3166 = vld [vmem:[%s9 + $0x7c0] sm:$0xff]
    %v3167 = vld [vmem:[%s9 + $0x7c8] sm:$0xff]
    %v3168 = vld [vmem:[%s9 + $0x7d0] sm:$0xff]
    %v3169 = vld [vmem:[%s9 + $0x7d8] sm:$0xff]
    %v3170 = vld [vmem:[%s9 + $0x7e0] sm:$0xff]
    %v3171 = vld [vmem:[%s9 + $0x7e8] sm:$0xff]
    %v3172 = vld [vmem:[%s9 + $0x7f0] sm:$0xff]
    %v3173 = vld [vmem:[%s9 + $0x7f8] sm:$0xff]
    %3174 = vmatprep.subr.mxu0 0.0
    %3175 = vmatpush1.msra.mxu0 %v3125
    %3176 = vmatprep.subr.mxu0 0.0
    %3177 = vmatpush1.msra.mxu0 %v3124
    %3178 = vmatprep.subr.mxu0 0.0
    %3179 = vmatpush1.msra.mxu0 %v3123
    %3180 = vmatprep.subr.mxu0 0.0
    %3181 = vmatpush1.msra.mxu0 %v3122
    %3182 = vmatprep.subr.mxu0 0.0
    %3183 = vmatpush1.msra.mxu0 %v3121
    %3184 = vmatprep.subr.mxu0 0.0
    %3185 = vmatpush1.msra.mxu0 %v3120
    %3186 = vmatprep.subr.mxu0 0.0
    %3187 = vmatpush1.msra.mxu0 %v3119
    %3188 = vmatprep.subr.mxu0 0.0
    %3189 = vmatpush1.msra.mxu0 %v3118
    %3190 = vmatprep.subr.mxu0 0.0
    %3191 = vmatpush1.msra.mxu0 %v3117
    %3192 = vmatprep.subr.mxu0 0.0
    %3193 = vmatpush1.msra.mxu0 %v3116
    %3194 = vmatprep.subr.mxu0 0.0
    %3195 = vmatpush1.msra.mxu0 %v3115
    %3196 = vmatprep.subr.mxu0 0.0
    %3197 = vmatpush1.msra.mxu0 %v3114
    %3198 = vmatprep.subr.mxu0 0.0
    %3199 = vmatpush1.msra.mxu0 %v3113
    %3200 = vmatprep.subr.mxu0 0.0
    %3201 = vmatpush1.msra.mxu0 %v3112
    %3202 = vmatprep.subr.mxu0 0.0
    %3203 = vmatpush1.msra.mxu0 %v3111
    %3204 = vmatprep.subr.mxu0 0.0
    %3205 = vmatpush1.msra.mxu0 %v3110
    %3206 = vmatprep.subr.mxu0 0.0
    %3207 = vmatpush2.msra.mxu0 %v3141
    %3208 = vmatprep.subr.mxu0 0.0
    %3209 = vmatpush2.msra.mxu0 %v3140
    %3210 = vmatprep.subr.mxu0 0.0
    %3211 = vmatpush2.msra.mxu0 %v3139
    %3212 = vmatprep.subr.mxu0 0.0
    %3213 = vmatpush2.msra.mxu0 %v3138
    %3214 = vmatprep.subr.mxu0 0.0
    %3215 = vmatpush2.msra.mxu0 %v3137
    %3216 = vmatprep.subr.mxu0 0.0
    %3217 = vmatpush2.msra.mxu0 %v3136
    %3218 = vmatprep.subr.mxu0 0.0
    %3219 = vmatpush2.msra.mxu0 %v3135
    %3220 = vmatprep.subr.mxu0 0.0
    %3221 = vmatpush2.msra.mxu0 %v3134
    %3222 = vmatprep.subr.mxu0 0.0
    %3223 = vmatpush2.msra.mxu0 %v3133
    %3224 = vmatprep.subr.mxu0 0.0
    %3225 = vmatpush2.msra.mxu0 %v3132
    %3226 = vmatprep.subr.mxu0 0.0
    %3227 = vmatpush2.msra.mxu0 %v3131
    %3228 = vmatprep.subr.mxu0 0.0
    %3229 = vmatpush2.msra.mxu0 %v3130
    %3230 = vmatprep.subr.mxu0 0.0
    %3231 = vmatpush2.msra.mxu0 %v3129
    %3232 = vmatprep.subr.mxu0 0.0
    %3233 = vmatpush2.msra.mxu0 %v3128
    %3234 = vmatprep.subr.mxu0 0.0
    %3235 = vmatpush2.msra.mxu0 %v3127
    %3236 = vmatprep.subr.mxu0 0.0
    %3237 = vmatpush2.msra.mxu0 %v3126
    %3238 = vmatprep.mubr.f32.mxu0 %v3103
    %3239 = vmatmul.mubr.f32.gmra.mxu0 %v3102
    %v3240 = vpop.f32.mrf.mxu0
    %v3241 = vadd.f32 0.0, %v3240
    %v3242 = vpop.f32.mrf.mxu0
    %3243 = vmatprep.mubr.f32.mxu0 %v3107
    %3244 = vmatmul.mubr.f32.gmra.mxu0 %v3106
    %v3245 = vpop.f32.mrf.mxu0
    %v3246 = vadd.f32 0.0, %v3245
    %v3247 = vpop.f32.mrf.mxu0
    %3248 = vdwg.mxu0
    %3249 = vmatprep.subr.mxu0 0.0
    %3250 = vmatpush1.msra.mxu0 %v3157
    %3251 = vmatprep.subr.mxu0 0.0
    %3252 = vmatpush1.msra.mxu0 %v3156
    %3253 = vmatprep.subr.mxu0 0.0
    %3254 = vmatpush1.msra.mxu0 %v3155
    %3255 = vmatprep.subr.mxu0 0.0
    %3256 = vmatpush1.msra.mxu0 %v3154
    %3257 = vmatprep.subr.mxu0 0.0
    %3258 = vmatpush1.msra.mxu0 %v3153
    %3259 = vmatprep.subr.mxu0 0.0
    %3260 = vmatpush1.msra.mxu0 %v3152
    %3261 = vmatprep.subr.mxu0 0.0
    %3262 = vmatpush1.msra.mxu0 %v3151
    %3263 = vmatprep.subr.mxu0 0.0
    %3264 = vmatpush1.msra.mxu0 %v3150
    %3265 = vmatprep.subr.mxu0 0.0
    %3266 = vmatpush1.msra.mxu0 %v3149
    %3267 = vmatprep.subr.mxu0 0.0
    %3268 = vmatpush1.msra.mxu0 %v3148
    %3269 = vmatprep.subr.mxu0 0.0
    %3270 = vmatpush1.msra.mxu0 %v3147
    %3271 = vmatprep.subr.mxu0 0.0
    %3272 = vmatpush1.msra.mxu0 %v3146
    %3273 = vmatprep.subr.mxu0 0.0
    %3274 = vmatpush1.msra.mxu0 %v3145
    %3275 = vmatprep.subr.mxu0 0.0
    %3276 = vmatpush1.msra.mxu0 %v3144
    %3277 = vmatprep.subr.mxu0 0.0
    %3278 = vmatpush1.msra.mxu0 %v3143
    %3279 = vmatprep.subr.mxu0 0.0
    %3280 = vmatpush1.msra.mxu0 %v3142
    %3281 = vmatprep.subr.mxu0 0.0
    %3282 = vmatpush2.msra.mxu0 %v3173
    %3283 = vmatprep.subr.mxu0 0.0
    %3284 = vmatpush2.msra.mxu0 %v3172
    %3285 = vmatprep.subr.mxu0 0.0
    %3286 = vmatpush2.msra.mxu0 %v3171
    %3287 = vmatprep.subr.mxu0 0.0
    %3288 = vmatpush2.msra.mxu0 %v3170
    %3289 = vmatprep.subr.mxu0 0.0
    %3290 = vmatpush2.msra.mxu0 %v3169
    %3291 = vmatprep.subr.mxu0 0.0
    %3292 = vmatpush2.msra.mxu0 %v3168
    %3293 = vmatprep.subr.mxu0 0.0
    %3294 = vmatpush2.msra.mxu0 %v3167
    %3295 = vmatprep.subr.mxu0 0.0
    %3296 = vmatpush2.msra.mxu0 %v3166
    %3297 = vmatprep.subr.mxu0 0.0
    %3298 = vmatpush2.msra.mxu0 %v3165
    %3299 = vmatprep.subr.mxu0 0.0
    %3300 = vmatpush2.msra.mxu0 %v3164
    %3301 = vmatprep.subr.mxu0 0.0
    %3302 = vmatpush2.msra.mxu0 %v3163
    %3303 = vmatprep.subr.mxu0 0.0
    %3304 = vmatpush2.msra.mxu0 %v3162
    %3305 = vmatprep.subr.mxu0 0.0
    %3306 = vmatpush2.msra.mxu0 %v3161
    %3307 = vmatprep.subr.mxu0 0.0
    %3308 = vmatpush2.msra.mxu0 %v3160
    %3309 = vmatprep.subr.mxu0 0.0
    %3310 = vmatpush2.msra.mxu0 %v3159
    %3311 = vmatprep.subr.mxu0 0.0
    %3312 = vmatpush2.msra.mxu0 %v3158
    %3313 = vmatprep.mubr.f32.mxu0 %v3105
    %3314 = vmatmul.mubr.f32.gmra.mxu0 %v3104
    %v3315 = vpop.f32.mrf.mxu0
    %v3316 = vadd.f32 %v3241, %v3315
    %v3317 = vpop.f32.mrf.mxu0
    %3318 = vmatprep.mubr.f32.mxu0 %v3109
    %3319 = vmatmul.mubr.f32.gmra.mxu0 %v3108
    %v3320 = vpop.f32.mrf.mxu0
    %v3321 = vadd.f32 %v3246, %v3320
    %v3322 = vpop.f32.mrf.mxu0
    %3323 = vdwg.mxu0
    %v3324 = vadd.f32 %v2908, %v3316
    %v3325 = vadd.f32 %v2909, %v3321
    %v3326 = vld [vmem:[%s10] sm:$0x1]
    %v3328 = vlaneseq
    %v3329 = vshrl.u32 %v3328, 7
    %v3330 = vsub.s32 0, %v3329
    %v3331 = vrot.slane %v3326, %v3330
    %v3333 = vadd.f32 %v3324, %v3331
    %v3334 = vadd.f32 %v3325, %v3331
    %v3335 = vadd.f32 %v1658, %v3333
    %v3336 = vadd.f32 %v1659, %v3334
    %v3337 = vld [vmem:[%s11] sm:$0x1]
    %v3338 = vld [vmem:[%s12] sm:$0x1]
    %v3339 = vsel %vm64, %v3335, 0.0
    %3340 = vadd.xlane.f32.xlu0 %v3339
    %v3341 = vpop.xlane.xlu0 %3340
    %v3342 = vsel %vm64, %v3336, 0.0
    %3343 = vadd.xlane.f32.xlu0 %v3342
    %v3344 = vpop.xlane.xlu0 %3343
    %v3345 = vmul.f32 %v3341, %v1623
    %v3346 = vmul.f32 %v3344, %v1623
    %v3347 = vsub.f32 %v3335, %v3345
    %v3348 = vsub.f32 %v3336, %v3346
    %v3349 = vmul.f32 %v3347, %v3347
    %v3350 = vmul.f32 %v3348, %v3348
    %v3351 = vsel %vm64, %v3349, 0.0
    %3352 = vadd.xlane.f32.xlu0 %v3351
    %v3353 = vpop.xlane.xlu0 %3352
    %v3354 = vsel %vm64, %v3350, 0.0
    %3355 = vadd.xlane.f32.xlu0 %v3354
    %v3356 = vpop.xlane.xlu0 %3355
    %v3357 = vmul.f32 %v3353, %v1623
    %v3358 = vmul.f32 %v3356, %v1623
    %v3359 = vadd.f32 %v3357, 1e-05
    %v3360 = vadd.f32 %v3358, 1e-05
    %v3361 = vrsqrt.pop %v3359
    %v3362 = vrsqrt.pop %v3360
    %v3363 = vmul.f32 %v3347, %v3361
    %v3364 = vmul.f32 %v3348, %v3362
    %v3366 = vlaneseq
    %v3367 = vshrl.u32 %v3366, 7
    %v3368 = vsub.s32 0, %v3367
    %v3369 = vrot.slane %v3337, %v3368
    %v3371 = vmul.f32 %v3363, %v3369
    %v3372 = vmul.f32 %v3364, %v3369
    %v3374 = vlaneseq
    %v3375 = vshrl.u32 %v3374, 7
    %v3376 = vsub.s32 0, %v3375
    %v3377 = vrot.slane %v3338, %v3376
    %v3379 = vadd.f32 %v3371, %v3377
    %v3380 = vadd.f32 %v3372, %v3377
    %v3383 = vrot.slane %v3380, 7
    %vm3384 = vcmask 1041409
    %v3385 = vsel %vm3384, %v3383, %v3379
    %v3387 = vrot.slane %v3379, 1
    %v3388 = vsel %vm3384, %v3380, %v3387
    %3389 = vrot.lane.b32.xlu0 %v3388, 32
    %v3390 = vpop.permute.xlu0 %3389
    %v3392 = vrot.slane %v3379, 2
    %v3393 = vrot.slane %v3380, 1
    %v3394 = vsel %vm3384, %v3393, %v3392
    %3395 = vrot.lane.b32.xlu0 %v3394, 64
    %v3396 = vpop.permute.xlu0 %3395
    %v3398 = vrot.slane %v3379, 3
    %v3399 = vrot.slane %v3380, 2
    %v3400 = vsel %vm3384, %v3399, %v3398
    %3401 = vrot.lane.b32.xlu0 %v3400, 96
    %v3402 = vpop.permute.xlu0 %3401
    %v3404 = vrot.slane %v3379, 4
    %v3405 = vrot.slane %v3380, 3
    %v3406 = vsel %vm3384, %v3405, %v3404
    %v3408 = vrot.slane %v3379, 5
    %v3409 = vrot.slane %v3380, 4
    %v3410 = vsel %vm3384, %v3409, %v3408
    %3411 = vrot.lane.b32.xlu0 %v3410, 32
    %v3412 = vpop.permute.xlu0 %3411
    %v3414 = vrot.slane %v3379, 6
    %v3415 = vrot.slane %v3380, 5
    %v3416 = vsel %vm3384, %v3415, %v3414
    %3417 = vrot.lane.b32.xlu0 %v3416, 64
    %v3418 = vpop.permute.xlu0 %3417
    %v3420 = vrot.slane %v3379, 7
    %v3421 = vrot.slane %v3380, 6
    %v3422 = vsel %vm3384, %v3421, %v3420
    %3423 = vrot.lane.b32.xlu0 %v3422, 96
    %v3424 = vpop.permute.xlu0 %3423
    %v3426 = vsel %vm64, %v3385, %v3390
    %vm3427 = vcmask 523264
    %v3428 = vsel %vm3427, %v3426, %v3396
    %vm3429 = vcmask 785408
    %v3430 = vsel %vm3429, %v3428, %v3402
    %v3431 = vsel %vm64, %v3406, %v3412
    %v3432 = vsel %vm3427, %v3431, %v3418
    %v3433 = vsel %vm3429, %v3432, %v3424
    %v3434 = vld [vmem:[%s13] sm:$0xff]
    %v3435 = vld [vmem:[%s13 + $0x8] sm:$0xff]
    %v3436 = vld [vmem:[%s13 + $0x10] sm:$0xff]
    %v3437 = vld [vmem:[%s13 + $0x18] sm:$0xff]
    %v3438 = vld [vmem:[%s13 + $0x20] sm:$0xff]
    %v3439 = vld [vmem:[%s13 + $0x28] sm:$0xff]
    %v3440 = vld [vmem:[%s13 + $0x30] sm:$0xff]
    %v3441 = vld [vmem:[%s13 + $0x38] sm:$0xff]
    %v3442 = vld [vmem:[%s13 + $0x40] sm:$0xff]
    %v3443 = vld [vmem:[%s13 + $0x48] sm:$0xff]
    %v3444 = vld [vmem:[%s13 + $0x50] sm:$0xff]
    %v3445 = vld [vmem:[%s13 + $0x58] sm:$0xff]
    %v3446 = vld [vmem:[%s13 + $0x60] sm:$0xff]
    %v3447 = vld [vmem:[%s13 + $0x68] sm:$0xff]
    %v3448 = vld [vmem:[%s13 + $0x70] sm:$0xff]
    %v3449 = vld [vmem:[%s13 + $0x78] sm:$0xff]
    %v3450 = vld [vmem:[%s13 + $0x80] sm:$0xff]
    %v3451 = vld [vmem:[%s13 + $0x88] sm:$0xff]
    %v3452 = vld [vmem:[%s13 + $0x90] sm:$0xff]
    %v3453 = vld [vmem:[%s13 + $0x98] sm:$0xff]
    %v3454 = vld [vmem:[%s13 + $0xa0] sm:$0xff]
    %v3455 = vld [vmem:[%s13 + $0xa8] sm:$0xff]
    %v3456 = vld [vmem:[%s13 + $0xb0] sm:$0xff]
    %v3457 = vld [vmem:[%s13 + $0xb8] sm:$0xff]
    %v3458 = vld [vmem:[%s13 + $0xc0] sm:$0xff]
    %v3459 = vld [vmem:[%s13 + $0xc8] sm:$0xff]
    %v3460 = vld [vmem:[%s13 + $0xd0] sm:$0xff]
    %v3461 = vld [vmem:[%s13 + $0xd8] sm:$0xff]
    %v3462 = vld [vmem:[%s13 + $0xe0] sm:$0xff]
    %v3463 = vld [vmem:[%s13 + $0xe8] sm:$0xff]
    %v3464 = vld [vmem:[%s13 + $0xf0] sm:$0xff]
    %v3465 = vld [vmem:[%s13 + $0xf8] sm:$0xff]
    %v3466 = vld [vmem:[%s14] sm:$0x1]
    %v3468 = vlaneseq
    %v3469 = vshrl.u32 %v3468, 7
    %v3470 = vsub.s32 0, %v3469
    %v3471 = vrot.slane %v3466, %v3470
    %3473 = vmatprep.subr.mxu0 0.0
    %3474 = vmatpush1.msra.mxu0 %v3449
    %3475 = vmatprep.subr.mxu0 0.0
    %3476 = vmatpush1.msra.mxu0 %v3448
    %3477 = vmatprep.subr.mxu0 0.0
    %3478 = vmatpush1.msra.mxu0 %v3447
    %3479 = vmatprep.subr.mxu0 0.0
    %3480 = vmatpush1.msra.mxu0 %v3446
    %3481 = vmatprep.subr.mxu0 0.0
    %3482 = vmatpush1.msra.mxu0 %v3445
    %3483 = vmatprep.subr.mxu0 0.0
    %3484 = vmatpush1.msra.mxu0 %v3444
    %3485 = vmatprep.subr.mxu0 0.0
    %3486 = vmatpush1.msra.mxu0 %v3443
    %3487 = vmatprep.subr.mxu0 0.0
    %3488 = vmatpush1.msra.mxu0 %v3442
    %3489 = vmatprep.subr.mxu0 0.0
    %3490 = vmatpush1.msra.mxu0 %v3441
    %3491 = vmatprep.subr.mxu0 0.0
    %3492 = vmatpush1.msra.mxu0 %v3440
    %3493 = vmatprep.subr.mxu0 0.0
    %3494 = vmatpush1.msra.mxu0 %v3439
    %3495 = vmatprep.subr.mxu0 0.0
    %3496 = vmatpush1.msra.mxu0 %v3438
    %3497 = vmatprep.subr.mxu0 0.0
    %3498 = vmatpush1.msra.mxu0 %v3437
    %3499 = vmatprep.subr.mxu0 0.0
    %3500 = vmatpush1.msra.mxu0 %v3436
    %3501 = vmatprep.subr.mxu0 0.0
    %3502 = vmatpush1.msra.mxu0 %v3435
    %3503 = vmatprep.subr.mxu0 0.0
    %3504 = vmatpush1.msra.mxu0 %v3434
    %3505 = vmatprep.subr.mxu0 0.0
    %3506 = vmatpush2.msra.mxu0 %v3465
    %3507 = vmatprep.subr.mxu0 0.0
    %3508 = vmatpush2.msra.mxu0 %v3464
    %3509 = vmatprep.subr.mxu0 0.0
    %3510 = vmatpush2.msra.mxu0 %v3463
    %3511 = vmatprep.subr.mxu0 0.0
    %3512 = vmatpush2.msra.mxu0 %v3462
    %3513 = vmatprep.subr.mxu0 0.0
    %3514 = vmatpush2.msra.mxu0 %v3461
    %3515 = vmatprep.subr.mxu0 0.0
    %3516 = vmatpush2.msra.mxu0 %v3460
    %3517 = vmatprep.subr.mxu0 0.0
    %3518 = vmatpush2.msra.mxu0 %v3459
    %3519 = vmatprep.subr.mxu0 0.0
    %3520 = vmatpush2.msra.mxu0 %v3458
    %3521 = vmatprep.subr.mxu0 0.0
    %3522 = vmatpush2.msra.mxu0 %v3457
    %3523 = vmatprep.subr.mxu0 0.0
    %3524 = vmatpush2.msra.mxu0 %v3456
    %3525 = vmatprep.subr.mxu0 0.0
    %3526 = vmatpush2.msra.mxu0 %v3455
    %3527 = vmatprep.subr.mxu0 0.0
    %3528 = vmatpush2.msra.mxu0 %v3454
    %3529 = vmatprep.subr.mxu0 0.0
    %3530 = vmatpush2.msra.mxu0 %v3453
    %3531 = vmatprep.subr.mxu0 0.0
    %3532 = vmatpush2.msra.mxu0 %v3452
    %3533 = vmatprep.subr.mxu0 0.0
    %3534 = vmatpush2.msra.mxu0 %v3451
    %3535 = vmatprep.subr.mxu0 0.0
    %3536 = vmatpush2.msra.mxu0 %v3450
    %3537 = vmatprep.mubr.f32.mxu0 %v3433
    %3538 = vmatmul.mubr.f32.gmra.mxu0 %v3430
    %v3539 = vpop.f32.mrf.mxu0
    %v3540 = vadd.f32 %v3471, %v3539
    %v3541 = vpop.f32.mrf.mxu0
    %3542 = vdwg.mxu0
    %vm3543 = vcmask 33792
    %3544 = vst.msk [vmem:[#allocation2] sm:$0x3] %vm3543, %v3540
    // Predicated region
    $region62: #{tpu_custom_call.1} parent=1 // pred_check
      _
    $region63: #{tpu_custom_call.1} parent=1 // pred_check_branch
      %3546 = sbr.rel (0) target = $region65
    $region64: #{tpu_custom_call.1} parent=1 // pred_region
      %s3548 = ssub.s32 32, 32
      %3549 = vsyncadd [#allocation3], %s3548
      %s3551 = sshll.u32 [#allocation2], 4
      %s3552 = int_to_ptr.vmem [resolvable:$true] %s3551
      %3554 = dma.vmem_to_hbm [thread:$0]  %s3552, 32, %s15, [#allocation3]
    $region65: #{tpu_custom_call.1} parent=1 // pred_fallthru
      _
    // Predicated region
    $region66: #{tpu_custom_call.1} parent=1 // pred_check
      _
    $region67: #{tpu_custom_call.1} parent=1 // pred_check_branch
      %3556 = sbr.rel (0) target = $region69
    $region68: #{tpu_custom_call.1} parent=1 // pred_region
      %3557 = dma.done [#allocation3], 32
    $region69: #{tpu_custom_call.1} parent=1 // pred_fallthru
      _
    %3558 = vsyncpa [#allocation3], 1

</llo_original>
